<compile_context>
chip_gen: v7x
topology: tpu7x:2x2x1
jax: 0.10.0
libtpu: 0.0.40
codegen_flags: <defaults>
</compile_context>

<pallas_src>
import functools

import jax
import jax.numpy as jnp
import numpy as np
from jax import lax
from jax.experimental import pallas as pl
from jax.experimental.pallas import tpu as pltpu


def _round_up(v, m):
    return ((v + m - 1) // m) * m


def _sem_embed_kernel(x_ref, klog_ref, gamma_ref, beta_ref, o_ref, xpad_ref, *,
                      H, W, C, KH, KW, PH, PW, PWL, TH, eps):
    # x_ref    : [H, W, C]            channels-last activation (one batch element)
    # klog_ref : [KH*KW, C]           pre-softmax pooled kernel logits (taps in sublanes)
    # gamma_ref, beta_ref : [1, C]    LayerNorm affine params
    # o_ref    : [H, W, C]
    # xpad_ref : [H+2*PH, W+2*PWL, C] VMEM scratch holding the zero-padded activation

    # ---- fused zero-padding: zero the scratch, drop x into the aligned interior ----
    xpad_ref[...] = jnp.zeros_like(xpad_ref)
    xpad_ref[PH:PH + H, PWL:PWL + W, :] = x_ref[...]

    # ---- softmax over the KH*KW taps (sublane axis), per channel ----
    kl = klog_ref[...].astype(jnp.float32)                       # [KH*KW, C]
    kl = kl - jnp.max(kl, axis=0, keepdims=True)
    ke = jnp.exp(kl)
    kern = ke / jnp.sum(ke, axis=0, keepdims=True)               # [KH*KW, C]

    g = gamma_ref[...].astype(jnp.float32)                       # [1, C]
    b = beta_ref[...].astype(jnp.float32)                        # [1, C]

    nchunks = H // TH

    def chunk_body(ch, carry):
        h0 = pl.multiple_of(ch * TH, TH)
        # ---- dynamic depthwise conv: register accumulation over KH*KW taps ----
        acc = None
        for i in range(KH):
            for j in range(KW):
                patch = xpad_ref[pl.ds(h0 + i, TH),
                                 pl.ds(PWL - PW + j, W), :].astype(jnp.float32)
                t = i * KW + j
                term = patch * kern[t:t + 1, :]                  # [TH,W,C] * [1,C]
                acc = term if acc is None else acc + term
        # ---- LayerNorm over the channel (lane) axis ----
        mean = jnp.mean(acc, axis=-1, keepdims=True)
        cen = acc - mean
        var = jnp.mean(cen * cen, axis=-1, keepdims=True)
        y = cen * lax.rsqrt(var + eps) * g + b
        # ---- ReLU + residual (residual re-read from the scratch interior) ----
        xres = xpad_ref[pl.ds(h0 + PH, TH), pl.ds(PWL, W), :].astype(jnp.float32)
        y = jnp.maximum(y, 0.0) + xres
        o_ref[pl.ds(h0, TH), :, :] = y.astype(o_ref.dtype)
        return carry

    lax.fori_loop(0, nchunks, chunk_body, 0)


def _adaptive_max_pool2d(x, out_hw):
    """Matches torch.nn.AdaptiveMaxPool2d: start=floor(i*L/O), end=ceil((i+1)*L/O)."""
    B, C, Hin, Win = x.shape
    OH, OW = out_hw
    rows = []
    for i in range(OH):
        hs = (i * Hin) // OH
        he = -((-(i + 1) * Hin) // OH)
        cols = []
        for j in range(OW):
            ws = (j * Win) // OW
            we = -((-(j + 1) * Win) // OW)
            cols.append(jnp.max(x[:, :, hs:he, ws:we], axis=(2, 3)))
        rows.append(jnp.stack(cols, axis=-1))
    return jnp.stack(rows, axis=-2)                               # [B, C, OH, OW]


def semantic_embedding_branch(x, xk, gamma, beta, *, kernel_size=(7, 7), eps=1e-5):
    """x: [B, C, H, W], xk: [B, C, Hk, Wk]  ->  [B, C, H, W]  (PyTorch layout)."""
    B, C, H, W = x.shape
    KH, KW = kernel_size
    assert KH == KW and KH % 2 == 1, "module default is a square, odd kernel"
    PH = (KH - 1) // 2            # module uses a single padding value for both dims
    PW = PH
    PWL = _round_up(PW, 8)        # sublane-aligned interior offset inside the scratch
    TH = 8 if H % 8 == 0 else H   # rows per chunk (bounds the live register accumulator)

    # --- pure-JAX glue: tiny pooled kernels + layout transposes only ---
    pooled = _adaptive_max_pool2d(xk, (KH, KW))                          # [B, C, KH, KW]
    klog = jnp.transpose(pooled.reshape(B, C, KH * KW), (0, 2, 1))       # [B, KH*KW, C]
    x_cl = jnp.transpose(x, (0, 2, 3, 1))                                # [B, H, W, C]
    gamma2 = gamma.reshape(1, C).astype(x.dtype)
    beta2 = beta.reshape(1, C).astype(x.dtype)

    kernel = functools.partial(
        _sem_embed_kernel, H=H, W=W, C=C, KH=KH, KW=KW,
        PH=PH, PW=PW, PWL=PWL, TH=TH, eps=eps)

    out_cl = pl.pallas_call(
        kernel,
        out_shape=jax.ShapeDtypeStruct((B, H, W, C), x.dtype),
        grid_spec=pltpu.PrefetchScalarGridSpec(
            num_scalar_prefetch=0,
            grid=(B,),
            in_specs=[
                pl.BlockSpec((None, H, W, C), lambda b: (b, 0, 0, 0)),
                pl.BlockSpec((None, KH * KW, C), lambda b: (b, 0, 0)),
                pl.BlockSpec((1, C), lambda b: (0, 0)),
                pl.BlockSpec((1, C), lambda b: (0, 0)),
            ],
            out_specs=pl.BlockSpec((None, H, W, C), lambda b: (b, 0, 0, 0)),
            scratch_shapes=[
                pltpu.VMEM((H + 2 * PH, W + 2 * PWL, C), x.dtype),
            ],
        ),
        compiler_params=pltpu.CompilerParams(
            dimension_semantics=("parallel",)),
    )(x_cl, klog, gamma2, beta2)

    return jnp.transpose(out_cl, (0, 3, 1, 2))                           # [B, C, H, W]


if __name__ == "__main__":
    key = jax.random.PRNGKey(0)
    kx, kk, kg, kb = jax.random.split(key, 4)

    B, C, H, W = 2, 32, 16, 16     # dim = 32
    HK, WK = 16, 16                # xk spatial size (adaptive-pooled down to 7x7)
    KH, KW = 7, 7                  # module default kernel_size
    eps = 1e-5

    x = jax.random.normal(kx, (B, C, H, W), jnp.float32)
    xk = jax.random.normal(kk, (B, C, HK, WK), jnp.float32)
    gamma = 1.0 + 0.1 * jax.random.normal(kg, (C,), jnp.float32)   # LayerNorm weight
    beta = 0.1 * jax.random.normal(kb, (C,), jnp.float32)          # LayerNorm bias

    out = semantic_embedding_branch(x, xk, gamma, beta, kernel_size=(KH, KW), eps=eps)
    out = jax.block_until_ready(out)

    # ---- pure-JAX reference with identical semantics ----
    pooled = _adaptive_max_pool2d(xk, (KH, KW))
    kern = jax.nn.softmax(pooled.reshape(B, C, KH * KW), axis=-1).reshape(B, C, KH, KW)
    P = (KH - 1) // 2
    conv = lax.conv_general_dilated(
        x.reshape(1, B * C, H, W), kern.reshape(B * C, 1, KH, KW),
        window_strides=(1, 1), padding=((P, P), (P, P)),
        dimension_numbers=('NCHW', 'OIHW', 'NCHW'),
        feature_group_count=B * C,
        precision=lax.Precision.HIGHEST).reshape(B, C, H, W)
    m = jnp.mean(conv, axis=1, keepdims=True)
    v = jnp.mean((conv - m) ** 2, axis=1, keepdims=True)
    ln = (conv - m) * lax.rsqrt(v + eps) * gamma[None, :, None, None] \
         + beta[None, :, None, None]
    ref = jnp.maximum(ln, 0.0) + x

    assert out.shape == ref.shape, (out.shape, ref.shape)
    np.testing.assert_allclose(np.asarray(out), np.asarray(ref), rtol=3e-4, atol=3e-4)
    print("KERNEL_OK")
</pallas_src>

<mosaic_0001>
module attributes {stable_mosaic.version = 11 : i64} {
  func.func @_sem_embed_kernel(%arg0: i32, %arg1: memref<1x16x16x32xf32, #tpu.memory_space<vmem>>, %arg2: memref<1x49x32xf32, #tpu.memory_space<vmem>>, %arg3: memref<1x32xf32, #tpu.memory_space<vmem>>, %arg4: memref<1x32xf32, #tpu.memory_space<vmem>>, %arg5: memref<1x16x16x32xf32, #tpu.memory_space<vmem>>, %arg6: memref<22x32x32xf32, #tpu.memory_space<vmem>>) attributes {dimension_semantics = [#tpu.dimension_semantics<parallel>], iteration_bounds = array<i64: 2>, scalar_prefetch = 0 : i64, scratch_operands = 1 : i64, tpu.core_type = #tpu.core_type<tc>, window_params = [{transform_indices = @transform_0, window_bounds = array<i64: 1, 16, 16, 32>}, {transform_indices = @transform_1, window_bounds = array<i64: 1, 49, 32>}, {pipeline_mode = #tpu.pipeline_mode<synchronous>, transform_indices = @transform_2, window_bounds = array<i64: 1, 32>}, {pipeline_mode = #tpu.pipeline_mode<synchronous>, transform_indices = @transform_3, window_bounds = array<i64: 1, 32>}, {transform_indices = @transform_4, window_bounds = array<i64: 1, 16, 16, 32>}]} {
    %cst = arith.constant 0.000000e+00 : f32
    %0 = vector.broadcast %cst : f32 to vector<22x32x32xf32>
    %c0 = arith.constant 0 : index
    %c0_0 = arith.constant 0 : index
    %c0_1 = arith.constant 0 : index
    %1 = vector.load %arg6[%c0, %c0_0, %c0_1] : memref<22x32x32xf32, #tpu.memory_space<vmem>>, vector<22x32x32xf32>
    tpu.vector_store %arg6[%c0, %c0_0, %c0_1], %0 {strides = array<i32>} : memref<22x32x32xf32, #tpu.memory_space<vmem>>, vector<22x32x32xf32>,
    %c0_2 = arith.constant 0 : index
    %c0_3 = arith.constant 0 : index
    %c0_4 = arith.constant 0 : index
    %c0_5 = arith.constant 0 : index
    %2 = vector.load %arg1[%c0_2, %c0_3, %c0_4, %c0_5] : memref<1x16x16x32xf32, #tpu.memory_space<vmem>>, vector<1x16x16x32xf32>
    %3 = vector.shape_cast %2 : vector<1x16x16x32xf32> to vector<16x16x32xf32>
    %c3 = arith.constant 3 : index
    %c8 = arith.constant 8 : index
    %c0_6 = arith.constant 0 : index
    %4 = vector.load %arg6[%c3, %c8, %c0_6] : memref<22x32x32xf32, #tpu.memory_space<vmem>>, vector<16x16x32xf32>
    tpu.vector_store %arg6[%c3, %c8, %c0_6], %3 {strides = array<i32>} : memref<22x32x32xf32, #tpu.memory_space<vmem>>, vector<16x16x32xf32>,
    %c0_7 = arith.constant 0 : index
    %c0_8 = arith.constant 0 : index
    %c0_9 = arith.constant 0 : index
    %5 = vector.load %arg2[%c0_7, %c0_8, %c0_9] : memref<1x49x32xf32, #tpu.memory_space<vmem>>, vector<1x49x32xf32>
    %6 = vector.shape_cast %5 : vector<1x49x32xf32> to vector<49x32xf32>
    %cst_10 = arith.constant dense<0xFF800000> : vector<32xf32>
    %7 = vector.multi_reduction <maximumf>, %6, %cst_10 [0] : vector<49x32xf32> to vector<32xf32>
    %8 = vector.shape_cast %7 : vector<32xf32> to vector<1x32xf32>
    %9 = vector.broadcast %8 : vector<1x32xf32> to vector<49x32xf32>
    %10 = arith.subf %6, %9 : vector<49x32xf32>
    %11 = math.exp %10 : vector<49x32xf32>
    %cst_11 = arith.constant dense<0.000000e+00> : vector<32xf32>
    %12 = vector.multi_reduction <add>, %11, %cst_11 [0] : vector<49x32xf32> to vector<32xf32>
    %13 = vector.shape_cast %12 : vector<32xf32> to vector<1x32xf32>
    %14 = vector.broadcast %13 : vector<1x32xf32> to vector<49x32xf32>
    %15 = arith.divf %11, %14 : vector<49x32xf32>
    %c0_12 = arith.constant 0 : index
    %c0_13 = arith.constant 0 : index
    %16 = vector.load %arg3[%c0_12, %c0_13] : memref<1x32xf32, #tpu.memory_space<vmem>>, vector<1x32xf32>
    %c0_14 = arith.constant 0 : index
    %c0_15 = arith.constant 0 : index
    %17 = vector.load %arg4[%c0_14, %c0_15] : memref<1x32xf32, #tpu.memory_space<vmem>>, vector<1x32xf32>
    %c0_i32 = arith.constant 0 : i32
    %c2_i32 = arith.constant 2 : i32
    %18 = arith.addi %c0_i32, %c2_i32 : i32
    %c1_i32 = arith.constant 1 : i32
    scf.for %arg7 = %c0_i32 to %18 step %c1_i32  : i32 {
      %c8_i32 = arith.constant 8 : i32
      %19 = arith.muli %arg7, %c8_i32 : i32
      %20 = tpu.assume_multiple %19, 8 : i32
      %c0_i32_17 = arith.constant 0 : i32
      %21 = arith.addi %20, %c0_i32_17 : i32
      %22 = arith.index_cast %21 : i32 to index
      %c5 = arith.constant 5 : index
      %c0_18 = arith.constant 0 : index
      %23 = vector.load %arg6[%22, %c5, %c0_18] : memref<22x32x32xf32, #tpu.memory_space<vmem>>, vector<8x16x32xf32>
      %24 = vector.extract_strided_slice %15 {offsets = [0, 0], sizes = [1, 32], strides = [1, 1]} : vector<49x32xf32> to vector<1x32xf32>
      %25 = vector.shape_cast %24 : vector<1x32xf32> to vector<1x1x32xf32>
      %26 = vector.broadcast %25 : vector<1x1x32xf32> to vector<8x16x32xf32>
      %27 = arith.mulf %23, %26 : vector<8x16x32xf32>
      %c0_i32_19 = arith.constant 0 : i32
      %28 = arith.addi %20, %c0_i32_19 : i32
      %29 = arith.index_cast %28 : i32 to index
      %c6 = arith.constant 6 : index
      %c0_20 = arith.constant 0 : index
      %30 = vector.load %arg6[%29, %c6, %c0_20] : memref<22x32x32xf32, #tpu.memory_space<vmem>>, vector<8x16x32xf32>
      %31 = vector.extract_strided_slice %15 {offsets = [1, 0], sizes = [1, 32], strides = [1, 1]} : vector<49x32xf32> to vector<1x32xf32>
      %32 = vector.shape_cast %31 : vector<1x32xf32> to vector<1x1x32xf32>
      %33 = vector.broadcast %32 : vector<1x1x32xf32> to vector<8x16x32xf32>
      %34 = arith.mulf %30, %33 : vector<8x16x32xf32>
      %35 = arith.addf %27, %34 : vector<8x16x32xf32>
      %c0_i32_21 = arith.constant 0 : i32
      %36 = arith.addi %20, %c0_i32_21 : i32
      %37 = arith.index_cast %36 : i32 to index
      %c7 = arith.constant 7 : index
      %c0_22 = arith.constant 0 : index
      %38 = vector.load %arg6[%37, %c7, %c0_22] : memref<22x32x32xf32, #tpu.memory_space<vmem>>, vector<8x16x32xf32>
      %39 = vector.extract_strided_slice %15 {offsets = [2, 0], sizes = [1, 32], strides = [1, 1]} : vector<49x32xf32> to vector<1x32xf32>
      %40 = vector.shape_cast %39 : vector<1x32xf32> to vector<1x1x32xf32>
      %41 = vector.broadcast %40 : vector<1x1x32xf32> to vector<8x16x32xf32>
      %42 = arith.mulf %38, %41 : vector<8x16x32xf32>
      %43 = arith.addf %35, %42 : vector<8x16x32xf32>
      %c0_i32_23 = arith.constant 0 : i32
      %44 = arith.addi %20, %c0_i32_23 : i32
      %45 = arith.index_cast %44 : i32 to index
      %c8_24 = arith.constant 8 : index
      %c0_25 = arith.constant 0 : index
      %46 = vector.load %arg6[%45, %c8_24, %c0_25] : memref<22x32x32xf32, #tpu.memory_space<vmem>>, vector<8x16x32xf32>
      %47 = vector.extract_strided_slice %15 {offsets = [3, 0], sizes = [1, 32], strides = [1, 1]} : vector<49x32xf32> to vector<1x32xf32>
      %48 = vector.shape_cast %47 : vector<1x32xf32> to vector<1x1x32xf32>
      %49 = vector.broadcast %48 : vector<1x1x32xf32> to vector<8x16x32xf32>
      %50 = arith.mulf %46, %49 : vector<8x16x32xf32>
      %51 = arith.addf %43, %50 : vector<8x16x32xf32>
      %c0_i32_26 = arith.constant 0 : i32
      %52 = arith.addi %20, %c0_i32_26 : i32
      %53 = arith.index_cast %52 : i32 to index
      %c9 = arith.constant 9 : index
      %c0_27 = arith.constant 0 : index
      %54 = vector.load %arg6[%53, %c9, %c0_27] : memref<22x32x32xf32, #tpu.memory_space<vmem>>, vector<8x16x32xf32>
      %55 = vector.extract_strided_slice %15 {offsets = [4, 0], sizes = [1, 32], strides = [1, 1]} : vector<49x32xf32> to vector<1x32xf32>
      %56 = vector.shape_cast %55 : vector<1x32xf32> to vector<1x1x32xf32>
      %57 = vector.broadcast %56 : vector<1x1x32xf32> to vector<8x16x32xf32>
      %58 = arith.mulf %54, %57 : vector<8x16x32xf32>
      %59 = arith.addf %51, %58 : vector<8x16x32xf32>
      %c0_i32_28 = arith.constant 0 : i32
      %60 = arith.addi %20, %c0_i32_28 : i32
      %61 = arith.index_cast %60 : i32 to index
      %c10 = arith.constant 10 : index
      %c0_29 = arith.constant 0 : index
      %62 = vector.load %arg6[%61, %c10, %c0_29] : memref<22x32x32xf32, #tpu.memory_space<vmem>>, vector<8x16x32xf32>
      %63 = vector.extract_strided_slice %15 {offsets = [5, 0], sizes = [1, 32], strides = [1, 1]} : vector<49x32xf32> to vector<1x32xf32>
      %64 = vector.shape_cast %63 : vector<1x32xf32> to vector<1x1x32xf32>
      %65 = vector.broadcast %64 : vector<1x1x32xf32> to vector<8x16x32xf32>
      %66 = arith.mulf %62, %65 : vector<8x16x32xf32>
      %67 = arith.addf %59, %66 : vector<8x16x32xf32>
      %c0_i32_30 = arith.constant 0 : i32
      %68 = arith.addi %20, %c0_i32_30 : i32
      %69 = arith.index_cast %68 : i32 to index
      %c11 = arith.constant 11 : index
      %c0_31 = arith.constant 0 : index
      %70 = vector.load %arg6[%69, %c11, %c0_31] : memref<22x32x32xf32, #tpu.memory_space<vmem>>, vector<8x16x32xf32>
      %71 = vector.extract_strided_slice %15 {offsets = [6, 0], sizes = [1, 32], strides = [1, 1]} : vector<49x32xf32> to vector<1x32xf32>
      %72 = vector.shape_cast %71 : vector<1x32xf32> to vector<1x1x32xf32>
      %73 = vector.broadcast %72 : vector<1x1x32xf32> to vector<8x16x32xf32>
      %74 = arith.mulf %70, %73 : vector<8x16x32xf32>
      %75 = arith.addf %67, %74 : vector<8x16x32xf32>
      %c1_i32_32 = arith.constant 1 : i32
      %76 = arith.addi %20, %c1_i32_32 : i32
      %77 = arith.index_cast %76 : i32 to index
      %c5_33 = arith.constant 5 : index
      %c0_34 = arith.constant 0 : index
      %78 = vector.load %arg6[%77, %c5_33, %c0_34] : memref<22x32x32xf32, #tpu.memory_space<vmem>>, vector<8x16x32xf32>
      %79 = vector.extract_strided_slice %15 {offsets = [7, 0], sizes = [1, 32], strides = [1, 1]} : vector<49x32xf32> to vector<1x32xf32>
      %80 = vector.shape_cast %79 : vector<1x32xf32> to vector<1x1x32xf32>
      %81 = vector.broadcast %80 : vector<1x1x32xf32> to vector<8x16x32xf32>
      %82 = arith.mulf %78, %81 : vector<8x16x32xf32>
      %83 = arith.addf %75, %82 : vector<8x16x32xf32>
      %c1_i32_35 = arith.constant 1 : i32
      %84 = arith.addi %20, %c1_i32_35 : i32
      %85 = arith.index_cast %84 : i32 to index
      %c6_36 = arith.constant 6 : index
      %c0_37 = arith.constant 0 : index
      %86 = vector.load %arg6[%85, %c6_36, %c0_37] : memref<22x32x32xf32, #tpu.memory_space<vmem>>, vector<8x16x32xf32>
      %87 = vector.extract_strided_slice %15 {offsets = [8, 0], sizes = [1, 32], strides = [1, 1]} : vector<49x32xf32> to vector<1x32xf32>
      %88 = vector.shape_cast %87 : vector<1x32xf32> to vector<1x1x32xf32>
      %89 = vector.broadcast %88 : vector<1x1x32xf32> to vector<8x16x32xf32>
      %90 = arith.mulf %86, %89 : vector<8x16x32xf32>
      %91 = arith.addf %83, %90 : vector<8x16x32xf32>
      %c1_i32_38 = arith.constant 1 : i32
      %92 = arith.addi %20, %c1_i32_38 : i32
      %93 = arith.index_cast %92 : i32 to index
      %c7_39 = arith.constant 7 : index
      %c0_40 = arith.constant 0 : index
      %94 = vector.load %arg6[%93, %c7_39, %c0_40] : memref<22x32x32xf32, #tpu.memory_space<vmem>>, vector<8x16x32xf32>
      %95 = vector.extract_strided_slice %15 {offsets = [9, 0], sizes = [1, 32], strides = [1, 1]} : vector<49x32xf32> to vector<1x32xf32>
      %96 = vector.shape_cast %95 : vector<1x32xf32> to vector<1x1x32xf32>
      %97 = vector.broadcast %96 : vector<1x1x32xf32> to vector<8x16x32xf32>
      %98 = arith.mulf %94, %97 : vector<8x16x32xf32>
      %99 = arith.addf %91, %98 : vector<8x16x32xf32>
      %c1_i32_41 = arith.constant 1 : i32
      %100 = arith.addi %20, %c1_i32_41 : i32
      %101 = arith.index_cast %100 : i32 to index
      %c8_42 = arith.constant 8 : index
      %c0_43 = arith.constant 0 : index
      %102 = vector.load %arg6[%101, %c8_42, %c0_43] : memref<22x32x32xf32, #tpu.memory_space<vmem>>, vector<8x16x32xf32>
      %103 = vector.extract_strided_slice %15 {offsets = [10, 0], sizes = [1, 32], strides = [1, 1]} : vector<49x32xf32> to vector<1x32xf32>
      %104 = vector.shape_cast %103 : vector<1x32xf32> to vector<1x1x32xf32>
      %105 = vector.broadcast %104 : vector<1x1x32xf32> to vector<8x16x32xf32>
      %106 = arith.mulf %102, %105 : vector<8x16x32xf32>
      %107 = arith.addf %99, %106 : vector<8x16x32xf32>
      %c1_i32_44 = arith.constant 1 : i32
      %108 = arith.addi %20, %c1_i32_44 : i32
      %109 = arith.index_cast %108 : i32 to index
      %c9_45 = arith.constant 9 : index
      %c0_46 = arith.constant 0 : index
      %110 = vector.load %arg6[%109, %c9_45, %c0_46] : memref<22x32x32xf32, #tpu.memory_space<vmem>>, vector<8x16x32xf32>
      %111 = vector.extract_strided_slice %15 {offsets = [11, 0], sizes = [1, 32], strides = [1, 1]} : vector<49x32xf32> to vector<1x32xf32>
      %112 = vector.shape_cast %111 : vector<1x32xf32> to vector<1x1x32xf32>
      %113 = vector.broadcast %112 : vector<1x1x32xf32> to vector<8x16x32xf32>
      %114 = arith.mulf %110, %113 : vector<8x16x32xf32>
      %115 = arith.addf %107, %114 : vector<8x16x32xf32>
      %c1_i32_47 = arith.constant 1 : i32
      %116 = arith.addi %20, %c1_i32_47 : i32
      %117 = arith.index_cast %116 : i32 to index
      %c10_48 = arith.constant 10 : index
      %c0_49 = arith.constant 0 : index
      %118 = vector.load %arg6[%117, %c10_48, %c0_49] : memref<22x32x32xf32, #tpu.memory_space<vmem>>, vector<8x16x32xf32>
      %119 = vector.extract_strided_slice %15 {offsets = [12, 0], sizes = [1, 32], strides = [1, 1]} : vector<49x32xf32> to vector<1x32xf32>
      %120 = vector.shape_cast %119 : vector<1x32xf32> to vector<1x1x32xf32>
      %121 = vector.broadcast %120 : vector<1x1x32xf32> to vector<8x16x32xf32>
      %122 = arith.mulf %118, %121 : vector<8x16x32xf32>
      %123 = arith.addf %115, %122 : vector<8x16x32xf32>
      %c1_i32_50 = arith.constant 1 : i32
      %124 = arith.addi %20, %c1_i32_50 : i32
      %125 = arith.index_cast %124 : i32 to index
      %c11_51 = arith.constant 11 : index
      %c0_52 = arith.constant 0 : index
      %126 = vector.load %arg6[%125, %c11_51, %c0_52] : memref<22x32x32xf32, #tpu.memory_space<vmem>>, vector<8x16x32xf32>
      %127 = vector.extract_strided_slice %15 {offsets = [13, 0], sizes = [1, 32], strides = [1, 1]} : vector<49x32xf32> to vector<1x32xf32>
      %128 = vector.shape_cast %127 : vector<1x32xf32> to vector<1x1x32xf32>
      %129 = vector.broadcast %128 : vector<1x1x32xf32> to vector<8x16x32xf32>
      %130 = arith.mulf %126, %129 : vector<8x16x32xf32>
      %131 = arith.addf %123, %130 : vector<8x16x32xf32>
      %c2_i32_53 = arith.constant 2 : i32
      %132 = arith.addi %20, %c2_i32_53 : i32
      %133 = arith.index_cast %132 : i32 to index
      %c5_54 = arith.constant 5 : index
      %c0_55 = arith.constant 0 : index
      %134 = vector.load %arg6[%133, %c5_54, %c0_55] : memref<22x32x32xf32, #tpu.memory_space<vmem>>, vector<8x16x32xf32>
      %135 = vector.extract_strided_slice %15 {offsets = [14, 0], sizes = [1, 32], strides = [1, 1]} : vector<49x32xf32> to vector<1x32xf32>
      %136 = vector.shape_cast %135 : vector<1x32xf32> to vector<1x1x32xf32>
      %137 = vector.broadcast %136 : vector<1x1x32xf32> to vector<8x16x32xf32>
      %138 = arith.mulf %134, %137 : vector<8x16x32xf32>
      %139 = arith.addf %131, %138 : vector<8x16x32xf32>
      %c2_i32_56 = arith.constant 2 : i32
      %140 = arith.addi %20, %c2_i32_56 : i32
      %141 = arith.index_cast %140 : i32 to index
      %c6_57 = arith.constant 6 : index
      %c0_58 = arith.constant 0 : index
      %142 = vector.load %arg6[%141, %c6_57, %c0_58] : memref<22x32x32xf32, #tpu.memory_space<vmem>>, vector<8x16x32xf32>
      %143 = vector.extract_strided_slice %15 {offsets = [15, 0], sizes = [1, 32], strides = [1, 1]} : vector<49x32xf32> to vector<1x32xf32>
      %144 = vector.shape_cast %143 : vector<1x32xf32> to vector<1x1x32xf32>
      %145 = vector.broadcast %144 : vector<1x1x32xf32> to vector<8x16x32xf32>
      %146 = arith.mulf %142, %145 : vector<8x16x32xf32>
      %147 = arith.addf %139, %146 : vector<8x16x32xf32>
      %c2_i32_59 = arith.constant 2 : i32
      %148 = arith.addi %20, %c2_i32_59 : i32
      %149 = arith.index_cast %148 : i32 to index
      %c7_60 = arith.constant 7 : index
      %c0_61 = arith.constant 0 : index
      %150 = vector.load %arg6[%149, %c7_60, %c0_61] : memref<22x32x32xf32, #tpu.memory_space<vmem>>, vector<8x16x32xf32>
      %151 = vector.extract_strided_slice %15 {offsets = [16, 0], sizes = [1, 32], strides = [1, 1]} : vector<49x32xf32> to vector<1x32xf32>
      %152 = vector.shape_cast %151 : vector<1x32xf32> to vector<1x1x32xf32>
      %153 = vector.broadcast %152 : vector<1x1x32xf32> to vector<8x16x32xf32>
      %154 = arith.mulf %150, %153 : vector<8x16x32xf32>
      %155 = arith.addf %147, %154 : vector<8x16x32xf32>
      %c2_i32_62 = arith.constant 2 : i32
      %156 = arith.addi %20, %c2_i32_62 : i32
      %157 = arith.index_cast %156 : i32 to index
      %c8_63 = arith.constant 8 : index
      %c0_64 = arith.constant 0 : index
      %158 = vector.load %arg6[%157, %c8_63, %c0_64] : memref<22x32x32xf32, #tpu.memory_space<vmem>>, vector<8x16x32xf32>
      %159 = vector.extract_strided_slice %15 {offsets = [17, 0], sizes = [1, 32], strides = [1, 1]} : vector<49x32xf32> to vector<1x32xf32>
      %160 = vector.shape_cast %159 : vector<1x32xf32> to vector<1x1x32xf32>
      %161 = vector.broadcast %160 : vector<1x1x32xf32> to vector<8x16x32xf32>
      %162 = arith.mulf %158, %161 : vector<8x16x32xf32>
      %163 = arith.addf %155, %162 : vector<8x16x32xf32>
      %c2_i32_65 = arith.constant 2 : i32
      %164 = arith.addi %20, %c2_i32_65 : i32
      %165 = arith.index_cast %164 : i32 to index
      %c9_66 = arith.constant 9 : index
      %c0_67 = arith.constant 0 : index
      %166 = vector.load %arg6[%165, %c9_66, %c0_67] : memref<22x32x32xf32, #tpu.memory_space<vmem>>, vector<8x16x32xf32>
      %167 = vector.extract_strided_slice %15 {offsets = [18, 0], sizes = [1, 32], strides = [1, 1]} : vector<49x32xf32> to vector<1x32xf32>
      %168 = vector.shape_cast %167 : vector<1x32xf32> to vector<1x1x32xf32>
      %169 = vector.broadcast %168 : vector<1x1x32xf32> to vector<8x16x32xf32>
      %170 = arith.mulf %166, %169 : vector<8x16x32xf32>
      %171 = arith.addf %163, %170 : vector<8x16x32xf32>
      %c2_i32_68 = arith.constant 2 : i32
      %172 = arith.addi %20, %c2_i32_68 : i32
      %173 = arith.index_cast %172 : i32 to index
      %c10_69 = arith.constant 10 : index
      %c0_70 = arith.constant 0 : index
      %174 = vector.load %arg6[%173, %c10_69, %c0_70] : memref<22x32x32xf32, #tpu.memory_space<vmem>>, vector<8x16x32xf32>
      %175 = vector.extract_strided_slice %15 {offsets = [19, 0], sizes = [1, 32], strides = [1, 1]} : vector<49x32xf32> to vector<1x32xf32>
      %176 = vector.shape_cast %175 : vector<1x32xf32> to vector<1x1x32xf32>
      %177 = vector.broadcast %176 : vector<1x1x32xf32> to vector<8x16x32xf32>
      %178 = arith.mulf %174, %177 : vector<8x16x32xf32>
      %179 = arith.addf %171, %178 : vector<8x16x32xf32>
      %c2_i32_71 = arith.constant 2 : i32
      %180 = arith.addi %20, %c2_i32_71 : i32
      %181 = arith.index_cast %180 : i32 to index
      %c11_72 = arith.constant 11 : index
      %c0_73 = arith.constant 0 : index
      %182 = vector.load %arg6[%181, %c11_72, %c0_73] : memref<22x32x32xf32, #tpu.memory_space<vmem>>, vector<8x16x32xf32>
      %183 = vector.extract_strided_slice %15 {offsets = [20, 0], sizes = [1, 32], strides = [1, 1]} : vector<49x32xf32> to vector<1x32xf32>
      %184 = vector.shape_cast %183 : vector<1x32xf32> to vector<1x1x32xf32>
      %185 = vector.broadcast %184 : vector<1x1x32xf32> to vector<8x16x32xf32>
      %186 = arith.mulf %182, %185 : vector<8x16x32xf32>
      %187 = arith.addf %179, %186 : vector<8x16x32xf32>
      %c3_i32 = arith.constant 3 : i32
      %188 = arith.addi %20, %c3_i32 : i32
      %189 = arith.index_cast %188 : i32 to index
      %c5_74 = arith.constant 5 : index
      %c0_75 = arith.constant 0 : index
      %190 = vector.load %arg6[%189, %c5_74, %c0_75] : memref<22x32x32xf32, #tpu.memory_space<vmem>>, vector<8x16x32xf32>
      %191 = vector.extract_strided_slice %15 {offsets = [21, 0], sizes = [1, 32], strides = [1, 1]} : vector<49x32xf32> to vector<1x32xf32>
      %192 = vector.shape_cast %191 : vector<1x32xf32> to vector<1x1x32xf32>
      %193 = vector.broadcast %192 : vector<1x1x32xf32> to vector<8x16x32xf32>
      %194 = arith.mulf %190, %193 : vector<8x16x32xf32>
      %195 = arith.addf %187, %194 : vector<8x16x32xf32>
      %c3_i32_76 = arith.constant 3 : i32
      %196 = arith.addi %20, %c3_i32_76 : i32
      %197 = arith.index_cast %196 : i32 to index
      %c6_77 = arith.constant 6 : index
      %c0_78 = arith.constant 0 : index
      %198 = vector.load %arg6[%197, %c6_77, %c0_78] : memref<22x32x32xf32, #tpu.memory_space<vmem>>, vector<8x16x32xf32>
      %199 = vector.extract_strided_slice %15 {offsets = [22, 0], sizes = [1, 32], strides = [1, 1]} : vector<49x32xf32> to vector<1x32xf32>
      %200 = vector.shape_cast %199 : vector<1x32xf32> to vector<1x1x32xf32>
      %201 = vector.broadcast %200 : vector<1x1x32xf32> to vector<8x16x32xf32>
      %202 = arith.mulf %198, %201 : vector<8x16x32xf32>
      %203 = arith.addf %195, %202 : vector<8x16x32xf32>
      %c3_i32_79 = arith.constant 3 : i32
      %204 = arith.addi %20, %c3_i32_79 : i32
      %205 = arith.index_cast %204 : i32 to index
      %c7_80 = arith.constant 7 : index
      %c0_81 = arith.constant 0 : index
      %206 = vector.load %arg6[%205, %c7_80, %c0_81] : memref<22x32x32xf32, #tpu.memory_space<vmem>>, vector<8x16x32xf32>
      %207 = vector.extract_strided_slice %15 {offsets = [23, 0], sizes = [1, 32], strides = [1, 1]} : vector<49x32xf32> to vector<1x32xf32>
      %208 = vector.shape_cast %207 : vector<1x32xf32> to vector<1x1x32xf32>
      %209 = vector.broadcast %208 : vector<1x1x32xf32> to vector<8x16x32xf32>
      %210 = arith.mulf %206, %209 : vector<8x16x32xf32>
      %211 = arith.addf %203, %210 : vector<8x16x32xf32>
      %c3_i32_82 = arith.constant 3 : i32
      %212 = arith.addi %20, %c3_i32_82 : i32
      %213 = arith.index_cast %212 : i32 to index
      %c8_83 = arith.constant 8 : index
      %c0_84 = arith.constant 0 : index
      %214 = vector.load %arg6[%213, %c8_83, %c0_84] : memref<22x32x32xf32, #tpu.memory_space<vmem>>, vector<8x16x32xf32>
      %215 = vector.extract_strided_slice %15 {offsets = [24, 0], sizes = [1, 32], strides = [1, 1]} : vector<49x32xf32> to vector<1x32xf32>
      %216 = vector.shape_cast %215 : vector<1x32xf32> to vector<1x1x32xf32>
      %217 = vector.broadcast %216 : vector<1x1x32xf32> to vector<8x16x32xf32>
      %218 = arith.mulf %214, %217 : vector<8x16x32xf32>
      %219 = arith.addf %211, %218 : vector<8x16x32xf32>
      %c3_i32_85 = arith.constant 3 : i32
      %220 = arith.addi %20, %c3_i32_85 : i32
      %221 = arith.index_cast %220 : i32 to index
      %c9_86 = arith.constant 9 : index
      %c0_87 = arith.constant 0 : index
      %222 = vector.load %arg6[%221, %c9_86, %c0_87] : memref<22x32x32xf32, #tpu.memory_space<vmem>>, vector<8x16x32xf32>
      %223 = vector.extract_strided_slice %15 {offsets = [25, 0], sizes = [1, 32], strides = [1, 1]} : vector<49x32xf32> to vector<1x32xf32>
      %224 = vector.shape_cast %223 : vector<1x32xf32> to vector<1x1x32xf32>
      %225 = vector.broadcast %224 : vector<1x1x32xf32> to vector<8x16x32xf32>
      %226 = arith.mulf %222, %225 : vector<8x16x32xf32>
      %227 = arith.addf %219, %226 : vector<8x16x32xf32>
      %c3_i32_88 = arith.constant 3 : i32
      %228 = arith.addi %20, %c3_i32_88 : i32
      %229 = arith.index_cast %228 : i32 to index
      %c10_89 = arith.constant 10 : index
      %c0_90 = arith.constant 0 : index
      %230 = vector.load %arg6[%229, %c10_89, %c0_90] : memref<22x32x32xf32, #tpu.memory_space<vmem>>, vector<8x16x32xf32>
      %231 = vector.extract_strided_slice %15 {offsets = [26, 0], sizes = [1, 32], strides = [1, 1]} : vector<49x32xf32> to vector<1x32xf32>
      %232 = vector.shape_cast %231 : vector<1x32xf32> to vector<1x1x32xf32>
      %233 = vector.broadcast %232 : vector<1x1x32xf32> to vector<8x16x32xf32>
      %234 = arith.mulf %230, %233 : vector<8x16x32xf32>
      %235 = arith.addf %227, %234 : vector<8x16x32xf32>
      %c3_i32_91 = arith.constant 3 : i32
      %236 = arith.addi %20, %c3_i32_91 : i32
      %237 = arith.index_cast %236 : i32 to index
      %c11_92 = arith.constant 11 : index
      %c0_93 = arith.constant 0 : index
      %238 = vector.load %arg6[%237, %c11_92, %c0_93] : memref<22x32x32xf32, #tpu.memory_space<vmem>>, vector<8x16x32xf32>
      %239 = vector.extract_strided_slice %15 {offsets = [27, 0], sizes = [1, 32], strides = [1, 1]} : vector<49x32xf32> to vector<1x32xf32>
      %240 = vector.shape_cast %239 : vector<1x32xf32> to vector<1x1x32xf32>
      %241 = vector.broadcast %240 : vector<1x1x32xf32> to vector<8x16x32xf32>
      %242 = arith.mulf %238, %241 : vector<8x16x32xf32>
      %243 = arith.addf %235, %242 : vector<8x16x32xf32>
      %c4_i32 = arith.constant 4 : i32
      %244 = arith.addi %20, %c4_i32 : i32
      %245 = arith.index_cast %244 : i32 to index
      %c5_94 = arith.constant 5 : index
      %c0_95 = arith.constant 0 : index
      %246 = vector.load %arg6[%245, %c5_94, %c0_95] : memref<22x32x32xf32, #tpu.memory_space<vmem>>, vector<8x16x32xf32>
      %247 = vector.extract_strided_slice %15 {offsets = [28, 0], sizes = [1, 32], strides = [1, 1]} : vector<49x32xf32> to vector<1x32xf32>
      %248 = vector.shape_cast %247 : vector<1x32xf32> to vector<1x1x32xf32>
      %249 = vector.broadcast %248 : vector<1x1x32xf32> to vector<8x16x32xf32>
      %250 = arith.mulf %246, %249 : vector<8x16x32xf32>
      %251 = arith.addf %243, %250 : vector<8x16x32xf32>
      %c4_i32_96 = arith.constant 4 : i32
      %252 = arith.addi %20, %c4_i32_96 : i32
      %253 = arith.index_cast %252 : i32 to index
      %c6_97 = arith.constant 6 : index
      %c0_98 = arith.constant 0 : index
      %254 = vector.load %arg6[%253, %c6_97, %c0_98] : memref<22x32x32xf32, #tpu.memory_space<vmem>>, vector<8x16x32xf32>
      %255 = vector.extract_strided_slice %15 {offsets = [29, 0], sizes = [1, 32], strides = [1, 1]} : vector<49x32xf32> to vector<1x32xf32>
      %256 = vector.shape_cast %255 : vector<1x32xf32> to vector<1x1x32xf32>
      %257 = vector.broadcast %256 : vector<1x1x32xf32> to vector<8x16x32xf32>
      %258 = arith.mulf %254, %257 : vector<8x16x32xf32>
      %259 = arith.addf %251, %258 : vector<8x16x32xf32>
      %c4_i32_99 = arith.constant 4 : i32
      %260 = arith.addi %20, %c4_i32_99 : i32
      %261 = arith.index_cast %260 : i32 to index
      %c7_100 = arith.constant 7 : index
      %c0_101 = arith.constant 0 : index
      %262 = vector.load %arg6[%261, %c7_100, %c0_101] : memref<22x32x32xf32, #tpu.memory_space<vmem>>, vector<8x16x32xf32>
      %263 = vector.extract_strided_slice %15 {offsets = [30, 0], sizes = [1, 32], strides = [1, 1]} : vector<49x32xf32> to vector<1x32xf32>
      %264 = vector.shape_cast %263 : vector<1x32xf32> to vector<1x1x32xf32>
      %265 = vector.broadcast %264 : vector<1x1x32xf32> to vector<8x16x32xf32>
      %266 = arith.mulf %262, %265 : vector<8x16x32xf32>
      %267 = arith.addf %259, %266 : vector<8x16x32xf32>
      %c4_i32_102 = arith.constant 4 : i32
      %268 = arith.addi %20, %c4_i32_102 : i32
      %269 = arith.index_cast %268 : i32 to index
      %c8_103 = arith.constant 8 : index
      %c0_104 = arith.constant 0 : index
      %270 = vector.load %arg6[%269, %c8_103, %c0_104] : memref<22x32x32xf32, #tpu.memory_space<vmem>>, vector<8x16x32xf32>
      %271 = vector.extract_strided_slice %15 {offsets = [31, 0], sizes = [1, 32], strides = [1, 1]} : vector<49x32xf32> to vector<1x32xf32>
      %272 = vector.shape_cast %271 : vector<1x32xf32> to vector<1x1x32xf32>
      %273 = vector.broadcast %272 : vector<1x1x32xf32> to vector<8x16x32xf32>
      %274 = arith.mulf %270, %273 : vector<8x16x32xf32>
      %275 = arith.addf %267, %274 : vector<8x16x32xf32>
      %c4_i32_105 = arith.constant 4 : i32
      %276 = arith.addi %20, %c4_i32_105 : i32
      %277 = arith.index_cast %276 : i32 to index
      %c9_106 = arith.constant 9 : index
      %c0_107 = arith.constant 0 : index
      %278 = vector.load %arg6[%277, %c9_106, %c0_107] : memref<22x32x32xf32, #tpu.memory_space<vmem>>, vector<8x16x32xf32>
      %279 = vector.extract_strided_slice %15 {offsets = [32, 0], sizes = [1, 32], strides = [1, 1]} : vector<49x32xf32> to vector<1x32xf32>
      %280 = vector.shape_cast %279 : vector<1x32xf32> to vector<1x1x32xf32>
      %281 = vector.broadcast %280 : vector<1x1x32xf32> to vector<8x16x32xf32>
      %282 = arith.mulf %278, %281 : vector<8x16x32xf32>
      %283 = arith.addf %275, %282 : vector<8x16x32xf32>
      %c4_i32_108 = arith.constant 4 : i32
      %284 = arith.addi %20, %c4_i32_108 : i32
      %285 = arith.index_cast %284 : i32 to index
      %c10_109 = arith.constant 10 : index
      %c0_110 = arith.constant 0 : index
      %286 = vector.load %arg6[%285, %c10_109, %c0_110] : memref<22x32x32xf32, #tpu.memory_space<vmem>>, vector<8x16x32xf32>
      %287 = vector.extract_strided_slice %15 {offsets = [33, 0], sizes = [1, 32], strides = [1, 1]} : vector<49x32xf32> to vector<1x32xf32>
      %288 = vector.shape_cast %287 : vector<1x32xf32> to vector<1x1x32xf32>
      %289 = vector.broadcast %288 : vector<1x1x32xf32> to vector<8x16x32xf32>
      %290 = arith.mulf %286, %289 : vector<8x16x32xf32>
      %291 = arith.addf %283, %290 : vector<8x16x32xf32>
      %c4_i32_111 = arith.constant 4 : i32
      %292 = arith.addi %20, %c4_i32_111 : i32
      %293 = arith.index_cast %292 : i32 to index
      %c11_112 = arith.constant 11 : index
      %c0_113 = arith.constant 0 : index
      %294 = vector.load %arg6[%293, %c11_112, %c0_113] : memref<22x32x32xf32, #tpu.memory_space<vmem>>, vector<8x16x32xf32>
      %295 = vector.extract_strided_slice %15 {offsets = [34, 0], sizes = [1, 32], strides = [1, 1]} : vector<49x32xf32> to vector<1x32xf32>
      %296 = vector.shape_cast %295 : vector<1x32xf32> to vector<1x1x32xf32>
      %297 = vector.broadcast %296 : vector<1x1x32xf32> to vector<8x16x32xf32>
      %298 = arith.mulf %294, %297 : vector<8x16x32xf32>
      %299 = arith.addf %291, %298 : vector<8x16x32xf32>
      %c5_i32 = arith.constant 5 : i32
      %300 = arith.addi %20, %c5_i32 : i32
      %301 = arith.index_cast %300 : i32 to index
      %c5_114 = arith.constant 5 : index
      %c0_115 = arith.constant 0 : index
      %302 = vector.load %arg6[%301, %c5_114, %c0_115] : memref<22x32x32xf32, #tpu.memory_space<vmem>>, vector<8x16x32xf32>
      %303 = vector.extract_strided_slice %15 {offsets = [35, 0], sizes = [1, 32], strides = [1, 1]} : vector<49x32xf32> to vector<1x32xf32>
      %304 = vector.shape_cast %303 : vector<1x32xf32> to vector<1x1x32xf32>
      %305 = vector.broadcast %304 : vector<1x1x32xf32> to vector<8x16x32xf32>
      %306 = arith.mulf %302, %305 : vector<8x16x32xf32>
      %307 = arith.addf %299, %306 : vector<8x16x32xf32>
      %c5_i32_116 = arith.constant 5 : i32
      %308 = arith.addi %20, %c5_i32_116 : i32
      %309 = arith.index_cast %308 : i32 to index
      %c6_117 = arith.constant 6 : index
      %c0_118 = arith.constant 0 : index
      %310 = vector.load %arg6[%309, %c6_117, %c0_118] : memref<22x32x32xf32, #tpu.memory_space<vmem>>, vector<8x16x32xf32>
      %311 = vector.extract_strided_slice %15 {offsets = [36, 0], sizes = [1, 32], strides = [1, 1]} : vector<49x32xf32> to vector<1x32xf32>
      %312 = vector.shape_cast %311 : vector<1x32xf32> to vector<1x1x32xf32>
      %313 = vector.broadcast %312 : vector<1x1x32xf32> to vector<8x16x32xf32>
      %314 = arith.mulf %310, %313 : vector<8x16x32xf32>
      %315 = arith.addf %307, %314 : vector<8x16x32xf32>
      %c5_i32_119 = arith.constant 5 : i32
      %316 = arith.addi %20, %c5_i32_119 : i32
      %317 = arith.index_cast %316 : i32 to index
      %c7_120 = arith.constant 7 : index
      %c0_121 = arith.constant 0 : index
      %318 = vector.load %arg6[%317, %c7_120, %c0_121] : memref<22x32x32xf32, #tpu.memory_space<vmem>>, vector<8x16x32xf32>
      %319 = vector.extract_strided_slice %15 {offsets = [37, 0], sizes = [1, 32], strides = [1, 1]} : vector<49x32xf32> to vector<1x32xf32>
      %320 = vector.shape_cast %319 : vector<1x32xf32> to vector<1x1x32xf32>
      %321 = vector.broadcast %320 : vector<1x1x32xf32> to vector<8x16x32xf32>
      %322 = arith.mulf %318, %321 : vector<8x16x32xf32>
      %323 = arith.addf %315, %322 : vector<8x16x32xf32>
      %c5_i32_122 = arith.constant 5 : i32
      %324 = arith.addi %20, %c5_i32_122 : i32
      %325 = arith.index_cast %324 : i32 to index
      %c8_123 = arith.constant 8 : index
      %c0_124 = arith.constant 0 : index
      %326 = vector.load %arg6[%325, %c8_123, %c0_124] : memref<22x32x32xf32, #tpu.memory_space<vmem>>, vector<8x16x32xf32>
      %327 = vector.extract_strided_slice %15 {offsets = [38, 0], sizes = [1, 32], strides = [1, 1]} : vector<49x32xf32> to vector<1x32xf32>
      %328 = vector.shape_cast %327 : vector<1x32xf32> to vector<1x1x32xf32>
      %329 = vector.broadcast %328 : vector<1x1x32xf32> to vector<8x16x32xf32>
      %330 = arith.mulf %326, %329 : vector<8x16x32xf32>
      %331 = arith.addf %323, %330 : vector<8x16x32xf32>
      %c5_i32_125 = arith.constant 5 : i32
      %332 = arith.addi %20, %c5_i32_125 : i32
      %333 = arith.index_cast %332 : i32 to index
      %c9_126 = arith.constant 9 : index
      %c0_127 = arith.constant 0 : index
      %334 = vector.load %arg6[%333, %c9_126, %c0_127] : memref<22x32x32xf32, #tpu.memory_space<vmem>>, vector<8x16x32xf32>
      %335 = vector.extract_strided_slice %15 {offsets = [39, 0], sizes = [1, 32], strides = [1, 1]} : vector<49x32xf32> to vector<1x32xf32>
      %336 = vector.shape_cast %335 : vector<1x32xf32> to vector<1x1x32xf32>
      %337 = vector.broadcast %336 : vector<1x1x32xf32> to vector<8x16x32xf32>
      %338 = arith.mulf %334, %337 : vector<8x16x32xf32>
      %339 = arith.addf %331, %338 : vector<8x16x32xf32>
      %c5_i32_128 = arith.constant 5 : i32
      %340 = arith.addi %20, %c5_i32_128 : i32
      %341 = arith.index_cast %340 : i32 to index
      %c10_129 = arith.constant 10 : index
      %c0_130 = arith.constant 0 : index
      %342 = vector.load %arg6[%341, %c10_129, %c0_130] : memref<22x32x32xf32, #tpu.memory_space<vmem>>, vector<8x16x32xf32>
      %343 = vector.extract_strided_slice %15 {offsets = [40, 0], sizes = [1, 32], strides = [1, 1]} : vector<49x32xf32> to vector<1x32xf32>
      %344 = vector.shape_cast %343 : vector<1x32xf32> to vector<1x1x32xf32>
      %345 = vector.broadcast %344 : vector<1x1x32xf32> to vector<8x16x32xf32>
      %346 = arith.mulf %342, %345 : vector<8x16x32xf32>
      %347 = arith.addf %339, %346 : vector<8x16x32xf32>
      %c5_i32_131 = arith.constant 5 : i32
      %348 = arith.addi %20, %c5_i32_131 : i32
      %349 = arith.index_cast %348 : i32 to index
      %c11_132 = arith.constant 11 : index
      %c0_133 = arith.constant 0 : index
      %350 = vector.load %arg6[%349, %c11_132, %c0_133] : memref<22x32x32xf32, #tpu.memory_space<vmem>>, vector<8x16x32xf32>
      %351 = vector.extract_strided_slice %15 {offsets = [41, 0], sizes = [1, 32], strides = [1, 1]} : vector<49x32xf32> to vector<1x32xf32>
      %352 = vector.shape_cast %351 : vector<1x32xf32> to vector<1x1x32xf32>
      %353 = vector.broadcast %352 : vector<1x1x32xf32> to vector<8x16x32xf32>
      %354 = arith.mulf %350, %353 : vector<8x16x32xf32>
      %355 = arith.addf %347, %354 : vector<8x16x32xf32>
      %c6_i32 = arith.constant 6 : i32
      %356 = arith.addi %20, %c6_i32 : i32
      %357 = arith.index_cast %356 : i32 to index
      %c5_134 = arith.constant 5 : index
      %c0_135 = arith.constant 0 : index
      %358 = vector.load %arg6[%357, %c5_134, %c0_135] : memref<22x32x32xf32, #tpu.memory_space<vmem>>, vector<8x16x32xf32>
      %359 = vector.extract_strided_slice %15 {offsets = [42, 0], sizes = [1, 32], strides = [1, 1]} : vector<49x32xf32> to vector<1x32xf32>
      %360 = vector.shape_cast %359 : vector<1x32xf32> to vector<1x1x32xf32>
      %361 = vector.broadcast %360 : vector<1x1x32xf32> to vector<8x16x32xf32>
      %362 = arith.mulf %358, %361 : vector<8x16x32xf32>
      %363 = arith.addf %355, %362 : vector<8x16x32xf32>
      %c6_i32_136 = arith.constant 6 : i32
      %364 = arith.addi %20, %c6_i32_136 : i32
      %365 = arith.index_cast %364 : i32 to index
      %c6_137 = arith.constant 6 : index
      %c0_138 = arith.constant 0 : index
      %366 = vector.load %arg6[%365, %c6_137, %c0_138] : memref<22x32x32xf32, #tpu.memory_space<vmem>>, vector<8x16x32xf32>
      %367 = vector.extract_strided_slice %15 {offsets = [43, 0], sizes = [1, 32], strides = [1, 1]} : vector<49x32xf32> to vector<1x32xf32>
      %368 = vector.shape_cast %367 : vector<1x32xf32> to vector<1x1x32xf32>
      %369 = vector.broadcast %368 : vector<1x1x32xf32> to vector<8x16x32xf32>
      %370 = arith.mulf %366, %369 : vector<8x16x32xf32>
      %371 = arith.addf %363, %370 : vector<8x16x32xf32>
      %c6_i32_139 = arith.constant 6 : i32
      %372 = arith.addi %20, %c6_i32_139 : i32
      %373 = arith.index_cast %372 : i32 to index
      %c7_140 = arith.constant 7 : index
      %c0_141 = arith.constant 0 : index
      %374 = vector.load %arg6[%373, %c7_140, %c0_141] : memref<22x32x32xf32, #tpu.memory_space<vmem>>, vector<8x16x32xf32>
      %375 = vector.extract_strided_slice %15 {offsets = [44, 0], sizes = [1, 32], strides = [1, 1]} : vector<49x32xf32> to vector<1x32xf32>
      %376 = vector.shape_cast %375 : vector<1x32xf32> to vector<1x1x32xf32>
      %377 = vector.broadcast %376 : vector<1x1x32xf32> to vector<8x16x32xf32>
      %378 = arith.mulf %374, %377 : vector<8x16x32xf32>
      %379 = arith.addf %371, %378 : vector<8x16x32xf32>
      %c6_i32_142 = arith.constant 6 : i32
      %380 = arith.addi %20, %c6_i32_142 : i32
      %381 = arith.index_cast %380 : i32 to index
      %c8_143 = arith.constant 8 : index
      %c0_144 = arith.constant 0 : index
      %382 = vector.load %arg6[%381, %c8_143, %c0_144] : memref<22x32x32xf32, #tpu.memory_space<vmem>>, vector<8x16x32xf32>
      %383 = vector.extract_strided_slice %15 {offsets = [45, 0], sizes = [1, 32], strides = [1, 1]} : vector<49x32xf32> to vector<1x32xf32>
      %384 = vector.shape_cast %383 : vector<1x32xf32> to vector<1x1x32xf32>
      %385 = vector.broadcast %384 : vector<1x1x32xf32> to vector<8x16x32xf32>
      %386 = arith.mulf %382, %385 : vector<8x16x32xf32>
      %387 = arith.addf %379, %386 : vector<8x16x32xf32>
      %c6_i32_145 = arith.constant 6 : i32
      %388 = arith.addi %20, %c6_i32_145 : i32
      %389 = arith.index_cast %388 : i32 to index
      %c9_146 = arith.constant 9 : index
      %c0_147 = arith.constant 0 : index
      %390 = vector.load %arg6[%389, %c9_146, %c0_147] : memref<22x32x32xf32, #tpu.memory_space<vmem>>, vector<8x16x32xf32>
      %391 = vector.extract_strided_slice %15 {offsets = [46, 0], sizes = [1, 32], strides = [1, 1]} : vector<49x32xf32> to vector<1x32xf32>
      %392 = vector.shape_cast %391 : vector<1x32xf32> to vector<1x1x32xf32>
      %393 = vector.broadcast %392 : vector<1x1x32xf32> to vector<8x16x32xf32>
      %394 = arith.mulf %390, %393 : vector<8x16x32xf32>
      %395 = arith.addf %387, %394 : vector<8x16x32xf32>
      %c6_i32_148 = arith.constant 6 : i32
      %396 = arith.addi %20, %c6_i32_148 : i32
      %397 = arith.index_cast %396 : i32 to index
      %c10_149 = arith.constant 10 : index
      %c0_150 = arith.constant 0 : index
      %398 = vector.load %arg6[%397, %c10_149, %c0_150] : memref<22x32x32xf32, #tpu.memory_space<vmem>>, vector<8x16x32xf32>
      %399 = vector.extract_strided_slice %15 {offsets = [47, 0], sizes = [1, 32], strides = [1, 1]} : vector<49x32xf32> to vector<1x32xf32>
      %400 = vector.shape_cast %399 : vector<1x32xf32> to vector<1x1x32xf32>
      %401 = vector.broadcast %400 : vector<1x1x32xf32> to vector<8x16x32xf32>
      %402 = arith.mulf %398, %401 : vector<8x16x32xf32>
      %403 = arith.addf %395, %402 : vector<8x16x32xf32>
      %c6_i32_151 = arith.constant 6 : i32
      %404 = arith.addi %20, %c6_i32_151 : i32
      %405 = arith.index_cast %404 : i32 to index
      %c11_152 = arith.constant 11 : index
      %c0_153 = arith.constant 0 : index
      %406 = vector.load %arg6[%405, %c11_152, %c0_153] : memref<22x32x32xf32, #tpu.memory_space<vmem>>, vector<8x16x32xf32>
      %407 = vector.extract_strided_slice %15 {offsets = [48, 0], sizes = [1, 32], strides = [1, 1]} : vector<49x32xf32> to vector<1x32xf32>
      %408 = vector.shape_cast %407 : vector<1x32xf32> to vector<1x1x32xf32>
      %409 = vector.broadcast %408 : vector<1x1x32xf32> to vector<8x16x32xf32>
      %410 = arith.mulf %406, %409 : vector<8x16x32xf32>
      %411 = arith.addf %403, %410 : vector<8x16x32xf32>
      %cst_154 = arith.constant dense<0.000000e+00> : vector<8x16xf32>
      %412 = vector.multi_reduction <add>, %411, %cst_154 [2] : vector<8x16x32xf32> to vector<8x16xf32>
      %413 = vector.shape_cast %412 : vector<8x16xf32> to vector<8x16x1xf32>
      %cst_155 = arith.constant 3.200000e+01 : f32
      %414 = vector.broadcast %cst_155 : f32 to vector<8x16x1xf32>
      %415 = arith.divf %413, %414 : vector<8x16x1xf32>
      %416 = vector.broadcast %415 : vector<8x16x1xf32> to vector<8x16x32xf32>
      %417 = arith.subf %411, %416 : vector<8x16x32xf32>
      %418 = arith.mulf %417, %417 : vector<8x16x32xf32>
      %cst_156 = arith.constant dense<0.000000e+00> : vector<8x16xf32>
      %419 = vector.multi_reduction <add>, %418, %cst_156 [2] : vector<8x16x32xf32> to vector<8x16xf32>
      %420 = vector.shape_cast %419 : vector<8x16xf32> to vector<8x16x1xf32>
      %cst_157 = arith.constant 3.200000e+01 : f32
      %421 = vector.broadcast %cst_157 : f32 to vector<8x16x1xf32>
      %422 = arith.divf %420, %421 : vector<8x16x1xf32>
      %cst_158 = arith.constant 9.99999974E-6 : f32
      %423 = vector.broadcast %cst_158 : f32 to vector<8x16x1xf32>
      %424 = arith.addf %422, %423 : vector<8x16x1xf32>
      %425 = math.rsqrt %424 : vector<8x16x1xf32>
      %426 = vector.broadcast %425 : vector<8x16x1xf32> to vector<8x16x32xf32>
      %427 = arith.mulf %417, %426 : vector<8x16x32xf32>
      %428 = vector.shape_cast %16 : vector<1x32xf32> to vector<1x1x32xf32>
      %429 = vector.broadcast %428 : vector<1x1x32xf32> to vector<8x16x32xf32>
      %430 = arith.mulf %427, %429 : vector<8x16x32xf32>
      %431 = vector.shape_cast %17 : vector<1x32xf32> to vector<1x1x32xf32>
      %432 = vector.broadcast %431 : vector<1x1x32xf32> to vector<8x16x32xf32>
      %433 = arith.addf %430, %432 : vector<8x16x32xf32>
      %c3_i32_159 = arith.constant 3 : i32
      %434 = arith.addi %20, %c3_i32_159 : i32
      %435 = arith.index_cast %434 : i32 to index
      %c8_160 = arith.constant 8 : index
      %c0_161 = arith.constant 0 : index
      %436 = vector.load %arg6[%435, %c8_160, %c0_161] : memref<22x32x32xf32, #tpu.memory_space<vmem>>, vector<8x16x32xf32>
      %cst_162 = arith.constant 0.000000e+00 : f32
      %437 = vector.broadcast %cst_162 : f32 to vector<8x16x32xf32>
      %438 = arith.maximumf %433, %437 : vector<8x16x32xf32>
      %439 = arith.addf %438, %436 : vector<8x16x32xf32>
      %c0_163 = arith.constant 0 : index
      %440 = arith.index_cast %20 : i32 to index
      %c0_164 = arith.constant 0 : index
      %c0_165 = arith.constant 0 : index
      %441 = vector.load %arg5[%c0_163, %440, %c0_164, %c0_165] : memref<1x16x16x32xf32, #tpu.memory_space<vmem>>, vector<1x8x16x32xf32>
      %442 = vector.shape_cast %441 : vector<1x8x16x32xf32> to vector<8x16x32xf32>
      %443 = vector.shape_cast %439 : vector<8x16x32xf32> to vector<1x8x16x32xf32>
      tpu.vector_store %arg5[%c0_163, %440, %c0_164, %c0_165], %443 {strides = array<i32>} : memref<1x16x16x32xf32, #tpu.memory_space<vmem>>, vector<1x8x16x32xf32>,
    }
    %c2_i32_16 = arith.constant 2 : i32
    return
  }
  func.func @transform_0(%arg0: i32) -> (i32, i32, i32, i32) {
    %c0_i32 = arith.constant 0 : i32
    %c0_i32_0 = arith.constant 0 : i32
    %c0_i32_1 = arith.constant 0 : i32
    %c0_i32_2 = arith.constant 0 : i32
    return %arg0, %c0_i32, %c0_i32_0, %c0_i32_1 : i32, i32, i32, i32
  }
  func.func @transform_1(%arg0: i32) -> (i32, i32, i32) {
    %c0_i32 = arith.constant 0 : i32
    %c0_i32_0 = arith.constant 0 : i32
    %c0_i32_1 = arith.constant 0 : i32
    return %arg0, %c0_i32, %c0_i32_0 : i32, i32, i32
  }
  func.func @transform_2(%arg0: i32) -> (i32, i32) {
    %c0_i32 = arith.constant 0 : i32
    %c0_i32_0 = arith.constant 0 : i32
    %c0_i32_1 = arith.constant 0 : i32
    return %c0_i32, %c0_i32_0 : i32, i32
  }
  func.func @transform_3(%arg0: i32) -> (i32, i32) {
    %c0_i32 = arith.constant 0 : i32
    %c0_i32_0 = arith.constant 0 : i32
    %c0_i32_1 = arith.constant 0 : i32
    return %c0_i32, %c0_i32_0 : i32, i32
  }
  func.func @transform_4(%arg0: i32) -> (i32, i32, i32, i32) {
    %c0_i32 = arith.constant 0 : i32
    %c0_i32_0 = arith.constant 0 : i32
    %c0_i32_1 = arith.constant 0 : i32
    %c0_i32_2 = arith.constant 0 : i32
    return %arg0, %c0_i32, %c0_i32_0, %c0_i32_1 : i32, i32, i32, i32
  }
}

</mosaic_0001>

<llo_original>
// kernel: tpu_custom_call.1
$region0: #{tpu_custom_call.1}
  #allocation0 [shape = 'u32[]', space=smem, size = 0x4, offset = 0x4, fixed_abs, tag = 'smem constant byte address 0x4 - core index']
  #allocation1 [shape = 'u32[144,128]{1,0:T(1,128)}', space=vmem, size = 0x12000, scoped, tag = 'internal scratch']
  #allocation2 [shape = 'f32[22,32,32]{2,1,0:T(8,128)}', space=vmem, size = 0x58000, scoped, tag = 'scratch operand']
  %s0 = inlined_call_operand.hbm [shape: f32[2,16,16,32], index: 0, kind: input, shape index: {}]
  %s1 = inlined_call_operand.vmem [shape: f32[2,49,32], index: 1, kind: input, shape index: {}]
  %s2 = inlined_call_operand.vmem [shape: f32[1,32], index: 2, kind: input, shape index: {}]
  %s3 = inlined_call_operand.vmem [shape: f32[1,32], index: 3, kind: input, shape index: {}]
  %s4 = inlined_call_operand.hbm [shape: f32[2,16,16,32], index: 4, kind: output, shape index: {}]
  %s5 = sld [smem:[#allocation0]]
  $region60: #{tpu_custom_call.1} parent=0
    _
  %s7 = ssub.s32 1, %s5
  %s8 = scalar_select 0, %s7, %s5
  $region1: #{tpu_custom_call.1} parent=0
    #allocation3 [shape = 'u8[262144]{0}', space=vmem, size = 0x40000, scoped, tag = 'input window, operand 0']
    #allocation4 [shape = 's32[2]{0}', space=sflag, size = 0x8, scoped, tag = 'scoped memory for tpu_custom_call.1']
    #allocation5 [shape = 's32[2]{0}', space=sflag, size = 0x8, scoped, tag = 'scoped memory for tpu_custom_call.1']
    #allocation6 [shape = 'u8[262144]{0}', space=vmem, size = 0x40000, scoped, tag = 'output window, operand 0']
    %9 = vsyncpa [#allocation4], 0
    %s10 = scalar_lea.sflag [#allocation4], 1
    %11 = vsyncpa %s10, 0
    %12 = vsyncpa [#allocation5], 0
    %s13 = scalar_lea.sflag [#allocation5], 1
    %14 = vsyncpa %s13, 0
    loop: start=0, step=1, limit=4
    $region2: #{tpu_custom_call.1} parent=1 // loop_pre_header
      _
    $region3: #{tpu_custom_call.1} parent=1 // loop_header
      %s16 = sphi 0, %s20
      %p17 = scmp.ge.s32.totalorder %s16, 4
      %s26 = sphi 0, %s28
      %s29 = sphi 0, %s26
      %s30 = sphi 0, %s29
      %s46 = sphi 0, %s30
      %s52 = sphi 0, %s54
      %s55 = sphi 0, %s52
      %s56 = sphi 0, %s55
      %s72 = sphi 0, %s56
      %s76 = sphi 0, %s76
      %s78 = sphi 0, %s76
      %s79 = sphi 0, %s78
      %s93 = sphi 0, %s79
      %s97 = sphi 0, %s97
      %s99 = sphi 0, %s97
      %s100 = sphi 0, %s99
      %s114 = sphi 0, %s100
      %s120 = sphi 0, %s122
      %s123 = sphi 0, %s120
      %s124 = sphi 0, %s123
      %s140 = sphi 0, %s124
    $region4: #{tpu_custom_call.1} parent=1 // loop_header_branch
      %19 = sbr.rel (%p17) target = $region8
    $region5: #{tpu_custom_call.1} parent=1 // loop_body
      %s21 = ssub.s32 %s16, 1
      %s22 = ssub.s32 %s16, 2
      %s23 = sadd.s32 %s16, 1
      %s24 = ssub.s32 %s16, %s23
      %p25 = scmp.eq.s32.totalorder %s24, 0
      %s27 = sadd.s32 %s26, 1
      %s28 = scalar_select %p25, %s26, %s27
      %p31 = pneg %p25
      %p32 = scmp.eq.s32.totalorder %s16, 1
      %p33 = por %p31, %p32
      %p34 = scmp.ne.s32.totalorder %s26, %s29
      %p35 = scmp.eq.s32.totalorder %s16, 0
      %p36 = por %p34, %p35
      %p37 = scmp.ne.s32.totalorder %s26, %s29
      %p38 = scmp.eq.s32.totalorder %s21, 1
      %p39 = por %p37, %p38
      %p40 = scmp.ne.s32.totalorder %s29, %s30
      %p41 = scmp.eq.s32.totalorder %s21, 0
      %p42 = por %p40, %p41
      %p43 = scmp.ne.s32.totalorder %s29, %s30
      %p44 = scmp.eq.s32.totalorder %s22, 1
      %p45 = por %p43, %p44
      %p47 = scmp.ne.s32.totalorder %s30, %s46
      %p48 = scmp.eq.s32.totalorder %s22, 0
      %p49 = por %p47, %p48
      %s50 = ssub.s32 %s16, %s23
      %p51 = scmp.eq.s32.totalorder %s50, 0
      %s53 = sadd.s32 %s52, 1
      %s54 = scalar_select %p51, %s52, %s53
      %p57 = pneg %p51
      %p58 = scmp.eq.s32.totalorder %s16, 1
      %p59 = por %p57, %p58
      %p60 = scmp.ne.s32.totalorder %s52, %s55
      %p61 = scmp.eq.s32.totalorder %s16, 0
      %p62 = por %p60, %p61
      %p63 = scmp.ne.s32.totalorder %s52, %s55
      %p64 = scmp.eq.s32.totalorder %s21, 1
      %p65 = por %p63, %p64
      %p66 = scmp.ne.s32.totalorder %s55, %s56
      %p67 = scmp.eq.s32.totalorder %s21, 0
      %p68 = por %p66, %p67
      %p69 = scmp.ne.s32.totalorder %s55, %s56
      %p70 = scmp.eq.s32.totalorder %s22, 1
      %p71 = por %p69, %p70
      %p73 = scmp.ne.s32.totalorder %s56, %s72
      %p74 = scmp.eq.s32.totalorder %s22, 0
      %p75 = por %p73, %p74
      %s77 = sadd.s32 %s76, 1
      %p80 = scmp.eq.s32.totalorder %s16, 1
      %p81 = scmp.ne.s32.totalorder %s76, %s78
      %p82 = scmp.eq.s32.totalorder %s16, 0
      %p83 = por %p81, %p82
      %p84 = scmp.ne.s32.totalorder %s76, %s78
      %p85 = scmp.eq.s32.totalorder %s21, 1
      %p86 = por %p84, %p85
      %p87 = scmp.ne.s32.totalorder %s78, %s79
      %p88 = scmp.eq.s32.totalorder %s21, 0
      %p89 = por %p87, %p88
      %p90 = scmp.ne.s32.totalorder %s78, %s79
      %p91 = scmp.eq.s32.totalorder %s22, 1
      %p92 = por %p90, %p91
      %p94 = scmp.ne.s32.totalorder %s79, %s93
      %p95 = scmp.eq.s32.totalorder %s22, 0
      %p96 = por %p94, %p95
      %s98 = sadd.s32 %s97, 1
      %p101 = scmp.eq.s32.totalorder %s16, 1
      %p102 = scmp.ne.s32.totalorder %s97, %s99
      %p103 = scmp.eq.s32.totalorder %s16, 0
      %p104 = por %p102, %p103
      %p105 = scmp.ne.s32.totalorder %s97, %s99
      %p106 = scmp.eq.s32.totalorder %s21, 1
      %p107 = por %p105, %p106
      %p108 = scmp.ne.s32.totalorder %s99, %s100
      %p109 = scmp.eq.s32.totalorder %s21, 0
      %p110 = por %p108, %p109
      %p111 = scmp.ne.s32.totalorder %s99, %s100
      %p112 = scmp.eq.s32.totalorder %s22, 1
      %p113 = por %p111, %p112
      %p115 = scmp.ne.s32.totalorder %s100, %s114
      %p116 = scmp.eq.s32.totalorder %s22, 0
      %p117 = por %p115, %p116
      %s118 = ssub.s32 %s16, %s23
      %p119 = scmp.eq.s32.totalorder %s118, 0
      %s121 = sadd.s32 %s120, 1
      %s122 = scalar_select %p119, %s120, %s121
      %p125 = pneg %p119
      %p126 = scmp.eq.s32.totalorder %s16, 1
      %p127 = por %p125, %p126
      %p128 = scmp.ne.s32.totalorder %s120, %s123
      %p129 = scmp.eq.s32.totalorder %s16, 0
      %p130 = por %p128, %p129
      %p131 = scmp.ne.s32.totalorder %s120, %s123
      %p132 = scmp.eq.s32.totalorder %s21, 1
      %p133 = por %p131, %p132
      %p134 = scmp.ne.s32.totalorder %s123, %s124
      %p135 = scmp.eq.s32.totalorder %s21, 0
      %p136 = por %p134, %p135
      %p137 = scmp.ne.s32.totalorder %s123, %s124
      %p138 = scmp.eq.s32.totalorder %s22, 1
      %p139 = por %p137, %p138
      %p141 = scmp.ne.s32.totalorder %s124, %s140
      %p142 = scmp.eq.s32.totalorder %s22, 0
      %p143 = por %p141, %p142
      %p144 = scmp.le.s32.totalorder 1, %s16
      %p145 = scmp.lt.s32.totalorder %s16, 3
      %p146 = pnand %p144, %p145
      %p147 = pneg %p146
      // Predicated region
      $region9: #{tpu_custom_call.1} parent=5 // pred_check
        _
      $region10: #{tpu_custom_call.1} parent=5 // pred_check_branch
        %149 = sbr.rel (%p146) target = $region12
      $region11: #{tpu_custom_call.1} parent=5 // pred_region
        %s150 = ssub.s32 %s16, 1
        // Predicated region
        $region13: #{tpu_custom_call.1} parent=11 // pred_check
          %p151 = pneg %p89
        $region14: #{tpu_custom_call.1} parent=11 // pred_check_branch
          %153 = sbr.rel (%p151) target = $region16
        $region15: #{tpu_custom_call.1} parent=11 // pred_region
          _
        $region16: #{tpu_custom_call.1} parent=11 // pred_fallthru
          _
        // Predicated region
        $region17: #{tpu_custom_call.1} parent=11 // pred_check
          %p154 = pneg %p110
        $region18: #{tpu_custom_call.1} parent=11 // pred_check_branch
          %156 = sbr.rel (%p154) target = $region20
        $region19: #{tpu_custom_call.1} parent=11 // pred_region
          _
        $region20: #{tpu_custom_call.1} parent=11 // pred_fallthru
          _
      $region12: #{tpu_custom_call.1} parent=5 // pred_fallthru
        _
      %p157 = scmp.lt.s32.totalorder %s16, 2
      // Predicated region
      $region21: #{tpu_custom_call.1} parent=5 // pred_check
        %p158 = pneg %p157
      $region22: #{tpu_custom_call.1} parent=5 // pred_check_branch
        %160 = sbr.rel (%p158) target = $region24
      $region23: #{tpu_custom_call.1} parent=5 // pred_region
        // Predicated region
        $region25: #{tpu_custom_call.1} parent=23 // pred_check
          %p161 = pneg %p36
        $region26: #{tpu_custom_call.1} parent=23 // pred_check_branch
          %163 = sbr.rel (%p161) target = $region28
        $region27: #{tpu_custom_call.1} parent=23 // pred_region
          %s164 = sand.u32 %s26, 1
          %s165 = scalar_lea.sflag [#allocation4], %s164
          %s166 = sand.u32 %s26, 1
          %s167 = smul.addr %s166, 256
          %s168 = scalar_lea.vmem [#allocation3], %s167
          %s170 = ssub.s32 4096, 4096
          %171 = vsyncadd %s165, %s170
          %s172 = smul.addr %s16, 32
          %s173 = smul.addr %s172, 128
          %s174 = scalar_lea.hbm %s0, %s173
          %s175 = sshll.u32 %s168, 4
          %s176 = int_to_ptr.vmem [resolvable:$true] %s175
          %181 = dma.hbm_to_vmem [thread:$0]  %s174, 4096, %s176, %s165, 128, 128, 8
        $region28: #{tpu_custom_call.1} parent=23 // pred_fallthru
          _
        // Predicated region
        $region29: #{tpu_custom_call.1} parent=23 // pred_check
          %p182 = pneg %p62
        $region30: #{tpu_custom_call.1} parent=23 // pred_check_branch
          %184 = sbr.rel (%p182) target = $region32
        $region31: #{tpu_custom_call.1} parent=23 // pred_region
          %p185 = scmp.lt.s32.totalorder %s16, 1
          %s186 = scalar_select %p185, %s16, 1
          %s187 = smul.addr %s186, 7
          %s188 = smul.addr %s187, 8
          %s189 = scalar_lea.vmem %s1, %s188
        $region32: #{tpu_custom_call.1} parent=23 // pred_fallthru
          _
      $region24: #{tpu_custom_call.1} parent=5 // pred_fallthru
        _
      %p190 = scmp.le.s32.totalorder 1, %s16
      %p191 = scmp.lt.s32.totalorder %s16, 3
      %p192 = pnand %p190, %p191
      %p193 = pneg %p192
      // Predicated region
      $region33: #{tpu_custom_call.1} parent=5 // pred_check
        _
      $region34: #{tpu_custom_call.1} parent=5 // pred_check_branch
        %195 = sbr.rel (%p192) target = $region36
      $region35: #{tpu_custom_call.1} parent=5 // pred_region
        %s196 = ssub.s32 %s16, 1
        %s197 = sand.u32 %s29, 1
        %s198 = scalar_lea.sflag [#allocation4], %s197
        %s199 = sand.u32 %s29, 1
        %s200 = smul.addr %s199, 256
        %s201 = scalar_lea.vmem [#allocation3], %s200
        // Predicated region
        $region37: #{tpu_custom_call.1} parent=35 // pred_check
          %p202 = pneg %p42
        $region38: #{tpu_custom_call.1} parent=35 // pred_check_branch
          %204 = sbr.rel (%p202) target = $region40
        $region39: #{tpu_custom_call.1} parent=35 // pred_region
          %205 = dma.done %s198, 4096
        $region40: #{tpu_custom_call.1} parent=35 // pred_fallthru
          _
        %s206 = sand.u32 %s29, 1
        %s207 = scalar_lea.sflag [#allocation4], %s206
        %s208 = sand.u32 %s29, 1
        %s209 = smul.addr %s208, 256
        %s210 = scalar_lea.vmem [#allocation3], %s209
        %p211 = pneg %p42
        %p212 = pneg %p39
        %p213 = scmp.lt.s32.totalorder %s21, 1
        %s214 = scalar_select %p213, %s21, 1
        %s215 = smul.addr %s214, 7
        %s216 = smul.addr %s215, 8
        %s217 = scalar_lea.vmem %s1, %s216
        %p218 = pneg %p68
        %p219 = pneg %p65
        %p220 = pneg %p89
        %p221 = pneg %p86
        %p222 = pneg %p110
        %p223 = pneg %p107
        %p224 = pneg %p136
        %p225 = pneg %p133
        %s226 = sand.u32 %s123, 1
        %s227 = scalar_lea.sflag [#allocation5], %s226
        %s228 = sand.u32 %s123, 1
        %s229 = smul.addr %s228, 256
        %s230 = scalar_lea.vmem [#allocation6], %s229
        %p231 = scmp.lt.s32.totalorder %s21, 1
        %s232 = scalar_select %p231, %s21, 1
        %s233 = smul.addr %s232, 7
        %s234 = smul.addr %s233, 8
        %s235 = scalar_lea.vmem %s1, %s234
        %vm236 = vcmask 261120
        %237 = vst.msk [vmem:[#allocation2] sm:$0xff] %vm236, 0.0
        %238 = vst.msk [vmem:[#allocation2 + $0x8] sm:$0xff] %vm236, 0.0
        %239 = vst.msk [vmem:[#allocation2 + $0x10] sm:$0xff] %vm236, 0.0
        %240 = vst.msk [vmem:[#allocation2 + $0x18] sm:$0xff] %vm236, 0.0
        %241 = vst.msk [vmem:[#allocation2 + $0x20] sm:$0xff] %vm236, 0.0
        %242 = vst.msk [vmem:[#allocation2 + $0x28] sm:$0xff] %vm236, 0.0
        %243 = vst.msk [vmem:[#allocation2 + $0x30] sm:$0xff] %vm236, 0.0
        %244 = vst.msk [vmem:[#allocation2 + $0x38] sm:$0xff] %vm236, 0.0
        %245 = vst.msk [vmem:[#allocation2 + $0x40] sm:$0xff] %vm236, 0.0
        %246 = vst.msk [vmem:[#allocation2 + $0x48] sm:$0xff] %vm236, 0.0
        %247 = vst.msk [vmem:[#allocation2 + $0x50] sm:$0xff] %vm236, 0.0
        %248 = vst.msk [vmem:[#allocation2 + $0x58] sm:$0xff] %vm236, 0.0
        %249 = vst.msk [vmem:[#allocation2 + $0x60] sm:$0xff] %vm236, 0.0
        %250 = vst.msk [vmem:[#allocation2 + $0x68] sm:$0xff] %vm236, 0.0
        %251 = vst.msk [vmem:[#allocation2 + $0x70] sm:$0xff] %vm236, 0.0
        %252 = vst.msk [vmem:[#allocation2 + $0x78] sm:$0xff] %vm236, 0.0
        %253 = vst.msk [vmem:[#allocation2 + $0x80] sm:$0xff] %vm236, 0.0
        %254 = vst.msk [vmem:[#allocation2 + $0x88] sm:$0xff] %vm236, 0.0
        %255 = vst.msk [vmem:[#allocation2 + $0x90] sm:$0xff] %vm236, 0.0
        %256 = vst.msk [vmem:[#allocation2 + $0x98] sm:$0xff] %vm236, 0.0
        %257 = vst.msk [vmem:[#allocation2 + $0xa0] sm:$0xff] %vm236, 0.0
        %258 = vst.msk [vmem:[#allocation2 + $0xa8] sm:$0xff] %vm236, 0.0
        %259 = vst.msk [vmem:[#allocation2 + $0xb0] sm:$0xff] %vm236, 0.0
        %260 = vst.msk [vmem:[#allocation2 + $0xb8] sm:$0xff] %vm236, 0.0
        %261 = vst.msk [vmem:[#allocation2 + $0xc0] sm:$0xff] %vm236, 0.0
        %262 = vst.msk [vmem:[#allocation2 + $0xc8] sm:$0xff] %vm236, 0.0
        %263 = vst.msk [vmem:[#allocation2 + $0xd0] sm:$0xff] %vm236, 0.0
        %264 = vst.msk [vmem:[#allocation2 + $0xd8] sm:$0xff] %vm236, 0.0
        %265 = vst.msk [vmem:[#allocation2 + $0xe0] sm:$0xff] %vm236, 0.0
        %266 = vst.msk [vmem:[#allocation2 + $0xe8] sm:$0xff] %vm236, 0.0
        %267 = vst.msk [vmem:[#allocation2 + $0xf0] sm:$0xff] %vm236, 0.0
        %268 = vst.msk [vmem:[#allocation2 + $0xf8] sm:$0xff] %vm236, 0.0
        %269 = vst.msk [vmem:[#allocation2 + $0x100] sm:$0xff] %vm236, 0.0
        %270 = vst.msk [vmem:[#allocation2 + $0x108] sm:$0xff] %vm236, 0.0
        %271 = vst.msk [vmem:[#allocation2 + $0x110] sm:$0xff] %vm236, 0.0
        %272 = vst.msk [vmem:[#allocation2 + $0x118] sm:$0xff] %vm236, 0.0
        %273 = vst.msk [vmem:[#allocation2 + $0x120] sm:$0xff] %vm236, 0.0
        %274 = vst.msk [vmem:[#allocation2 + $0x128] sm:$0xff] %vm236, 0.0
        %275 = vst.msk [vmem:[#allocation2 + $0x130] sm:$0xff] %vm236, 0.0
        %276 = vst.msk [vmem:[#allocation2 + $0x138] sm:$0xff] %vm236, 0.0
        %277 = vst.msk [vmem:[#allocation2 + $0x140] sm:$0xff] %vm236, 0.0
        %278 = vst.msk [vmem:[#allocation2 + $0x148] sm:$0xff] %vm236, 0.0
        %279 = vst.msk [vmem:[#allocation2 + $0x150] sm:$0xff] %vm236, 0.0
        %280 = vst.msk [vmem:[#allocation2 + $0x158] sm:$0xff] %vm236, 0.0
        %281 = vst.msk [vmem:[#allocation2 + $0x160] sm:$0xff] %vm236, 0.0
        %282 = vst.msk [vmem:[#allocation2 + $0x168] sm:$0xff] %vm236, 0.0
        %283 = vst.msk [vmem:[#allocation2 + $0x170] sm:$0xff] %vm236, 0.0
        %284 = vst.msk [vmem:[#allocation2 + $0x178] sm:$0xff] %vm236, 0.0
        %285 = vst.msk [vmem:[#allocation2 + $0x180] sm:$0xff] %vm236, 0.0
        %286 = vst.msk [vmem:[#allocation2 + $0x188] sm:$0xff] %vm236, 0.0
        %287 = vst.msk [vmem:[#allocation2 + $0x190] sm:$0xff] %vm236, 0.0
        %288 = vst.msk [vmem:[#allocation2 + $0x198] sm:$0xff] %vm236, 0.0
        %289 = vst.msk [vmem:[#allocation2 + $0x1a0] sm:$0xff] %vm236, 0.0
        %290 = vst.msk [vmem:[#allocation2 + $0x1a8] sm:$0xff] %vm236, 0.0
        %291 = vst.msk [vmem:[#allocation2 + $0x1b0] sm:$0xff] %vm236, 0.0
        %292 = vst.msk [vmem:[#allocation2 + $0x1b8] sm:$0xff] %vm236, 0.0
        %293 = vst.msk [vmem:[#allocation2 + $0x1c0] sm:$0xff] %vm236, 0.0
        %294 = vst.msk [vmem:[#allocation2 + $0x1c8] sm:$0xff] %vm236, 0.0
        %295 = vst.msk [vmem:[#allocation2 + $0x1d0] sm:$0xff] %vm236, 0.0
        %296 = vst.msk [vmem:[#allocation2 + $0x1d8] sm:$0xff] %vm236, 0.0
        %297 = vst.msk [vmem:[#allocation2 + $0x1e0] sm:$0xff] %vm236, 0.0
        %298 = vst.msk [vmem:[#allocation2 + $0x1e8] sm:$0xff] %vm236, 0.0
        %299 = vst.msk [vmem:[#allocation2 + $0x1f0] sm:$0xff] %vm236, 0.0
        %300 = vst.msk [vmem:[#allocation2 + $0x1f8] sm:$0xff] %vm236, 0.0
        %301 = vst.msk [vmem:[#allocation2 + $0x200] sm:$0xff] %vm236, 0.0
        %302 = vst.msk [vmem:[#allocation2 + $0x208] sm:$0xff] %vm236, 0.0
        %303 = vst.msk [vmem:[#allocation2 + $0x210] sm:$0xff] %vm236, 0.0
        %304 = vst.msk [vmem:[#allocation2 + $0x218] sm:$0xff] %vm236, 0.0
        %305 = vst.msk [vmem:[#allocation2 + $0x220] sm:$0xff] %vm236, 0.0
        %306 = vst.msk [vmem:[#allocation2 + $0x228] sm:$0xff] %vm236, 0.0
        %307 = vst.msk [vmem:[#allocation2 + $0x230] sm:$0xff] %vm236, 0.0
        %308 = vst.msk [vmem:[#allocation2 + $0x238] sm:$0xff] %vm236, 0.0
        %309 = vst.msk [vmem:[#allocation2 + $0x240] sm:$0xff] %vm236, 0.0
        %310 = vst.msk [vmem:[#allocation2 + $0x248] sm:$0xff] %vm236, 0.0
        %311 = vst.msk [vmem:[#allocation2 + $0x250] sm:$0xff] %vm236, 0.0
        %312 = vst.msk [vmem:[#allocation2 + $0x258] sm:$0xff] %vm236, 0.0
        %313 = vst.msk [vmem:[#allocation2 + $0x260] sm:$0xff] %vm236, 0.0
        %314 = vst.msk [vmem:[#allocation2 + $0x268] sm:$0xff] %vm236, 0.0
        %315 = vst.msk [vmem:[#allocation2 + $0x270] sm:$0xff] %vm236, 0.0
        %316 = vst.msk [vmem:[#allocation2 + $0x278] sm:$0xff] %vm236, 0.0
        %317 = vst.msk [vmem:[#allocation2 + $0x280] sm:$0xff] %vm236, 0.0
        %318 = vst.msk [vmem:[#allocation2 + $0x288] sm:$0xff] %vm236, 0.0
        %319 = vst.msk [vmem:[#allocation2 + $0x290] sm:$0xff] %vm236, 0.0
        %320 = vst.msk [vmem:[#allocation2 + $0x298] sm:$0xff] %vm236, 0.0
        %321 = vst.msk [vmem:[#allocation2 + $0x2a0] sm:$0xff] %vm236, 0.0
        %322 = vst.msk [vmem:[#allocation2 + $0x2a8] sm:$0xff] %vm236, 0.0
        %323 = vst.msk [vmem:[#allocation2 + $0x2b0] sm:$0xff] %vm236, 0.0
        %324 = vst.msk [vmem:[#allocation2 + $0x2b8] sm:$0xff] %vm236, 0.0
        %v325 = vld [vmem:[%s201] sm:$0xff]
        %v326 = vld [vmem:[%s201 + $0x8] sm:$0xff]
        %v327 = vld [vmem:[%s201 + $0x10] sm:$0xff]
        %v328 = vld [vmem:[%s201 + $0x18] sm:$0xff]
        %v329 = vld [vmem:[%s201 + $0x20] sm:$0xff]
        %v330 = vld [vmem:[%s201 + $0x28] sm:$0xff]
        %v331 = vld [vmem:[%s201 + $0x30] sm:$0xff]
        %v332 = vld [vmem:[%s201 + $0x38] sm:$0xff]
        %v333 = vld [vmem:[%s201 + $0x40] sm:$0xff]
        %v334 = vld [vmem:[%s201 + $0x48] sm:$0xff]
        %v335 = vld [vmem:[%s201 + $0x50] sm:$0xff]
        %v336 = vld [vmem:[%s201 + $0x58] sm:$0xff]
        %v337 = vld [vmem:[%s201 + $0x60] sm:$0xff]
        %v338 = vld [vmem:[%s201 + $0x68] sm:$0xff]
        %v339 = vld [vmem:[%s201 + $0x70] sm:$0xff]
        %v340 = vld [vmem:[%s201 + $0x78] sm:$0xff]
        %v341 = vld [vmem:[%s201 + $0x80] sm:$0xff]
        %v342 = vld [vmem:[%s201 + $0x88] sm:$0xff]
        %v343 = vld [vmem:[%s201 + $0x90] sm:$0xff]
        %v344 = vld [vmem:[%s201 + $0x98] sm:$0xff]
        %v345 = vld [vmem:[%s201 + $0xa0] sm:$0xff]
        %v346 = vld [vmem:[%s201 + $0xa8] sm:$0xff]
        %v347 = vld [vmem:[%s201 + $0xb0] sm:$0xff]
        %v348 = vld [vmem:[%s201 + $0xb8] sm:$0xff]
        %v349 = vld [vmem:[%s201 + $0xc0] sm:$0xff]
        %v350 = vld [vmem:[%s201 + $0xc8] sm:$0xff]
        %v351 = vld [vmem:[%s201 + $0xd0] sm:$0xff]
        %v352 = vld [vmem:[%s201 + $0xd8] sm:$0xff]
        %v353 = vld [vmem:[%s201 + $0xe0] sm:$0xff]
        %v354 = vld [vmem:[%s201 + $0xe8] sm:$0xff]
        %v355 = vld [vmem:[%s201 + $0xf0] sm:$0xff]
        %v356 = vld [vmem:[%s201 + $0xf8] sm:$0xff]
        %s357 = scalar_lea.vmem [#allocation2], 96
        %358 = vst.msk [vmem:[%s357 + $0x8] sm:$0xff] %vm236, %v325
        %359 = vst.msk [vmem:[%s357 + $0x10] sm:$0xff] %vm236, %v326
        %360 = vst.msk [vmem:[%s357 + $0x28] sm:$0xff] %vm236, %v327
        %361 = vst.msk [vmem:[%s357 + $0x30] sm:$0xff] %vm236, %v328
        %362 = vst.msk [vmem:[%s357 + $0x48] sm:$0xff] %vm236, %v329
        %363 = vst.msk [vmem:[%s357 + $0x50] sm:$0xff] %vm236, %v330
        %364 = vst.msk [vmem:[%s357 + $0x68] sm:$0xff] %vm236, %v331
        %365 = vst.msk [vmem:[%s357 + $0x70] sm:$0xff] %vm236, %v332
        %366 = vst.msk [vmem:[%s357 + $0x88] sm:$0xff] %vm236, %v333
        %367 = vst.msk [vmem:[%s357 + $0x90] sm:$0xff] %vm236, %v334
        %368 = vst.msk [vmem:[%s357 + $0xa8] sm:$0xff] %vm236, %v335
        %369 = vst.msk [vmem:[%s357 + $0xb0] sm:$0xff] %vm236, %v336
        %370 = vst.msk [vmem:[%s357 + $0xc8] sm:$0xff] %vm236, %v337
        %371 = vst.msk [vmem:[%s357 + $0xd0] sm:$0xff] %vm236, %v338
        %372 = vst.msk [vmem:[%s357 + $0xe8] sm:$0xff] %vm236, %v339
        %373 = vst.msk [vmem:[%s357 + $0xf0] sm:$0xff] %vm236, %v340
        %374 = vst.msk [vmem:[%s357 + $0x108] sm:$0xff] %vm236, %v341
        %375 = vst.msk [vmem:[%s357 + $0x110] sm:$0xff] %vm236, %v342
        %376 = vst.msk [vmem:[%s357 + $0x128] sm:$0xff] %vm236, %v343
        %377 = vst.msk [vmem:[%s357 + $0x130] sm:$0xff] %vm236, %v344
        %378 = vst.msk [vmem:[%s357 + $0x148] sm:$0xff] %vm236, %v345
        %379 = vst.msk [vmem:[%s357 + $0x150] sm:$0xff] %vm236, %v346
        %380 = vst.msk [vmem:[%s357 + $0x168] sm:$0xff] %vm236, %v347
        %381 = vst.msk [vmem:[%s357 + $0x170] sm:$0xff] %vm236, %v348
        %382 = vst.msk [vmem:[%s357 + $0x188] sm:$0xff] %vm236, %v349
        %383 = vst.msk [vmem:[%s357 + $0x190] sm:$0xff] %vm236, %v350
        %384 = vst.msk [vmem:[%s357 + $0x1a8] sm:$0xff] %vm236, %v351
        %385 = vst.msk [vmem:[%s357 + $0x1b0] sm:$0xff] %vm236, %v352
        %386 = vst.msk [vmem:[%s357 + $0x1c8] sm:$0xff] %vm236, %v353
        %387 = vst.msk [vmem:[%s357 + $0x1d0] sm:$0xff] %vm236, %v354
        %388 = vst.msk [vmem:[%s357 + $0x1e8] sm:$0xff] %vm236, %v355
        %389 = vst.msk [vmem:[%s357 + $0x1f0] sm:$0xff] %vm236, %v356
        %v390 = vld [vmem:[%s235] sm:$0xff]
        %v391 = vld [vmem:[%s235 + $0x8] sm:$0xff]
        %v392 = vld [vmem:[%s235 + $0x10] sm:$0xff]
        %v393 = vld [vmem:[%s235 + $0x18] sm:$0xff]
        %v394 = vld [vmem:[%s235 + $0x20] sm:$0xff]
        %v395 = vld [vmem:[%s235 + $0x28] sm:$0xff]
        %v396 = vld [vmem:[%s235 + $0x30] sm:$0x1]
        %v397 = vsel %vm236, %v390, -inf
        %v398 = vsel %vm236, %v391, -inf
        %v399 = vsel %vm236, %v392, -inf
        %v400 = vsel %vm236, %v393, -inf
        %v401 = vsel %vm236, %v394, -inf
        %v402 = vmax.f32 %v397, %v401
        %v403 = vsel %vm236, %v395, -inf
        %v404 = vmax.f32 %v398, %v403
        %vm405 = vcmask 253952
        %v406 = vsel %vm405, %v396, -inf
        %v407 = vmax.f32 %v399, %v406
        %v408 = vmax.f32 %v402, %v404
        %v409 = vmax.f32 %v407, %v400
        %v410 = vmax.f32 %v408, %v409
        %v411 = vrot.slane %v410, 4
        %v412 = vmax.f32 %v410, %v411
        %v413 = vrot.slane %v412, 2
        %v414 = vmax.f32 %v412, %v413
        %v415 = vrot.slane %v414, 1
        %v416 = vmax.f32 %v414, %v415
        %v417 = vsub.f32 %v390, %v416
        %v418 = vsub.f32 %v391, %v416
        %v419 = vsub.f32 %v392, %v416
        %v420 = vsub.f32 %v393, %v416
        %v421 = vsub.f32 %v394, %v416
        %v422 = vsub.f32 %v395, %v416
        %v423 = vsub.f32 %v396, %v416
        %v424 = vmul.f32 %v417, 1.442695
        %v425 = vpow.pop %v424
        %v426 = vmul.f32 %v418, 1.442695
        %v427 = vpow.pop %v426
        %v428 = vmul.f32 %v419, 1.442695
        %v429 = vpow.pop %v428
        %v430 = vmul.f32 %v420, 1.442695
        %v431 = vpow.pop %v430
        %v432 = vmul.f32 %v421, 1.442695
        %v433 = vpow.pop %v432
        %v434 = vmul.f32 %v422, 1.442695
        %v435 = vpow.pop %v434
        %v436 = vmul.f32 %v423, 1.442695
        %v437 = vpow.pop %v436
        %v438 = vsel %vm236, %v425, 0.0
        %v439 = vsel %vm236, %v427, 0.0
        %v440 = vadd.f32 %v438, %v439
        %v441 = vsel %vm236, %v429, 0.0
        %v442 = vadd.f32 %v440, %v441
        %v443 = vsel %vm236, %v431, 0.0
        %v444 = vadd.f32 %v442, %v443
        %v445 = vsel %vm236, %v433, 0.0
        %v446 = vadd.f32 %v444, %v445
        %v447 = vsel %vm236, %v435, 0.0
        %v448 = vadd.f32 %v446, %v447
        %v449 = vsel %vm405, %v437, 0.0
        %v450 = vadd.f32 %v448, %v449
        %v451 = vrot.slane %v450, 4
        %v452 = vadd.f32 %v450, %v451
        %v453 = vrot.slane %v452, 2
        %v454 = vadd.f32 %v452, %v453
        %v455 = vrot.slane %v454, 1
        %v456 = vadd.f32 %v454, %v455
        %v457 = vrcp.pop %v456
        %v458 = vmul.f32 %v425, %v457
        %v459 = vmul.f32 %v427, %v457
        %v460 = vmul.f32 %v429, %v457
        %v461 = vmul.f32 %v431, %v457
        %v462 = vmul.f32 %v433, %v457
        %v463 = vmul.f32 %v435, %v457
        %v464 = vmul.f32 %v437, %v457
        %v465 = vld [vmem:[%s2] sm:$0x1]
        %v466 = vld [vmem:[%s3] sm:$0x1]
        loop: start=0, step=1, limit=2
        $region41: #{tpu_custom_call.1} parent=35 // loop_pre_header
          _
        $region42: #{tpu_custom_call.1} parent=35 // loop_header
          %s468 = sphi 0, %s472
          %p469 = scmp.ge.s32.totalorder %s468, 2
        $region43: #{tpu_custom_call.1} parent=35 // loop_header_branch
          %471 = sbr.rel (%p469) target = $region47
        $region44: #{tpu_custom_call.1} parent=35 // loop_body
          %s473 = smul.u32 %s468, 8
          %s474 = smul.u32 %s473, 32
          %s475 = scalar_lea.vmem [#allocation2], %s474
          %v476 = vld [vmem:[%s475 + $0x5] sm:$0xff]
          %v477 = vld [vmem:[%s475 + $0xd] sm:$0xff]
          %v478 = vld [vmem:[%s475 + $0x25] sm:$0xff]
          %v479 = vld [vmem:[%s475 + $0x2d] sm:$0xff]
          %v480 = vld [vmem:[%s475 + $0x45] sm:$0xff]
          %v481 = vld [vmem:[%s475 + $0x4d] sm:$0xff]
          %v482 = vld [vmem:[%s475 + $0x65] sm:$0xff]
          %v483 = vld [vmem:[%s475 + $0x6d] sm:$0xff]
          %v484 = vld [vmem:[%s475 + $0x85] sm:$0xff]
          %v485 = vld [vmem:[%s475 + $0x8d] sm:$0xff]
          %v486 = vld [vmem:[%s475 + $0xa5] sm:$0xff]
          %v487 = vld [vmem:[%s475 + $0xad] sm:$0xff]
          %v488 = vld [vmem:[%s475 + $0xc5] sm:$0xff]
          %v489 = vld [vmem:[%s475 + $0xcd] sm:$0xff]
          %v490 = vld [vmem:[%s475 + $0xe5] sm:$0xff]
          %v491 = vld [vmem:[%s475 + $0xed] sm:$0xff]
          %v492 = vlaneseq
          %v493 = vshrl.u32 %v492, 7
          %v494 = vsub.s32 0, %v493
          %v495 = vrot.slane %v458, %v494
          %v496 = vmul.f32 %v476, %v495
          %v497 = vmul.f32 %v477, %v495
          %v498 = vmul.f32 %v478, %v495
          %v499 = vmul.f32 %v479, %v495
          %v500 = vmul.f32 %v480, %v495
          %v501 = vmul.f32 %v481, %v495
          %v502 = vmul.f32 %v482, %v495
          %v503 = vmul.f32 %v483, %v495
          %v504 = vmul.f32 %v484, %v495
          %v505 = vmul.f32 %v485, %v495
          %v506 = vmul.f32 %v486, %v495
          %v507 = vmul.f32 %v487, %v495
          %v508 = vmul.f32 %v488, %v495
          %v509 = vmul.f32 %v489, %v495
          %v510 = vmul.f32 %v490, %v495
          %v511 = vmul.f32 %v491, %v495
          %v512 = vld [vmem:[%s475 + $0x6] sm:$0xff]
          %v513 = vld [vmem:[%s475 + $0xe] sm:$0xff]
          %v514 = vld [vmem:[%s475 + $0x26] sm:$0xff]
          %v515 = vld [vmem:[%s475 + $0x2e] sm:$0xff]
          %v516 = vld [vmem:[%s475 + $0x46] sm:$0xff]
          %v517 = vld [vmem:[%s475 + $0x4e] sm:$0xff]
          %v518 = vld [vmem:[%s475 + $0x66] sm:$0xff]
          %v519 = vld [vmem:[%s475 + $0x6e] sm:$0xff]
          %v520 = vld [vmem:[%s475 + $0x86] sm:$0xff]
          %v521 = vld [vmem:[%s475 + $0x8e] sm:$0xff]
          %v522 = vld [vmem:[%s475 + $0xa6] sm:$0xff]
          %v523 = vld [vmem:[%s475 + $0xae] sm:$0xff]
          %v524 = vld [vmem:[%s475 + $0xc6] sm:$0xff]
          %v525 = vld [vmem:[%s475 + $0xce] sm:$0xff]
          %v526 = vld [vmem:[%s475 + $0xe6] sm:$0xff]
          %v527 = vld [vmem:[%s475 + $0xee] sm:$0xff]
          %v528 = vlaneseq
          %v529 = vshrl.u32 %v528, 7
          %v530 = vsub.s32 1, %v529
          %v531 = vrot.slane %v458, %v530
          %v532 = vmul.f32 %v512, %v531
          %v533 = vmul.f32 %v513, %v531
          %v534 = vmul.f32 %v514, %v531
          %v535 = vmul.f32 %v515, %v531
          %v536 = vmul.f32 %v516, %v531
          %v537 = vmul.f32 %v517, %v531
          %v538 = vmul.f32 %v518, %v531
          %v539 = vmul.f32 %v519, %v531
          %v540 = vmul.f32 %v520, %v531
          %v541 = vmul.f32 %v521, %v531
          %v542 = vmul.f32 %v522, %v531
          %v543 = vmul.f32 %v523, %v531
          %v544 = vmul.f32 %v524, %v531
          %v545 = vmul.f32 %v525, %v531
          %v546 = vmul.f32 %v526, %v531
          %v547 = vmul.f32 %v527, %v531
          %v548 = vadd.f32 %v496, %v532
          %v549 = vadd.f32 %v497, %v533
          %v550 = vadd.f32 %v498, %v534
          %v551 = vadd.f32 %v499, %v535
          %v552 = vadd.f32 %v500, %v536
          %v553 = vadd.f32 %v501, %v537
          %v554 = vadd.f32 %v502, %v538
          %v555 = vadd.f32 %v503, %v539
          %v556 = vadd.f32 %v504, %v540
          %v557 = vadd.f32 %v505, %v541
          %v558 = vadd.f32 %v506, %v542
          %v559 = vadd.f32 %v507, %v543
          %v560 = vadd.f32 %v508, %v544
          %v561 = vadd.f32 %v509, %v545
          %v562 = vadd.f32 %v510, %v546
          %v563 = vadd.f32 %v511, %v547
          %v564 = vld [vmem:[%s475 + $0x7] sm:$0xff]
          %v565 = vld [vmem:[%s475 + $0xf] sm:$0xff]
          %v566 = vld [vmem:[%s475 + $0x27] sm:$0xff]
          %v567 = vld [vmem:[%s475 + $0x2f] sm:$0xff]
          %v568 = vld [vmem:[%s475 + $0x47] sm:$0xff]
          %v569 = vld [vmem:[%s475 + $0x4f] sm:$0xff]
          %v570 = vld [vmem:[%s475 + $0x67] sm:$0xff]
          %v571 = vld [vmem:[%s475 + $0x6f] sm:$0xff]
          %v572 = vld [vmem:[%s475 + $0x87] sm:$0xff]
          %v573 = vld [vmem:[%s475 + $0x8f] sm:$0xff]
          %v574 = vld [vmem:[%s475 + $0xa7] sm:$0xff]
          %v575 = vld [vmem:[%s475 + $0xaf] sm:$0xff]
          %v576 = vld [vmem:[%s475 + $0xc7] sm:$0xff]
          %v577 = vld [vmem:[%s475 + $0xcf] sm:$0xff]
          %v578 = vld [vmem:[%s475 + $0xe7] sm:$0xff]
          %v579 = vld [vmem:[%s475 + $0xef] sm:$0xff]
          %v580 = vlaneseq
          %v581 = vshrl.u32 %v580, 7
          %v582 = vsub.s32 2, %v581
          %v583 = vrot.slane %v458, %v582
          %v584 = vmul.f32 %v564, %v583
          %v585 = vmul.f32 %v565, %v583
          %v586 = vmul.f32 %v566, %v583
          %v587 = vmul.f32 %v567, %v583
          %v588 = vmul.f32 %v568, %v583
          %v589 = vmul.f32 %v569, %v583
          %v590 = vmul.f32 %v570, %v583
          %v591 = vmul.f32 %v571, %v583
          %v592 = vmul.f32 %v572, %v583
          %v593 = vmul.f32 %v573, %v583
          %v594 = vmul.f32 %v574, %v583
          %v595 = vmul.f32 %v575, %v583
          %v596 = vmul.f32 %v576, %v583
          %v597 = vmul.f32 %v577, %v583
          %v598 = vmul.f32 %v578, %v583
          %v599 = vmul.f32 %v579, %v583
          %v600 = vadd.f32 %v548, %v584
          %v601 = vadd.f32 %v549, %v585
          %v602 = vadd.f32 %v550, %v586
          %v603 = vadd.f32 %v551, %v587
          %v604 = vadd.f32 %v552, %v588
          %v605 = vadd.f32 %v553, %v589
          %v606 = vadd.f32 %v554, %v590
          %v607 = vadd.f32 %v555, %v591
          %v608 = vadd.f32 %v556, %v592
          %v609 = vadd.f32 %v557, %v593
          %v610 = vadd.f32 %v558, %v594
          %v611 = vadd.f32 %v559, %v595
          %v612 = vadd.f32 %v560, %v596
          %v613 = vadd.f32 %v561, %v597
          %v614 = vadd.f32 %v562, %v598
          %v615 = vadd.f32 %v563, %v599
          %v616 = vld [vmem:[%s475 + $0x8] sm:$0xff]
          %v617 = vld [vmem:[%s475 + $0x10] sm:$0xff]
          %v618 = vld [vmem:[%s475 + $0x28] sm:$0xff]
          %v619 = vld [vmem:[%s475 + $0x30] sm:$0xff]
          %v620 = vld [vmem:[%s475 + $0x48] sm:$0xff]
          %v621 = vld [vmem:[%s475 + $0x50] sm:$0xff]
          %v622 = vld [vmem:[%s475 + $0x68] sm:$0xff]
          %v623 = vld [vmem:[%s475 + $0x70] sm:$0xff]
          %v624 = vld [vmem:[%s475 + $0x88] sm:$0xff]
          %v625 = vld [vmem:[%s475 + $0x90] sm:$0xff]
          %v626 = vld [vmem:[%s475 + $0xa8] sm:$0xff]
          %v627 = vld [vmem:[%s475 + $0xb0] sm:$0xff]
          %v628 = vld [vmem:[%s475 + $0xc8] sm:$0xff]
          %v629 = vld [vmem:[%s475 + $0xd0] sm:$0xff]
          %v630 = vld [vmem:[%s475 + $0xe8] sm:$0xff]
          %v631 = vld [vmem:[%s475 + $0xf0] sm:$0xff]
          %v632 = vlaneseq
          %v633 = vshrl.u32 %v632, 7
          %v634 = vsub.s32 3, %v633
          %v635 = vrot.slane %v458, %v634
          %v636 = vmul.f32 %v616, %v635
          %v637 = vmul.f32 %v617, %v635
          %v638 = vmul.f32 %v618, %v635
          %v639 = vmul.f32 %v619, %v635
          %v640 = vmul.f32 %v620, %v635
          %v641 = vmul.f32 %v621, %v635
          %v642 = vmul.f32 %v622, %v635
          %v643 = vmul.f32 %v623, %v635
          %v644 = vmul.f32 %v624, %v635
          %v645 = vmul.f32 %v625, %v635
          %v646 = vmul.f32 %v626, %v635
          %v647 = vmul.f32 %v627, %v635
          %v648 = vmul.f32 %v628, %v635
          %v649 = vmul.f32 %v629, %v635
          %v650 = vmul.f32 %v630, %v635
          %v651 = vmul.f32 %v631, %v635
          %v652 = vadd.f32 %v600, %v636
          %v653 = vadd.f32 %v601, %v637
          %v654 = vadd.f32 %v602, %v638
          %v655 = vadd.f32 %v603, %v639
          %v656 = vadd.f32 %v604, %v640
          %v657 = vadd.f32 %v605, %v641
          %v658 = vadd.f32 %v606, %v642
          %v659 = vadd.f32 %v607, %v643
          %v660 = vadd.f32 %v608, %v644
          %v661 = vadd.f32 %v609, %v645
          %v662 = vadd.f32 %v610, %v646
          %v663 = vadd.f32 %v611, %v647
          %v664 = vadd.f32 %v612, %v648
          %v665 = vadd.f32 %v613, %v649
          %v666 = vadd.f32 %v614, %v650
          %v667 = vadd.f32 %v615, %v651
          %v668 = vld [vmem:[%s475 + $0x9] sm:$0xff]
          %v669 = vld [vmem:[%s475 + $0x11] sm:$0xff]
          %v670 = vld [vmem:[%s475 + $0x29] sm:$0xff]
          %v671 = vld [vmem:[%s475 + $0x31] sm:$0xff]
          %v672 = vld [vmem:[%s475 + $0x49] sm:$0xff]
          %v673 = vld [vmem:[%s475 + $0x51] sm:$0xff]
          %v674 = vld [vmem:[%s475 + $0x69] sm:$0xff]
          %v675 = vld [vmem:[%s475 + $0x71] sm:$0xff]
          %v676 = vld [vmem:[%s475 + $0x89] sm:$0xff]
          %v677 = vld [vmem:[%s475 + $0x91] sm:$0xff]
          %v678 = vld [vmem:[%s475 + $0xa9] sm:$0xff]
          %v679 = vld [vmem:[%s475 + $0xb1] sm:$0xff]
          %v680 = vld [vmem:[%s475 + $0xc9] sm:$0xff]
          %v681 = vld [vmem:[%s475 + $0xd1] sm:$0xff]
          %v682 = vld [vmem:[%s475 + $0xe9] sm:$0xff]
          %v683 = vld [vmem:[%s475 + $0xf1] sm:$0xff]
          %v684 = vlaneseq
          %v685 = vshrl.u32 %v684, 7
          %v686 = vsub.s32 4, %v685
          %v687 = vrot.slane %v458, %v686
          %v688 = vmul.f32 %v668, %v687
          %v689 = vmul.f32 %v669, %v687
          %v690 = vmul.f32 %v670, %v687
          %v691 = vmul.f32 %v671, %v687
          %v692 = vmul.f32 %v672, %v687
          %v693 = vmul.f32 %v673, %v687
          %v694 = vmul.f32 %v674, %v687
          %v695 = vmul.f32 %v675, %v687
          %v696 = vmul.f32 %v676, %v687
          %v697 = vmul.f32 %v677, %v687
          %v698 = vmul.f32 %v678, %v687
          %v699 = vmul.f32 %v679, %v687
          %v700 = vmul.f32 %v680, %v687
          %v701 = vmul.f32 %v681, %v687
          %v702 = vmul.f32 %v682, %v687
          %v703 = vmul.f32 %v683, %v687
          %v704 = vadd.f32 %v652, %v688
          %v705 = vadd.f32 %v653, %v689
          %v706 = vadd.f32 %v654, %v690
          %v707 = vadd.f32 %v655, %v691
          %v708 = vadd.f32 %v656, %v692
          %v709 = vadd.f32 %v657, %v693
          %v710 = vadd.f32 %v658, %v694
          %v711 = vadd.f32 %v659, %v695
          %v712 = vadd.f32 %v660, %v696
          %v713 = vadd.f32 %v661, %v697
          %v714 = vadd.f32 %v662, %v698
          %v715 = vadd.f32 %v663, %v699
          %v716 = vadd.f32 %v664, %v700
          %v717 = vadd.f32 %v665, %v701
          %v718 = vadd.f32 %v666, %v702
          %v719 = vadd.f32 %v667, %v703
          %v720 = vld [vmem:[%s475 + $0xa] sm:$0xff]
          %v721 = vld [vmem:[%s475 + $0x12] sm:$0xff]
          %v722 = vld [vmem:[%s475 + $0x2a] sm:$0xff]
          %v723 = vld [vmem:[%s475 + $0x32] sm:$0xff]
          %v724 = vld [vmem:[%s475 + $0x4a] sm:$0xff]
          %v725 = vld [vmem:[%s475 + $0x52] sm:$0xff]
          %v726 = vld [vmem:[%s475 + $0x6a] sm:$0xff]
          %v727 = vld [vmem:[%s475 + $0x72] sm:$0xff]
          %v728 = vld [vmem:[%s475 + $0x8a] sm:$0xff]
          %v729 = vld [vmem:[%s475 + $0x92] sm:$0xff]
          %v730 = vld [vmem:[%s475 + $0xaa] sm:$0xff]
          %v731 = vld [vmem:[%s475 + $0xb2] sm:$0xff]
          %v732 = vld [vmem:[%s475 + $0xca] sm:$0xff]
          %v733 = vld [vmem:[%s475 + $0xd2] sm:$0xff]
          %v734 = vld [vmem:[%s475 + $0xea] sm:$0xff]
          %v735 = vld [vmem:[%s475 + $0xf2] sm:$0xff]
          %v736 = vlaneseq
          %v737 = vshrl.u32 %v736, 7
          %v738 = vsub.s32 5, %v737
          %v739 = vrot.slane %v458, %v738
          %v740 = vmul.f32 %v720, %v739
          %v741 = vmul.f32 %v721, %v739
          %v742 = vmul.f32 %v722, %v739
          %v743 = vmul.f32 %v723, %v739
          %v744 = vmul.f32 %v724, %v739
          %v745 = vmul.f32 %v725, %v739
          %v746 = vmul.f32 %v726, %v739
          %v747 = vmul.f32 %v727, %v739
          %v748 = vmul.f32 %v728, %v739
          %v749 = vmul.f32 %v729, %v739
          %v750 = vmul.f32 %v730, %v739
          %v751 = vmul.f32 %v731, %v739
          %v752 = vmul.f32 %v732, %v739
          %v753 = vmul.f32 %v733, %v739
          %v754 = vmul.f32 %v734, %v739
          %v755 = vmul.f32 %v735, %v739
          %v756 = vadd.f32 %v704, %v740
          %v757 = vadd.f32 %v705, %v741
          %v758 = vadd.f32 %v706, %v742
          %v759 = vadd.f32 %v707, %v743
          %v760 = vadd.f32 %v708, %v744
          %v761 = vadd.f32 %v709, %v745
          %v762 = vadd.f32 %v710, %v746
          %v763 = vadd.f32 %v711, %v747
          %v764 = vadd.f32 %v712, %v748
          %v765 = vadd.f32 %v713, %v749
          %v766 = vadd.f32 %v714, %v750
          %v767 = vadd.f32 %v715, %v751
          %v768 = vadd.f32 %v716, %v752
          %v769 = vadd.f32 %v717, %v753
          %v770 = vadd.f32 %v718, %v754
          %v771 = vadd.f32 %v719, %v755
          %v772 = vld [vmem:[%s475 + $0xb] sm:$0xff]
          %v773 = vld [vmem:[%s475 + $0x13] sm:$0xff]
          %v774 = vld [vmem:[%s475 + $0x2b] sm:$0xff]
          %v775 = vld [vmem:[%s475 + $0x33] sm:$0xff]
          %v776 = vld [vmem:[%s475 + $0x4b] sm:$0xff]
          %v777 = vld [vmem:[%s475 + $0x53] sm:$0xff]
          %v778 = vld [vmem:[%s475 + $0x6b] sm:$0xff]
          %v779 = vld [vmem:[%s475 + $0x73] sm:$0xff]
          %v780 = vld [vmem:[%s475 + $0x8b] sm:$0xff]
          %v781 = vld [vmem:[%s475 + $0x93] sm:$0xff]
          %v782 = vld [vmem:[%s475 + $0xab] sm:$0xff]
          %v783 = vld [vmem:[%s475 + $0xb3] sm:$0xff]
          %v784 = vld [vmem:[%s475 + $0xcb] sm:$0xff]
          %v785 = vld [vmem:[%s475 + $0xd3] sm:$0xff]
          %v786 = vld [vmem:[%s475 + $0xeb] sm:$0xff]
          %v787 = vld [vmem:[%s475 + $0xf3] sm:$0xff]
          %v788 = vlaneseq
          %v789 = vshrl.u32 %v788, 7
          %v790 = vsub.s32 6, %v789
          %v791 = vrot.slane %v458, %v790
          %v792 = vmul.f32 %v772, %v791
          %v793 = vmul.f32 %v773, %v791
          %v794 = vmul.f32 %v774, %v791
          %v795 = vmul.f32 %v775, %v791
          %v796 = vmul.f32 %v776, %v791
          %v797 = vmul.f32 %v777, %v791
          %v798 = vmul.f32 %v778, %v791
          %v799 = vmul.f32 %v779, %v791
          %v800 = vmul.f32 %v780, %v791
          %v801 = vmul.f32 %v781, %v791
          %v802 = vmul.f32 %v782, %v791
          %v803 = vmul.f32 %v783, %v791
          %v804 = vmul.f32 %v784, %v791
          %v805 = vmul.f32 %v785, %v791
          %v806 = vmul.f32 %v786, %v791
          %v807 = vmul.f32 %v787, %v791
          %v808 = vadd.f32 %v756, %v792
          %v809 = vadd.f32 %v757, %v793
          %v810 = vadd.f32 %v758, %v794
          %v811 = vadd.f32 %v759, %v795
          %v812 = vadd.f32 %v760, %v796
          %v813 = vadd.f32 %v761, %v797
          %v814 = vadd.f32 %v762, %v798
          %v815 = vadd.f32 %v763, %v799
          %v816 = vadd.f32 %v764, %v800
          %v817 = vadd.f32 %v765, %v801
          %v818 = vadd.f32 %v766, %v802
          %v819 = vadd.f32 %v767, %v803
          %v820 = vadd.f32 %v768, %v804
          %v821 = vadd.f32 %v769, %v805
          %v822 = vadd.f32 %v770, %v806
          %v823 = vadd.f32 %v771, %v807
          %s824 = sadd.s32 %s473, 1
          %s825 = smul.u32 %s824, 32
          %s826 = scalar_lea.vmem [#allocation2], %s825
          %v827 = vld [vmem:[%s826 + $0x5] sm:$0xff]
          %v828 = vld [vmem:[%s826 + $0xd] sm:$0xff]
          %v829 = vld [vmem:[%s826 + $0x25] sm:$0xff]
          %v830 = vld [vmem:[%s826 + $0x2d] sm:$0xff]
          %v831 = vld [vmem:[%s826 + $0x45] sm:$0xff]
          %v832 = vld [vmem:[%s826 + $0x4d] sm:$0xff]
          %v833 = vld [vmem:[%s826 + $0x65] sm:$0xff]
          %v834 = vld [vmem:[%s826 + $0x6d] sm:$0xff]
          %v835 = vld [vmem:[%s826 + $0x85] sm:$0xff]
          %v836 = vld [vmem:[%s826 + $0x8d] sm:$0xff]
          %v837 = vld [vmem:[%s826 + $0xa5] sm:$0xff]
          %v838 = vld [vmem:[%s826 + $0xad] sm:$0xff]
          %v839 = vld [vmem:[%s826 + $0xc5] sm:$0xff]
          %v840 = vld [vmem:[%s826 + $0xcd] sm:$0xff]
          %v841 = vld [vmem:[%s826 + $0xe5] sm:$0xff]
          %v842 = vld [vmem:[%s826 + $0xed] sm:$0xff]
          %v843 = vlaneseq
          %v844 = vshrl.u32 %v843, 7
          %v845 = vsub.s32 7, %v844
          %v846 = vrot.slane %v458, %v845
          %v847 = vmul.f32 %v827, %v846
          %v848 = vmul.f32 %v828, %v846
          %v849 = vmul.f32 %v829, %v846
          %v850 = vmul.f32 %v830, %v846
          %v851 = vmul.f32 %v831, %v846
          %v852 = vmul.f32 %v832, %v846
          %v853 = vmul.f32 %v833, %v846
          %v854 = vmul.f32 %v834, %v846
          %v855 = vmul.f32 %v835, %v846
          %v856 = vmul.f32 %v836, %v846
          %v857 = vmul.f32 %v837, %v846
          %v858 = vmul.f32 %v838, %v846
          %v859 = vmul.f32 %v839, %v846
          %v860 = vmul.f32 %v840, %v846
          %v861 = vmul.f32 %v841, %v846
          %v862 = vmul.f32 %v842, %v846
          %v863 = vadd.f32 %v808, %v847
          %v864 = vadd.f32 %v809, %v848
          %v865 = vadd.f32 %v810, %v849
          %v866 = vadd.f32 %v811, %v850
          %v867 = vadd.f32 %v812, %v851
          %v868 = vadd.f32 %v813, %v852
          %v869 = vadd.f32 %v814, %v853
          %v870 = vadd.f32 %v815, %v854
          %v871 = vadd.f32 %v816, %v855
          %v872 = vadd.f32 %v817, %v856
          %v873 = vadd.f32 %v818, %v857
          %v874 = vadd.f32 %v819, %v858
          %v875 = vadd.f32 %v820, %v859
          %v876 = vadd.f32 %v821, %v860
          %v877 = vadd.f32 %v822, %v861
          %v878 = vadd.f32 %v823, %v862
          %v879 = vld [vmem:[%s826 + $0x6] sm:$0xff]
          %v880 = vld [vmem:[%s826 + $0xe] sm:$0xff]
          %v881 = vld [vmem:[%s826 + $0x26] sm:$0xff]
          %v882 = vld [vmem:[%s826 + $0x2e] sm:$0xff]
          %v883 = vld [vmem:[%s826 + $0x46] sm:$0xff]
          %v884 = vld [vmem:[%s826 + $0x4e] sm:$0xff]
          %v885 = vld [vmem:[%s826 + $0x66] sm:$0xff]
          %v886 = vld [vmem:[%s826 + $0x6e] sm:$0xff]
          %v887 = vld [vmem:[%s826 + $0x86] sm:$0xff]
          %v888 = vld [vmem:[%s826 + $0x8e] sm:$0xff]
          %v889 = vld [vmem:[%s826 + $0xa6] sm:$0xff]
          %v890 = vld [vmem:[%s826 + $0xae] sm:$0xff]
          %v891 = vld [vmem:[%s826 + $0xc6] sm:$0xff]
          %v892 = vld [vmem:[%s826 + $0xce] sm:$0xff]
          %v893 = vld [vmem:[%s826 + $0xe6] sm:$0xff]
          %v894 = vld [vmem:[%s826 + $0xee] sm:$0xff]
          %v895 = vlaneseq
          %v896 = vshrl.u32 %v895, 7
          %v897 = vsub.s32 0, %v896
          %v898 = vrot.slane %v459, %v897
          %v899 = vmul.f32 %v879, %v898
          %v900 = vmul.f32 %v880, %v898
          %v901 = vmul.f32 %v881, %v898
          %v902 = vmul.f32 %v882, %v898
          %v903 = vmul.f32 %v883, %v898
          %v904 = vmul.f32 %v884, %v898
          %v905 = vmul.f32 %v885, %v898
          %v906 = vmul.f32 %v886, %v898
          %v907 = vmul.f32 %v887, %v898
          %v908 = vmul.f32 %v888, %v898
          %v909 = vmul.f32 %v889, %v898
          %v910 = vmul.f32 %v890, %v898
          %v911 = vmul.f32 %v891, %v898
          %v912 = vmul.f32 %v892, %v898
          %v913 = vmul.f32 %v893, %v898
          %v914 = vmul.f32 %v894, %v898
          %v915 = vadd.f32 %v863, %v899
          %v916 = vadd.f32 %v864, %v900
          %v917 = vadd.f32 %v865, %v901
          %v918 = vadd.f32 %v866, %v902
          %v919 = vadd.f32 %v867, %v903
          %v920 = vadd.f32 %v868, %v904
          %v921 = vadd.f32 %v869, %v905
          %v922 = vadd.f32 %v870, %v906
          %v923 = vadd.f32 %v871, %v907
          %v924 = vadd.f32 %v872, %v908
          %v925 = vadd.f32 %v873, %v909
          %v926 = vadd.f32 %v874, %v910
          %v927 = vadd.f32 %v875, %v911
          %v928 = vadd.f32 %v876, %v912
          %v929 = vadd.f32 %v877, %v913
          %v930 = vadd.f32 %v878, %v914
          %v931 = vld [vmem:[%s826 + $0x7] sm:$0xff]
          %v932 = vld [vmem:[%s826 + $0xf] sm:$0xff]
          %v933 = vld [vmem:[%s826 + $0x27] sm:$0xff]
          %v934 = vld [vmem:[%s826 + $0x2f] sm:$0xff]
          %v935 = vld [vmem:[%s826 + $0x47] sm:$0xff]
          %v936 = vld [vmem:[%s826 + $0x4f] sm:$0xff]
          %v937 = vld [vmem:[%s826 + $0x67] sm:$0xff]
          %v938 = vld [vmem:[%s826 + $0x6f] sm:$0xff]
          %v939 = vld [vmem:[%s826 + $0x87] sm:$0xff]
          %v940 = vld [vmem:[%s826 + $0x8f] sm:$0xff]
          %v941 = vld [vmem:[%s826 + $0xa7] sm:$0xff]
          %v942 = vld [vmem:[%s826 + $0xaf] sm:$0xff]
          %v943 = vld [vmem:[%s826 + $0xc7] sm:$0xff]
          %v944 = vld [vmem:[%s826 + $0xcf] sm:$0xff]
          %v945 = vld [vmem:[%s826 + $0xe7] sm:$0xff]
          %v946 = vld [vmem:[%s826 + $0xef] sm:$0xff]
          %v947 = vlaneseq
          %v948 = vshrl.u32 %v947, 7
          %v949 = vsub.s32 1, %v948
          %v950 = vrot.slane %v459, %v949
          %v951 = vmul.f32 %v931, %v950
          %v952 = vmul.f32 %v932, %v950
          %v953 = vmul.f32 %v933, %v950
          %v954 = vmul.f32 %v934, %v950
          %v955 = vmul.f32 %v935, %v950
          %v956 = vmul.f32 %v936, %v950
          %v957 = vmul.f32 %v937, %v950
          %v958 = vmul.f32 %v938, %v950
          %v959 = vmul.f32 %v939, %v950
          %v960 = vmul.f32 %v940, %v950
          %v961 = vmul.f32 %v941, %v950
          %v962 = vmul.f32 %v942, %v950
          %v963 = vmul.f32 %v943, %v950
          %v964 = vmul.f32 %v944, %v950
          %v965 = vmul.f32 %v945, %v950
          %v966 = vmul.f32 %v946, %v950
          %v967 = vadd.f32 %v915, %v951
          %v968 = vadd.f32 %v916, %v952
          %v969 = vadd.f32 %v917, %v953
          %v970 = vadd.f32 %v918, %v954
          %v971 = vadd.f32 %v919, %v955
          %v972 = vadd.f32 %v920, %v956
          %v973 = vadd.f32 %v921, %v957
          %v974 = vadd.f32 %v922, %v958
          %v975 = vadd.f32 %v923, %v959
          %v976 = vadd.f32 %v924, %v960
          %v977 = vadd.f32 %v925, %v961
          %v978 = vadd.f32 %v926, %v962
          %v979 = vadd.f32 %v927, %v963
          %v980 = vadd.f32 %v928, %v964
          %v981 = vadd.f32 %v929, %v965
          %v982 = vadd.f32 %v930, %v966
          %v983 = vld [vmem:[%s826 + $0x8] sm:$0xff]
          %v984 = vld [vmem:[%s826 + $0x10] sm:$0xff]
          %v985 = vld [vmem:[%s826 + $0x28] sm:$0xff]
          %v986 = vld [vmem:[%s826 + $0x30] sm:$0xff]
          %v987 = vld [vmem:[%s826 + $0x48] sm:$0xff]
          %v988 = vld [vmem:[%s826 + $0x50] sm:$0xff]
          %v989 = vld [vmem:[%s826 + $0x68] sm:$0xff]
          %v990 = vld [vmem:[%s826 + $0x70] sm:$0xff]
          %v991 = vld [vmem:[%s826 + $0x88] sm:$0xff]
          %v992 = vld [vmem:[%s826 + $0x90] sm:$0xff]
          %v993 = vld [vmem:[%s826 + $0xa8] sm:$0xff]
          %v994 = vld [vmem:[%s826 + $0xb0] sm:$0xff]
          %v995 = vld [vmem:[%s826 + $0xc8] sm:$0xff]
          %v996 = vld [vmem:[%s826 + $0xd0] sm:$0xff]
          %v997 = vld [vmem:[%s826 + $0xe8] sm:$0xff]
          %v998 = vld [vmem:[%s826 + $0xf0] sm:$0xff]
          %v999 = vlaneseq
          %v1000 = vshrl.u32 %v999, 7
          %v1001 = vsub.s32 2, %v1000
          %v1002 = vrot.slane %v459, %v1001
          %v1003 = vmul.f32 %v983, %v1002
          %v1004 = vmul.f32 %v984, %v1002
          %v1005 = vmul.f32 %v985, %v1002
          %v1006 = vmul.f32 %v986, %v1002
          %v1007 = vmul.f32 %v987, %v1002
          %v1008 = vmul.f32 %v988, %v1002
          %v1009 = vmul.f32 %v989, %v1002
          %v1010 = vmul.f32 %v990, %v1002
          %v1011 = vmul.f32 %v991, %v1002
          %v1012 = vmul.f32 %v992, %v1002
          %v1013 = vmul.f32 %v993, %v1002
          %v1014 = vmul.f32 %v994, %v1002
          %v1015 = vmul.f32 %v995, %v1002
          %v1016 = vmul.f32 %v996, %v1002
          %v1017 = vmul.f32 %v997, %v1002
          %v1018 = vmul.f32 %v998, %v1002
          %v1019 = vadd.f32 %v967, %v1003
          %v1020 = vadd.f32 %v968, %v1004
          %v1021 = vadd.f32 %v969, %v1005
          %v1022 = vadd.f32 %v970, %v1006
          %v1023 = vadd.f32 %v971, %v1007
          %v1024 = vadd.f32 %v972, %v1008
          %v1025 = vadd.f32 %v973, %v1009
          %v1026 = vadd.f32 %v974, %v1010
          %v1027 = vadd.f32 %v975, %v1011
          %v1028 = vadd.f32 %v976, %v1012
          %v1029 = vadd.f32 %v977, %v1013
          %v1030 = vadd.f32 %v978, %v1014
          %v1031 = vadd.f32 %v979, %v1015
          %v1032 = vadd.f32 %v980, %v1016
          %v1033 = vadd.f32 %v981, %v1017
          %v1034 = vadd.f32 %v982, %v1018
          %v1035 = vld [vmem:[%s826 + $0x9] sm:$0xff]
          %v1036 = vld [vmem:[%s826 + $0x11] sm:$0xff]
          %v1037 = vld [vmem:[%s826 + $0x29] sm:$0xff]
          %v1038 = vld [vmem:[%s826 + $0x31] sm:$0xff]
          %v1039 = vld [vmem:[%s826 + $0x49] sm:$0xff]
          %v1040 = vld [vmem:[%s826 + $0x51] sm:$0xff]
          %v1041 = vld [vmem:[%s826 + $0x69] sm:$0xff]
          %v1042 = vld [vmem:[%s826 + $0x71] sm:$0xff]
          %v1043 = vld [vmem:[%s826 + $0x89] sm:$0xff]
          %v1044 = vld [vmem:[%s826 + $0x91] sm:$0xff]
          %v1045 = vld [vmem:[%s826 + $0xa9] sm:$0xff]
          %v1046 = vld [vmem:[%s826 + $0xb1] sm:$0xff]
          %v1047 = vld [vmem:[%s826 + $0xc9] sm:$0xff]
          %v1048 = vld [vmem:[%s826 + $0xd1] sm:$0xff]
          %v1049 = vld [vmem:[%s826 + $0xe9] sm:$0xff]
          %v1050 = vld [vmem:[%s826 + $0xf1] sm:$0xff]
          %v1051 = vlaneseq
          %v1052 = vshrl.u32 %v1051, 7
          %v1053 = vsub.s32 3, %v1052
          %v1054 = vrot.slane %v459, %v1053
          %v1055 = vmul.f32 %v1035, %v1054
          %v1056 = vmul.f32 %v1036, %v1054
          %v1057 = vmul.f32 %v1037, %v1054
          %v1058 = vmul.f32 %v1038, %v1054
          %v1059 = vmul.f32 %v1039, %v1054
          %v1060 = vmul.f32 %v1040, %v1054
          %v1061 = vmul.f32 %v1041, %v1054
          %v1062 = vmul.f32 %v1042, %v1054
          %v1063 = vmul.f32 %v1043, %v1054
          %v1064 = vmul.f32 %v1044, %v1054
          %v1065 = vmul.f32 %v1045, %v1054
          %v1066 = vmul.f32 %v1046, %v1054
          %v1067 = vmul.f32 %v1047, %v1054
          %v1068 = vmul.f32 %v1048, %v1054
          %v1069 = vmul.f32 %v1049, %v1054
          %v1070 = vmul.f32 %v1050, %v1054
          %v1071 = vadd.f32 %v1019, %v1055
          %v1072 = vadd.f32 %v1020, %v1056
          %v1073 = vadd.f32 %v1021, %v1057
          %v1074 = vadd.f32 %v1022, %v1058
          %v1075 = vadd.f32 %v1023, %v1059
          %v1076 = vadd.f32 %v1024, %v1060
          %v1077 = vadd.f32 %v1025, %v1061
          %v1078 = vadd.f32 %v1026, %v1062
          %v1079 = vadd.f32 %v1027, %v1063
          %v1080 = vadd.f32 %v1028, %v1064
          %v1081 = vadd.f32 %v1029, %v1065
          %v1082 = vadd.f32 %v1030, %v1066
          %v1083 = vadd.f32 %v1031, %v1067
          %v1084 = vadd.f32 %v1032, %v1068
          %v1085 = vadd.f32 %v1033, %v1069
          %v1086 = vadd.f32 %v1034, %v1070
          %v1087 = vld [vmem:[%s826 + $0xa] sm:$0xff]
          %v1088 = vld [vmem:[%s826 + $0x12] sm:$0xff]
          %v1089 = vld [vmem:[%s826 + $0x2a] sm:$0xff]
          %v1090 = vld [vmem:[%s826 + $0x32] sm:$0xff]
          %v1091 = vld [vmem:[%s826 + $0x4a] sm:$0xff]
          %v1092 = vld [vmem:[%s826 + $0x52] sm:$0xff]
          %v1093 = vld [vmem:[%s826 + $0x6a] sm:$0xff]
          %v1094 = vld [vmem:[%s826 + $0x72] sm:$0xff]
          %v1095 = vld [vmem:[%s826 + $0x8a] sm:$0xff]
          %v1096 = vld [vmem:[%s826 + $0x92] sm:$0xff]
          %v1097 = vld [vmem:[%s826 + $0xaa] sm:$0xff]
          %v1098 = vld [vmem:[%s826 + $0xb2] sm:$0xff]
          %v1099 = vld [vmem:[%s826 + $0xca] sm:$0xff]
          %v1100 = vld [vmem:[%s826 + $0xd2] sm:$0xff]
          %v1101 = vld [vmem:[%s826 + $0xea] sm:$0xff]
          %v1102 = vld [vmem:[%s826 + $0xf2] sm:$0xff]
          %v1103 = vlaneseq
          %v1104 = vshrl.u32 %v1103, 7
          %v1105 = vsub.s32 4, %v1104
          %v1106 = vrot.slane %v459, %v1105
          %v1107 = vmul.f32 %v1087, %v1106
          %v1108 = vmul.f32 %v1088, %v1106
          %v1109 = vmul.f32 %v1089, %v1106
          %v1110 = vmul.f32 %v1090, %v1106
          %v1111 = vmul.f32 %v1091, %v1106
          %v1112 = vmul.f32 %v1092, %v1106
          %v1113 = vmul.f32 %v1093, %v1106
          %v1114 = vmul.f32 %v1094, %v1106
          %v1115 = vmul.f32 %v1095, %v1106
          %v1116 = vmul.f32 %v1096, %v1106
          %v1117 = vmul.f32 %v1097, %v1106
          %v1118 = vmul.f32 %v1098, %v1106
          %v1119 = vmul.f32 %v1099, %v1106
          %v1120 = vmul.f32 %v1100, %v1106
          %v1121 = vmul.f32 %v1101, %v1106
          %v1122 = vmul.f32 %v1102, %v1106
          %v1123 = vadd.f32 %v1071, %v1107
          %v1124 = vadd.f32 %v1072, %v1108
          %v1125 = vadd.f32 %v1073, %v1109
          %v1126 = vadd.f32 %v1074, %v1110
          %v1127 = vadd.f32 %v1075, %v1111
          %v1128 = vadd.f32 %v1076, %v1112
          %v1129 = vadd.f32 %v1077, %v1113
          %v1130 = vadd.f32 %v1078, %v1114
          %v1131 = vadd.f32 %v1079, %v1115
          %v1132 = vadd.f32 %v1080, %v1116
          %v1133 = vadd.f32 %v1081, %v1117
          %v1134 = vadd.f32 %v1082, %v1118
          %v1135 = vadd.f32 %v1083, %v1119
          %v1136 = vadd.f32 %v1084, %v1120
          %v1137 = vadd.f32 %v1085, %v1121
          %v1138 = vadd.f32 %v1086, %v1122
          %v1139 = vld [vmem:[%s826 + $0xb] sm:$0xff]
          %v1140 = vld [vmem:[%s826 + $0x13] sm:$0xff]
          %v1141 = vld [vmem:[%s826 + $0x2b] sm:$0xff]
          %v1142 = vld [vmem:[%s826 + $0x33] sm:$0xff]
          %v1143 = vld [vmem:[%s826 + $0x4b] sm:$0xff]
          %v1144 = vld [vmem:[%s826 + $0x53] sm:$0xff]
          %v1145 = vld [vmem:[%s826 + $0x6b] sm:$0xff]
          %v1146 = vld [vmem:[%s826 + $0x73] sm:$0xff]
          %v1147 = vld [vmem:[%s826 + $0x8b] sm:$0xff]
          %v1148 = vld [vmem:[%s826 + $0x93] sm:$0xff]
          %v1149 = vld [vmem:[%s826 + $0xab] sm:$0xff]
          %v1150 = vld [vmem:[%s826 + $0xb3] sm:$0xff]
          %v1151 = vld [vmem:[%s826 + $0xcb] sm:$0xff]
          %v1152 = vld [vmem:[%s826 + $0xd3] sm:$0xff]
          %v1153 = vld [vmem:[%s826 + $0xeb] sm:$0xff]
          %v1154 = vld [vmem:[%s826 + $0xf3] sm:$0xff]
          %v1155 = vlaneseq
          %v1156 = vshrl.u32 %v1155, 7
          %v1157 = vsub.s32 5, %v1156
          %v1158 = vrot.slane %v459, %v1157
          %v1159 = vmul.f32 %v1139, %v1158
          %v1160 = vmul.f32 %v1140, %v1158
          %v1161 = vmul.f32 %v1141, %v1158
          %v1162 = vmul.f32 %v1142, %v1158
          %v1163 = vmul.f32 %v1143, %v1158
          %v1164 = vmul.f32 %v1144, %v1158
          %v1165 = vmul.f32 %v1145, %v1158
          %v1166 = vmul.f32 %v1146, %v1158
          %v1167 = vmul.f32 %v1147, %v1158
          %v1168 = vmul.f32 %v1148, %v1158
          %v1169 = vmul.f32 %v1149, %v1158
          %v1170 = vmul.f32 %v1150, %v1158
          %v1171 = vmul.f32 %v1151, %v1158
          %v1172 = vmul.f32 %v1152, %v1158
          %v1173 = vmul.f32 %v1153, %v1158
          %v1174 = vmul.f32 %v1154, %v1158
          %v1175 = vadd.f32 %v1123, %v1159
          %v1176 = vadd.f32 %v1124, %v1160
          %v1177 = vadd.f32 %v1125, %v1161
          %v1178 = vadd.f32 %v1126, %v1162
          %v1179 = vadd.f32 %v1127, %v1163
          %v1180 = vadd.f32 %v1128, %v1164
          %v1181 = vadd.f32 %v1129, %v1165
          %v1182 = vadd.f32 %v1130, %v1166
          %v1183 = vadd.f32 %v1131, %v1167
          %v1184 = vadd.f32 %v1132, %v1168
          %v1185 = vadd.f32 %v1133, %v1169
          %v1186 = vadd.f32 %v1134, %v1170
          %v1187 = vadd.f32 %v1135, %v1171
          %v1188 = vadd.f32 %v1136, %v1172
          %v1189 = vadd.f32 %v1137, %v1173
          %v1190 = vadd.f32 %v1138, %v1174
          %s1191 = sadd.s32 %s473, 2
          %s1192 = smul.u32 %s1191, 32
          %s1193 = scalar_lea.vmem [#allocation2], %s1192
          %v1194 = vld [vmem:[%s1193 + $0x5] sm:$0xff]
          %v1195 = vld [vmem:[%s1193 + $0xd] sm:$0xff]
          %v1196 = vld [vmem:[%s1193 + $0x25] sm:$0xff]
          %v1197 = vld [vmem:[%s1193 + $0x2d] sm:$0xff]
          %v1198 = vld [vmem:[%s1193 + $0x45] sm:$0xff]
          %v1199 = vld [vmem:[%s1193 + $0x4d] sm:$0xff]
          %v1200 = vld [vmem:[%s1193 + $0x65] sm:$0xff]
          %v1201 = vld [vmem:[%s1193 + $0x6d] sm:$0xff]
          %v1202 = vld [vmem:[%s1193 + $0x85] sm:$0xff]
          %v1203 = vld [vmem:[%s1193 + $0x8d] sm:$0xff]
          %v1204 = vld [vmem:[%s1193 + $0xa5] sm:$0xff]
          %v1205 = vld [vmem:[%s1193 + $0xad] sm:$0xff]
          %v1206 = vld [vmem:[%s1193 + $0xc5] sm:$0xff]
          %v1207 = vld [vmem:[%s1193 + $0xcd] sm:$0xff]
          %v1208 = vld [vmem:[%s1193 + $0xe5] sm:$0xff]
          %v1209 = vld [vmem:[%s1193 + $0xed] sm:$0xff]
          %v1210 = vlaneseq
          %v1211 = vshrl.u32 %v1210, 7
          %v1212 = vsub.s32 6, %v1211
          %v1213 = vrot.slane %v459, %v1212
          %v1214 = vmul.f32 %v1194, %v1213
          %v1215 = vmul.f32 %v1195, %v1213
          %v1216 = vmul.f32 %v1196, %v1213
          %v1217 = vmul.f32 %v1197, %v1213
          %v1218 = vmul.f32 %v1198, %v1213
          %v1219 = vmul.f32 %v1199, %v1213
          %v1220 = vmul.f32 %v1200, %v1213
          %v1221 = vmul.f32 %v1201, %v1213
          %v1222 = vmul.f32 %v1202, %v1213
          %v1223 = vmul.f32 %v1203, %v1213
          %v1224 = vmul.f32 %v1204, %v1213
          %v1225 = vmul.f32 %v1205, %v1213
          %v1226 = vmul.f32 %v1206, %v1213
          %v1227 = vmul.f32 %v1207, %v1213
          %v1228 = vmul.f32 %v1208, %v1213
          %v1229 = vmul.f32 %v1209, %v1213
          %v1230 = vadd.f32 %v1175, %v1214
          %v1231 = vadd.f32 %v1176, %v1215
          %v1232 = vadd.f32 %v1177, %v1216
          %v1233 = vadd.f32 %v1178, %v1217
          %v1234 = vadd.f32 %v1179, %v1218
          %v1235 = vadd.f32 %v1180, %v1219
          %v1236 = vadd.f32 %v1181, %v1220
          %v1237 = vadd.f32 %v1182, %v1221
          %v1238 = vadd.f32 %v1183, %v1222
          %v1239 = vadd.f32 %v1184, %v1223
          %v1240 = vadd.f32 %v1185, %v1224
          %v1241 = vadd.f32 %v1186, %v1225
          %v1242 = vadd.f32 %v1187, %v1226
          %v1243 = vadd.f32 %v1188, %v1227
          %v1244 = vadd.f32 %v1189, %v1228
          %v1245 = vadd.f32 %v1190, %v1229
          %v1246 = vld [vmem:[%s1193 + $0x6] sm:$0xff]
          %v1247 = vld [vmem:[%s1193 + $0xe] sm:$0xff]
          %v1248 = vld [vmem:[%s1193 + $0x26] sm:$0xff]
          %v1249 = vld [vmem:[%s1193 + $0x2e] sm:$0xff]
          %v1250 = vld [vmem:[%s1193 + $0x46] sm:$0xff]
          %v1251 = vld [vmem:[%s1193 + $0x4e] sm:$0xff]
          %v1252 = vld [vmem:[%s1193 + $0x66] sm:$0xff]
          %v1253 = vld [vmem:[%s1193 + $0x6e] sm:$0xff]
          %v1254 = vld [vmem:[%s1193 + $0x86] sm:$0xff]
          %v1255 = vld [vmem:[%s1193 + $0x8e] sm:$0xff]
          %v1256 = vld [vmem:[%s1193 + $0xa6] sm:$0xff]
          %v1257 = vld [vmem:[%s1193 + $0xae] sm:$0xff]
          %v1258 = vld [vmem:[%s1193 + $0xc6] sm:$0xff]
          %v1259 = vld [vmem:[%s1193 + $0xce] sm:$0xff]
          %v1260 = vld [vmem:[%s1193 + $0xe6] sm:$0xff]
          %v1261 = vld [vmem:[%s1193 + $0xee] sm:$0xff]
          %v1262 = vlaneseq
          %v1263 = vshrl.u32 %v1262, 7
          %v1264 = vsub.s32 7, %v1263
          %v1265 = vrot.slane %v459, %v1264
          %v1266 = vmul.f32 %v1246, %v1265
          %v1267 = vmul.f32 %v1247, %v1265
          %v1268 = vmul.f32 %v1248, %v1265
          %v1269 = vmul.f32 %v1249, %v1265
          %v1270 = vmul.f32 %v1250, %v1265
          %v1271 = vmul.f32 %v1251, %v1265
          %v1272 = vmul.f32 %v1252, %v1265
          %v1273 = vmul.f32 %v1253, %v1265
          %v1274 = vmul.f32 %v1254, %v1265
          %v1275 = vmul.f32 %v1255, %v1265
          %v1276 = vmul.f32 %v1256, %v1265
          %v1277 = vmul.f32 %v1257, %v1265
          %v1278 = vmul.f32 %v1258, %v1265
          %v1279 = vmul.f32 %v1259, %v1265
          %v1280 = vmul.f32 %v1260, %v1265
          %v1281 = vmul.f32 %v1261, %v1265
          %v1282 = vadd.f32 %v1230, %v1266
          %v1283 = vadd.f32 %v1231, %v1267
          %v1284 = vadd.f32 %v1232, %v1268
          %v1285 = vadd.f32 %v1233, %v1269
          %v1286 = vadd.f32 %v1234, %v1270
          %v1287 = vadd.f32 %v1235, %v1271
          %v1288 = vadd.f32 %v1236, %v1272
          %v1289 = vadd.f32 %v1237, %v1273
          %v1290 = vadd.f32 %v1238, %v1274
          %v1291 = vadd.f32 %v1239, %v1275
          %v1292 = vadd.f32 %v1240, %v1276
          %v1293 = vadd.f32 %v1241, %v1277
          %v1294 = vadd.f32 %v1242, %v1278
          %v1295 = vadd.f32 %v1243, %v1279
          %v1296 = vadd.f32 %v1244, %v1280
          %v1297 = vadd.f32 %v1245, %v1281
          %v1298 = vld [vmem:[%s1193 + $0x7] sm:$0xff]
          %v1299 = vld [vmem:[%s1193 + $0xf] sm:$0xff]
          %v1300 = vld [vmem:[%s1193 + $0x27] sm:$0xff]
          %v1301 = vld [vmem:[%s1193 + $0x2f] sm:$0xff]
          %v1302 = vld [vmem:[%s1193 + $0x47] sm:$0xff]
          %v1303 = vld [vmem:[%s1193 + $0x4f] sm:$0xff]
          %v1304 = vld [vmem:[%s1193 + $0x67] sm:$0xff]
          %v1305 = vld [vmem:[%s1193 + $0x6f] sm:$0xff]
          %v1306 = vld [vmem:[%s1193 + $0x87] sm:$0xff]
          %v1307 = vld [vmem:[%s1193 + $0x8f] sm:$0xff]
          %v1308 = vld [vmem:[%s1193 + $0xa7] sm:$0xff]
          %v1309 = vld [vmem:[%s1193 + $0xaf] sm:$0xff]
          %v1310 = vld [vmem:[%s1193 + $0xc7] sm:$0xff]
          %v1311 = vld [vmem:[%s1193 + $0xcf] sm:$0xff]
          %v1312 = vld [vmem:[%s1193 + $0xe7] sm:$0xff]
          %v1313 = vld [vmem:[%s1193 + $0xef] sm:$0xff]
          %v1314 = vlaneseq
          %v1315 = vshrl.u32 %v1314, 7
          %v1316 = vsub.s32 0, %v1315
          %v1317 = vrot.slane %v460, %v1316
          %v1318 = vmul.f32 %v1298, %v1317
          %v1319 = vmul.f32 %v1299, %v1317
          %v1320 = vmul.f32 %v1300, %v1317
          %v1321 = vmul.f32 %v1301, %v1317
          %v1322 = vmul.f32 %v1302, %v1317
          %v1323 = vmul.f32 %v1303, %v1317
          %v1324 = vmul.f32 %v1304, %v1317
          %v1325 = vmul.f32 %v1305, %v1317
          %v1326 = vmul.f32 %v1306, %v1317
          %v1327 = vmul.f32 %v1307, %v1317
          %v1328 = vmul.f32 %v1308, %v1317
          %v1329 = vmul.f32 %v1309, %v1317
          %v1330 = vmul.f32 %v1310, %v1317
          %v1331 = vmul.f32 %v1311, %v1317
          %v1332 = vmul.f32 %v1312, %v1317
          %v1333 = vmul.f32 %v1313, %v1317
          %v1334 = vadd.f32 %v1282, %v1318
          %v1335 = vadd.f32 %v1283, %v1319
          %v1336 = vadd.f32 %v1284, %v1320
          %v1337 = vadd.f32 %v1285, %v1321
          %v1338 = vadd.f32 %v1286, %v1322
          %v1339 = vadd.f32 %v1287, %v1323
          %v1340 = vadd.f32 %v1288, %v1324
          %v1341 = vadd.f32 %v1289, %v1325
          %v1342 = vadd.f32 %v1290, %v1326
          %v1343 = vadd.f32 %v1291, %v1327
          %v1344 = vadd.f32 %v1292, %v1328
          %v1345 = vadd.f32 %v1293, %v1329
          %v1346 = vadd.f32 %v1294, %v1330
          %v1347 = vadd.f32 %v1295, %v1331
          %v1348 = vadd.f32 %v1296, %v1332
          %v1349 = vadd.f32 %v1297, %v1333
          %v1350 = vld [vmem:[%s1193 + $0x8] sm:$0xff]
          %v1351 = vld [vmem:[%s1193 + $0x10] sm:$0xff]
          %v1352 = vld [vmem:[%s1193 + $0x28] sm:$0xff]
          %v1353 = vld [vmem:[%s1193 + $0x30] sm:$0xff]
          %v1354 = vld [vmem:[%s1193 + $0x48] sm:$0xff]
          %v1355 = vld [vmem:[%s1193 + $0x50] sm:$0xff]
          %v1356 = vld [vmem:[%s1193 + $0x68] sm:$0xff]
          %v1357 = vld [vmem:[%s1193 + $0x70] sm:$0xff]
          %v1358 = vld [vmem:[%s1193 + $0x88] sm:$0xff]
          %v1359 = vld [vmem:[%s1193 + $0x90] sm:$0xff]
          %v1360 = vld [vmem:[%s1193 + $0xa8] sm:$0xff]
          %v1361 = vld [vmem:[%s1193 + $0xb0] sm:$0xff]
          %v1362 = vld [vmem:[%s1193 + $0xc8] sm:$0xff]
          %v1363 = vld [vmem:[%s1193 + $0xd0] sm:$0xff]
          %v1364 = vld [vmem:[%s1193 + $0xe8] sm:$0xff]
          %v1365 = vld [vmem:[%s1193 + $0xf0] sm:$0xff]
          %v1366 = vlaneseq
          %v1367 = vshrl.u32 %v1366, 7
          %v1368 = vsub.s32 1, %v1367
          %v1369 = vrot.slane %v460, %v1368
          %v1370 = vmul.f32 %v1350, %v1369
          %v1371 = vmul.f32 %v1351, %v1369
          %v1372 = vmul.f32 %v1352, %v1369
          %v1373 = vmul.f32 %v1353, %v1369
          %v1374 = vmul.f32 %v1354, %v1369
          %v1375 = vmul.f32 %v1355, %v1369
          %v1376 = vmul.f32 %v1356, %v1369
          %v1377 = vmul.f32 %v1357, %v1369
          %v1378 = vmul.f32 %v1358, %v1369
          %v1379 = vmul.f32 %v1359, %v1369
          %v1380 = vmul.f32 %v1360, %v1369
          %v1381 = vmul.f32 %v1361, %v1369
          %v1382 = vmul.f32 %v1362, %v1369
          %v1383 = vmul.f32 %v1363, %v1369
          %v1384 = vmul.f32 %v1364, %v1369
          %v1385 = vmul.f32 %v1365, %v1369
          %v1386 = vadd.f32 %v1334, %v1370
          %v1387 = vadd.f32 %v1335, %v1371
          %v1388 = vadd.f32 %v1336, %v1372
          %v1389 = vadd.f32 %v1337, %v1373
          %v1390 = vadd.f32 %v1338, %v1374
          %v1391 = vadd.f32 %v1339, %v1375
          %v1392 = vadd.f32 %v1340, %v1376
          %v1393 = vadd.f32 %v1341, %v1377
          %v1394 = vadd.f32 %v1342, %v1378
          %v1395 = vadd.f32 %v1343, %v1379
          %v1396 = vadd.f32 %v1344, %v1380
          %v1397 = vadd.f32 %v1345, %v1381
          %v1398 = vadd.f32 %v1346, %v1382
          %v1399 = vadd.f32 %v1347, %v1383
          %v1400 = vadd.f32 %v1348, %v1384
          %v1401 = vadd.f32 %v1349, %v1385
          %v1402 = vld [vmem:[%s1193 + $0x9] sm:$0xff]
          %v1403 = vld [vmem:[%s1193 + $0x11] sm:$0xff]
          %v1404 = vld [vmem:[%s1193 + $0x29] sm:$0xff]
          %v1405 = vld [vmem:[%s1193 + $0x31] sm:$0xff]
          %v1406 = vld [vmem:[%s1193 + $0x49] sm:$0xff]
          %v1407 = vld [vmem:[%s1193 + $0x51] sm:$0xff]
          %v1408 = vld [vmem:[%s1193 + $0x69] sm:$0xff]
          %v1409 = vld [vmem:[%s1193 + $0x71] sm:$0xff]
          %v1410 = vld [vmem:[%s1193 + $0x89] sm:$0xff]
          %v1411 = vld [vmem:[%s1193 + $0x91] sm:$0xff]
          %v1412 = vld [vmem:[%s1193 + $0xa9] sm:$0xff]
          %v1413 = vld [vmem:[%s1193 + $0xb1] sm:$0xff]
          %v1414 = vld [vmem:[%s1193 + $0xc9] sm:$0xff]
          %v1415 = vld [vmem:[%s1193 + $0xd1] sm:$0xff]
          %v1416 = vld [vmem:[%s1193 + $0xe9] sm:$0xff]
          %v1417 = vld [vmem:[%s1193 + $0xf1] sm:$0xff]
          %v1418 = vlaneseq
          %v1419 = vshrl.u32 %v1418, 7
          %v1420 = vsub.s32 2, %v1419
          %v1421 = vrot.slane %v460, %v1420
          %v1422 = vmul.f32 %v1402, %v1421
          %v1423 = vmul.f32 %v1403, %v1421
          %v1424 = vmul.f32 %v1404, %v1421
          %v1425 = vmul.f32 %v1405, %v1421
          %v1426 = vmul.f32 %v1406, %v1421
          %v1427 = vmul.f32 %v1407, %v1421
          %v1428 = vmul.f32 %v1408, %v1421
          %v1429 = vmul.f32 %v1409, %v1421
          %v1430 = vmul.f32 %v1410, %v1421
          %v1431 = vmul.f32 %v1411, %v1421
          %v1432 = vmul.f32 %v1412, %v1421
          %v1433 = vmul.f32 %v1413, %v1421
          %v1434 = vmul.f32 %v1414, %v1421
          %v1435 = vmul.f32 %v1415, %v1421
          %v1436 = vmul.f32 %v1416, %v1421
          %v1437 = vmul.f32 %v1417, %v1421
          %v1438 = vadd.f32 %v1386, %v1422
          %v1439 = vadd.f32 %v1387, %v1423
          %v1440 = vadd.f32 %v1388, %v1424
          %v1441 = vadd.f32 %v1389, %v1425
          %v1442 = vadd.f32 %v1390, %v1426
          %v1443 = vadd.f32 %v1391, %v1427
          %v1444 = vadd.f32 %v1392, %v1428
          %v1445 = vadd.f32 %v1393, %v1429
          %v1446 = vadd.f32 %v1394, %v1430
          %v1447 = vadd.f32 %v1395, %v1431
          %v1448 = vadd.f32 %v1396, %v1432
          %v1449 = vadd.f32 %v1397, %v1433
          %v1450 = vadd.f32 %v1398, %v1434
          %v1451 = vadd.f32 %v1399, %v1435
          %v1452 = vadd.f32 %v1400, %v1436
          %v1453 = vadd.f32 %v1401, %v1437
          %v1454 = vld [vmem:[%s1193 + $0xa] sm:$0xff]
          %v1455 = vld [vmem:[%s1193 + $0x12] sm:$0xff]
          %v1456 = vld [vmem:[%s1193 + $0x2a] sm:$0xff]
          %v1457 = vld [vmem:[%s1193 + $0x32] sm:$0xff]
          %v1458 = vld [vmem:[%s1193 + $0x4a] sm:$0xff]
          %v1459 = vld [vmem:[%s1193 + $0x52] sm:$0xff]
          %v1460 = vld [vmem:[%s1193 + $0x6a] sm:$0xff]
          %v1461 = vld [vmem:[%s1193 + $0x72] sm:$0xff]
          %v1462 = vld [vmem:[%s1193 + $0x8a] sm:$0xff]
          %v1463 = vld [vmem:[%s1193 + $0x92] sm:$0xff]
          %v1464 = vld [vmem:[%s1193 + $0xaa] sm:$0xff]
          %v1465 = vld [vmem:[%s1193 + $0xb2] sm:$0xff]
          %v1466 = vld [vmem:[%s1193 + $0xca] sm:$0xff]
          %v1467 = vld [vmem:[%s1193 + $0xd2] sm:$0xff]
          %v1468 = vld [vmem:[%s1193 + $0xea] sm:$0xff]
          %v1469 = vld [vmem:[%s1193 + $0xf2] sm:$0xff]
          %v1470 = vlaneseq
          %v1471 = vshrl.u32 %v1470, 7
          %v1472 = vsub.s32 3, %v1471
          %v1473 = vrot.slane %v460, %v1472
          %v1474 = vmul.f32 %v1454, %v1473
          %v1475 = vmul.f32 %v1455, %v1473
          %v1476 = vmul.f32 %v1456, %v1473
          %v1477 = vmul.f32 %v1457, %v1473
          %v1478 = vmul.f32 %v1458, %v1473
          %v1479 = vmul.f32 %v1459, %v1473
          %v1480 = vmul.f32 %v1460, %v1473
          %v1481 = vmul.f32 %v1461, %v1473
          %v1482 = vmul.f32 %v1462, %v1473
          %v1483 = vmul.f32 %v1463, %v1473
          %v1484 = vmul.f32 %v1464, %v1473
          %v1485 = vmul.f32 %v1465, %v1473
          %v1486 = vmul.f32 %v1466, %v1473
          %v1487 = vmul.f32 %v1467, %v1473
          %v1488 = vmul.f32 %v1468, %v1473
          %v1489 = vmul.f32 %v1469, %v1473
          %v1490 = vadd.f32 %v1438, %v1474
          %v1491 = vadd.f32 %v1439, %v1475
          %v1492 = vadd.f32 %v1440, %v1476
          %v1493 = vadd.f32 %v1441, %v1477
          %v1494 = vadd.f32 %v1442, %v1478
          %v1495 = vadd.f32 %v1443, %v1479
          %v1496 = vadd.f32 %v1444, %v1480
          %v1497 = vadd.f32 %v1445, %v1481
          %v1498 = vadd.f32 %v1446, %v1482
          %v1499 = vadd.f32 %v1447, %v1483
          %v1500 = vadd.f32 %v1448, %v1484
          %v1501 = vadd.f32 %v1449, %v1485
          %v1502 = vadd.f32 %v1450, %v1486
          %v1503 = vadd.f32 %v1451, %v1487
          %v1504 = vadd.f32 %v1452, %v1488
          %v1505 = vadd.f32 %v1453, %v1489
          %v1506 = vld [vmem:[%s1193 + $0xb] sm:$0xff]
          %v1507 = vld [vmem:[%s1193 + $0x13] sm:$0xff]
          %v1508 = vld [vmem:[%s1193 + $0x2b] sm:$0xff]
          %v1509 = vld [vmem:[%s1193 + $0x33] sm:$0xff]
          %v1510 = vld [vmem:[%s1193 + $0x4b] sm:$0xff]
          %v1511 = vld [vmem:[%s1193 + $0x53] sm:$0xff]
          %v1512 = vld [vmem:[%s1193 + $0x6b] sm:$0xff]
          %v1513 = vld [vmem:[%s1193 + $0x73] sm:$0xff]
          %v1514 = vld [vmem:[%s1193 + $0x8b] sm:$0xff]
          %v1515 = vld [vmem:[%s1193 + $0x93] sm:$0xff]
          %v1516 = vld [vmem:[%s1193 + $0xab] sm:$0xff]
          %v1517 = vld [vmem:[%s1193 + $0xb3] sm:$0xff]
          %v1518 = vld [vmem:[%s1193 + $0xcb] sm:$0xff]
          %v1519 = vld [vmem:[%s1193 + $0xd3] sm:$0xff]
          %v1520 = vld [vmem:[%s1193 + $0xeb] sm:$0xff]
          %v1521 = vld [vmem:[%s1193 + $0xf3] sm:$0xff]
          %v1522 = vlaneseq
          %v1523 = vshrl.u32 %v1522, 7
          %v1524 = vsub.s32 4, %v1523
          %v1525 = vrot.slane %v460, %v1524
          %v1526 = vmul.f32 %v1506, %v1525
          %v1527 = vmul.f32 %v1507, %v1525
          %v1528 = vmul.f32 %v1508, %v1525
          %v1529 = vmul.f32 %v1509, %v1525
          %v1530 = vmul.f32 %v1510, %v1525
          %v1531 = vmul.f32 %v1511, %v1525
          %v1532 = vmul.f32 %v1512, %v1525
          %v1533 = vmul.f32 %v1513, %v1525
          %v1534 = vmul.f32 %v1514, %v1525
          %v1535 = vmul.f32 %v1515, %v1525
          %v1536 = vmul.f32 %v1516, %v1525
          %v1537 = vmul.f32 %v1517, %v1525
          %v1538 = vmul.f32 %v1518, %v1525
          %v1539 = vmul.f32 %v1519, %v1525
          %v1540 = vmul.f32 %v1520, %v1525
          %v1541 = vmul.f32 %v1521, %v1525
          %v1542 = vadd.f32 %v1490, %v1526
          %v1543 = vadd.f32 %v1491, %v1527
          %v1544 = vadd.f32 %v1492, %v1528
          %v1545 = vadd.f32 %v1493, %v1529
          %v1546 = vadd.f32 %v1494, %v1530
          %v1547 = vadd.f32 %v1495, %v1531
          %v1548 = vadd.f32 %v1496, %v1532
          %v1549 = vadd.f32 %v1497, %v1533
          %v1550 = vadd.f32 %v1498, %v1534
          %v1551 = vadd.f32 %v1499, %v1535
          %v1552 = vadd.f32 %v1500, %v1536
          %v1553 = vadd.f32 %v1501, %v1537
          %v1554 = vadd.f32 %v1502, %v1538
          %v1555 = vadd.f32 %v1503, %v1539
          %v1556 = vadd.f32 %v1504, %v1540
          %v1557 = vadd.f32 %v1505, %v1541
          %s1558 = sadd.s32 %s473, 3
          %s1559 = smul.u32 %s1558, 32
          %s1560 = scalar_lea.vmem [#allocation2], %s1559
          %v1561 = vld [vmem:[%s1560 + $0x5] sm:$0xff]
          %v1562 = vld [vmem:[%s1560 + $0xd] sm:$0xff]
          %v1563 = vld [vmem:[%s1560 + $0x25] sm:$0xff]
          %v1564 = vld [vmem:[%s1560 + $0x2d] sm:$0xff]
          %v1565 = vld [vmem:[%s1560 + $0x45] sm:$0xff]
          %v1566 = vld [vmem:[%s1560 + $0x4d] sm:$0xff]
          %v1567 = vld [vmem:[%s1560 + $0x65] sm:$0xff]
          %v1568 = vld [vmem:[%s1560 + $0x6d] sm:$0xff]
          %v1569 = vld [vmem:[%s1560 + $0x85] sm:$0xff]
          %v1570 = vld [vmem:[%s1560 + $0x8d] sm:$0xff]
          %v1571 = vld [vmem:[%s1560 + $0xa5] sm:$0xff]
          %v1572 = vld [vmem:[%s1560 + $0xad] sm:$0xff]
          %v1573 = vld [vmem:[%s1560 + $0xc5] sm:$0xff]
          %v1574 = vld [vmem:[%s1560 + $0xcd] sm:$0xff]
          %v1575 = vld [vmem:[%s1560 + $0xe5] sm:$0xff]
          %v1576 = vld [vmem:[%s1560 + $0xed] sm:$0xff]
          %v1577 = vlaneseq
          %v1578 = vshrl.u32 %v1577, 7
          %v1579 = vsub.s32 5, %v1578
          %v1580 = vrot.slane %v460, %v1579
          %v1581 = vmul.f32 %v1561, %v1580
          %v1582 = vmul.f32 %v1562, %v1580
          %v1583 = vmul.f32 %v1563, %v1580
          %v1584 = vmul.f32 %v1564, %v1580
          %v1585 = vmul.f32 %v1565, %v1580
          %v1586 = vmul.f32 %v1566, %v1580
          %v1587 = vmul.f32 %v1567, %v1580
          %v1588 = vmul.f32 %v1568, %v1580
          %v1589 = vmul.f32 %v1569, %v1580
          %v1590 = vmul.f32 %v1570, %v1580
          %v1591 = vmul.f32 %v1571, %v1580
          %v1592 = vmul.f32 %v1572, %v1580
          %v1593 = vmul.f32 %v1573, %v1580
          %v1594 = vmul.f32 %v1574, %v1580
          %v1595 = vmul.f32 %v1575, %v1580
          %v1596 = vmul.f32 %v1576, %v1580
          %v1597 = vadd.f32 %v1542, %v1581
          %v1598 = vadd.f32 %v1543, %v1582
          %v1599 = vadd.f32 %v1544, %v1583
          %v1600 = vadd.f32 %v1545, %v1584
          %v1601 = vadd.f32 %v1546, %v1585
          %v1602 = vadd.f32 %v1547, %v1586
          %v1603 = vadd.f32 %v1548, %v1587
          %v1604 = vadd.f32 %v1549, %v1588
          %v1605 = vadd.f32 %v1550, %v1589
          %v1606 = vadd.f32 %v1551, %v1590
          %v1607 = vadd.f32 %v1552, %v1591
          %v1608 = vadd.f32 %v1553, %v1592
          %v1609 = vadd.f32 %v1554, %v1593
          %v1610 = vadd.f32 %v1555, %v1594
          %v1611 = vadd.f32 %v1556, %v1595
          %v1612 = vadd.f32 %v1557, %v1596
          %v1613 = vld [vmem:[%s1560 + $0x6] sm:$0xff]
          %v1614 = vld [vmem:[%s1560 + $0xe] sm:$0xff]
          %v1615 = vld [vmem:[%s1560 + $0x26] sm:$0xff]
          %v1616 = vld [vmem:[%s1560 + $0x2e] sm:$0xff]
          %v1617 = vld [vmem:[%s1560 + $0x46] sm:$0xff]
          %v1618 = vld [vmem:[%s1560 + $0x4e] sm:$0xff]
          %v1619 = vld [vmem:[%s1560 + $0x66] sm:$0xff]
          %v1620 = vld [vmem:[%s1560 + $0x6e] sm:$0xff]
          %v1621 = vld [vmem:[%s1560 + $0x86] sm:$0xff]
          %v1622 = vld [vmem:[%s1560 + $0x8e] sm:$0xff]
          %v1623 = vld [vmem:[%s1560 + $0xa6] sm:$0xff]
          %v1624 = vld [vmem:[%s1560 + $0xae] sm:$0xff]
          %v1625 = vld [vmem:[%s1560 + $0xc6] sm:$0xff]
          %v1626 = vld [vmem:[%s1560 + $0xce] sm:$0xff]
          %v1627 = vld [vmem:[%s1560 + $0xe6] sm:$0xff]
          %v1628 = vld [vmem:[%s1560 + $0xee] sm:$0xff]
          %v1629 = vlaneseq
          %v1630 = vshrl.u32 %v1629, 7
          %v1631 = vsub.s32 6, %v1630
          %v1632 = vrot.slane %v460, %v1631
          %v1633 = vmul.f32 %v1613, %v1632
          %v1634 = vmul.f32 %v1614, %v1632
          %v1635 = vmul.f32 %v1615, %v1632
          %v1636 = vmul.f32 %v1616, %v1632
          %v1637 = vmul.f32 %v1617, %v1632
          %v1638 = vmul.f32 %v1618, %v1632
          %v1639 = vmul.f32 %v1619, %v1632
          %v1640 = vmul.f32 %v1620, %v1632
          %v1641 = vmul.f32 %v1621, %v1632
          %v1642 = vmul.f32 %v1622, %v1632
          %v1643 = vmul.f32 %v1623, %v1632
          %v1644 = vmul.f32 %v1624, %v1632
          %v1645 = vmul.f32 %v1625, %v1632
          %v1646 = vmul.f32 %v1626, %v1632
          %v1647 = vmul.f32 %v1627, %v1632
          %v1648 = vmul.f32 %v1628, %v1632
          %v1649 = vadd.f32 %v1597, %v1633
          %v1650 = vadd.f32 %v1598, %v1634
          %v1651 = vadd.f32 %v1599, %v1635
          %v1652 = vadd.f32 %v1600, %v1636
          %v1653 = vadd.f32 %v1601, %v1637
          %v1654 = vadd.f32 %v1602, %v1638
          %v1655 = vadd.f32 %v1603, %v1639
          %v1656 = vadd.f32 %v1604, %v1640
          %v1657 = vadd.f32 %v1605, %v1641
          %v1658 = vadd.f32 %v1606, %v1642
          %v1659 = vadd.f32 %v1607, %v1643
          %v1660 = vadd.f32 %v1608, %v1644
          %v1661 = vadd.f32 %v1609, %v1645
          %v1662 = vadd.f32 %v1610, %v1646
          %v1663 = vadd.f32 %v1611, %v1647
          %v1664 = vadd.f32 %v1612, %v1648
          %v1665 = vld [vmem:[%s1560 + $0x7] sm:$0xff]
          %v1666 = vld [vmem:[%s1560 + $0xf] sm:$0xff]
          %v1667 = vld [vmem:[%s1560 + $0x27] sm:$0xff]
          %v1668 = vld [vmem:[%s1560 + $0x2f] sm:$0xff]
          %v1669 = vld [vmem:[%s1560 + $0x47] sm:$0xff]
          %v1670 = vld [vmem:[%s1560 + $0x4f] sm:$0xff]
          %v1671 = vld [vmem:[%s1560 + $0x67] sm:$0xff]
          %v1672 = vld [vmem:[%s1560 + $0x6f] sm:$0xff]
          %v1673 = vld [vmem:[%s1560 + $0x87] sm:$0xff]
          %v1674 = vld [vmem:[%s1560 + $0x8f] sm:$0xff]
          %v1675 = vld [vmem:[%s1560 + $0xa7] sm:$0xff]
          %v1676 = vld [vmem:[%s1560 + $0xaf] sm:$0xff]
          %v1677 = vld [vmem:[%s1560 + $0xc7] sm:$0xff]
          %v1678 = vld [vmem:[%s1560 + $0xcf] sm:$0xff]
          %v1679 = vld [vmem:[%s1560 + $0xe7] sm:$0xff]
          %v1680 = vld [vmem:[%s1560 + $0xef] sm:$0xff]
          %v1681 = vlaneseq
          %v1682 = vshrl.u32 %v1681, 7
          %v1683 = vsub.s32 7, %v1682
          %v1684 = vrot.slane %v460, %v1683
          %v1685 = vmul.f32 %v1665, %v1684
          %v1686 = vmul.f32 %v1666, %v1684
          %v1687 = vmul.f32 %v1667, %v1684
          %v1688 = vmul.f32 %v1668, %v1684
          %v1689 = vmul.f32 %v1669, %v1684
          %v1690 = vmul.f32 %v1670, %v1684
          %v1691 = vmul.f32 %v1671, %v1684
          %v1692 = vmul.f32 %v1672, %v1684
          %v1693 = vmul.f32 %v1673, %v1684
          %v1694 = vmul.f32 %v1674, %v1684
          %v1695 = vmul.f32 %v1675, %v1684
          %v1696 = vmul.f32 %v1676, %v1684
          %v1697 = vmul.f32 %v1677, %v1684
          %v1698 = vmul.f32 %v1678, %v1684
          %v1699 = vmul.f32 %v1679, %v1684
          %v1700 = vmul.f32 %v1680, %v1684
          %v1701 = vadd.f32 %v1649, %v1685
          %v1702 = vadd.f32 %v1650, %v1686
          %v1703 = vadd.f32 %v1651, %v1687
          %v1704 = vadd.f32 %v1652, %v1688
          %v1705 = vadd.f32 %v1653, %v1689
          %v1706 = vadd.f32 %v1654, %v1690
          %v1707 = vadd.f32 %v1655, %v1691
          %v1708 = vadd.f32 %v1656, %v1692
          %v1709 = vadd.f32 %v1657, %v1693
          %v1710 = vadd.f32 %v1658, %v1694
          %v1711 = vadd.f32 %v1659, %v1695
          %v1712 = vadd.f32 %v1660, %v1696
          %v1713 = vadd.f32 %v1661, %v1697
          %v1714 = vadd.f32 %v1662, %v1698
          %v1715 = vadd.f32 %v1663, %v1699
          %v1716 = vadd.f32 %v1664, %v1700
          %v1717 = vld [vmem:[%s1560 + $0x8] sm:$0xff]
          %v1718 = vld [vmem:[%s1560 + $0x10] sm:$0xff]
          %v1719 = vld [vmem:[%s1560 + $0x28] sm:$0xff]
          %v1720 = vld [vmem:[%s1560 + $0x30] sm:$0xff]
          %v1721 = vld [vmem:[%s1560 + $0x48] sm:$0xff]
          %v1722 = vld [vmem:[%s1560 + $0x50] sm:$0xff]
          %v1723 = vld [vmem:[%s1560 + $0x68] sm:$0xff]
          %v1724 = vld [vmem:[%s1560 + $0x70] sm:$0xff]
          %v1725 = vld [vmem:[%s1560 + $0x88] sm:$0xff]
          %v1726 = vld [vmem:[%s1560 + $0x90] sm:$0xff]
          %v1727 = vld [vmem:[%s1560 + $0xa8] sm:$0xff]
          %v1728 = vld [vmem:[%s1560 + $0xb0] sm:$0xff]
          %v1729 = vld [vmem:[%s1560 + $0xc8] sm:$0xff]
          %v1730 = vld [vmem:[%s1560 + $0xd0] sm:$0xff]
          %v1731 = vld [vmem:[%s1560 + $0xe8] sm:$0xff]
          %v1732 = vld [vmem:[%s1560 + $0xf0] sm:$0xff]
          %v1733 = vlaneseq
          %v1734 = vshrl.u32 %v1733, 7
          %v1735 = vsub.s32 0, %v1734
          %v1736 = vrot.slane %v461, %v1735
          %v1737 = vmul.f32 %v1717, %v1736
          %v1738 = vmul.f32 %v1718, %v1736
          %v1739 = vmul.f32 %v1719, %v1736
          %v1740 = vmul.f32 %v1720, %v1736
          %v1741 = vmul.f32 %v1721, %v1736
          %v1742 = vmul.f32 %v1722, %v1736
          %v1743 = vmul.f32 %v1723, %v1736
          %v1744 = vmul.f32 %v1724, %v1736
          %v1745 = vmul.f32 %v1725, %v1736
          %v1746 = vmul.f32 %v1726, %v1736
          %v1747 = vmul.f32 %v1727, %v1736
          %v1748 = vmul.f32 %v1728, %v1736
          %v1749 = vmul.f32 %v1729, %v1736
          %v1750 = vmul.f32 %v1730, %v1736
          %v1751 = vmul.f32 %v1731, %v1736
          %v1752 = vmul.f32 %v1732, %v1736
          %v1753 = vadd.f32 %v1701, %v1737
          %v1754 = vadd.f32 %v1702, %v1738
          %v1755 = vadd.f32 %v1703, %v1739
          %v1756 = vadd.f32 %v1704, %v1740
          %v1757 = vadd.f32 %v1705, %v1741
          %v1758 = vadd.f32 %v1706, %v1742
          %v1759 = vadd.f32 %v1707, %v1743
          %v1760 = vadd.f32 %v1708, %v1744
          %v1761 = vadd.f32 %v1709, %v1745
          %v1762 = vadd.f32 %v1710, %v1746
          %v1763 = vadd.f32 %v1711, %v1747
          %v1764 = vadd.f32 %v1712, %v1748
          %v1765 = vadd.f32 %v1713, %v1749
          %v1766 = vadd.f32 %v1714, %v1750
          %v1767 = vadd.f32 %v1715, %v1751
          %v1768 = vadd.f32 %v1716, %v1752
          %v1769 = vld [vmem:[%s1560 + $0x9] sm:$0xff]
          %v1770 = vld [vmem:[%s1560 + $0x11] sm:$0xff]
          %v1771 = vld [vmem:[%s1560 + $0x29] sm:$0xff]
          %v1772 = vld [vmem:[%s1560 + $0x31] sm:$0xff]
          %v1773 = vld [vmem:[%s1560 + $0x49] sm:$0xff]
          %v1774 = vld [vmem:[%s1560 + $0x51] sm:$0xff]
          %v1775 = vld [vmem:[%s1560 + $0x69] sm:$0xff]
          %v1776 = vld [vmem:[%s1560 + $0x71] sm:$0xff]
          %v1777 = vld [vmem:[%s1560 + $0x89] sm:$0xff]
          %v1778 = vld [vmem:[%s1560 + $0x91] sm:$0xff]
          %v1779 = vld [vmem:[%s1560 + $0xa9] sm:$0xff]
          %v1780 = vld [vmem:[%s1560 + $0xb1] sm:$0xff]
          %v1781 = vld [vmem:[%s1560 + $0xc9] sm:$0xff]
          %v1782 = vld [vmem:[%s1560 + $0xd1] sm:$0xff]
          %v1783 = vld [vmem:[%s1560 + $0xe9] sm:$0xff]
          %v1784 = vld [vmem:[%s1560 + $0xf1] sm:$0xff]
          %v1785 = vlaneseq
          %v1786 = vshrl.u32 %v1785, 7
          %v1787 = vsub.s32 1, %v1786
          %v1788 = vrot.slane %v461, %v1787
          %v1789 = vmul.f32 %v1769, %v1788
          %v1790 = vmul.f32 %v1770, %v1788
          %v1791 = vmul.f32 %v1771, %v1788
          %v1792 = vmul.f32 %v1772, %v1788
          %v1793 = vmul.f32 %v1773, %v1788
          %v1794 = vmul.f32 %v1774, %v1788
          %v1795 = vmul.f32 %v1775, %v1788
          %v1796 = vmul.f32 %v1776, %v1788
          %v1797 = vmul.f32 %v1777, %v1788
          %v1798 = vmul.f32 %v1778, %v1788
          %v1799 = vmul.f32 %v1779, %v1788
          %v1800 = vmul.f32 %v1780, %v1788
          %v1801 = vmul.f32 %v1781, %v1788
          %v1802 = vmul.f32 %v1782, %v1788
          %v1803 = vmul.f32 %v1783, %v1788
          %v1804 = vmul.f32 %v1784, %v1788
          %v1805 = vadd.f32 %v1753, %v1789
          %v1806 = vadd.f32 %v1754, %v1790
          %v1807 = vadd.f32 %v1755, %v1791
          %v1808 = vadd.f32 %v1756, %v1792
          %v1809 = vadd.f32 %v1757, %v1793
          %v1810 = vadd.f32 %v1758, %v1794
          %v1811 = vadd.f32 %v1759, %v1795
          %v1812 = vadd.f32 %v1760, %v1796
          %v1813 = vadd.f32 %v1761, %v1797
          %v1814 = vadd.f32 %v1762, %v1798
          %v1815 = vadd.f32 %v1763, %v1799
          %v1816 = vadd.f32 %v1764, %v1800
          %v1817 = vadd.f32 %v1765, %v1801
          %v1818 = vadd.f32 %v1766, %v1802
          %v1819 = vadd.f32 %v1767, %v1803
          %v1820 = vadd.f32 %v1768, %v1804
          %v1821 = vld [vmem:[%s1560 + $0xa] sm:$0xff]
          %v1822 = vld [vmem:[%s1560 + $0x12] sm:$0xff]
          %v1823 = vld [vmem:[%s1560 + $0x2a] sm:$0xff]
          %v1824 = vld [vmem:[%s1560 + $0x32] sm:$0xff]
          %v1825 = vld [vmem:[%s1560 + $0x4a] sm:$0xff]
          %v1826 = vld [vmem:[%s1560 + $0x52] sm:$0xff]
          %v1827 = vld [vmem:[%s1560 + $0x6a] sm:$0xff]
          %v1828 = vld [vmem:[%s1560 + $0x72] sm:$0xff]
          %v1829 = vld [vmem:[%s1560 + $0x8a] sm:$0xff]
          %v1830 = vld [vmem:[%s1560 + $0x92] sm:$0xff]
          %v1831 = vld [vmem:[%s1560 + $0xaa] sm:$0xff]
          %v1832 = vld [vmem:[%s1560 + $0xb2] sm:$0xff]
          %v1833 = vld [vmem:[%s1560 + $0xca] sm:$0xff]
          %v1834 = vld [vmem:[%s1560 + $0xd2] sm:$0xff]
          %v1835 = vld [vmem:[%s1560 + $0xea] sm:$0xff]
          %v1836 = vld [vmem:[%s1560 + $0xf2] sm:$0xff]
          %v1837 = vlaneseq
          %v1838 = vshrl.u32 %v1837, 7
          %v1839 = vsub.s32 2, %v1838
          %v1840 = vrot.slane %v461, %v1839
          %v1841 = vmul.f32 %v1821, %v1840
          %v1842 = vmul.f32 %v1822, %v1840
          %v1843 = vmul.f32 %v1823, %v1840
          %v1844 = vmul.f32 %v1824, %v1840
          %v1845 = vmul.f32 %v1825, %v1840
          %v1846 = vmul.f32 %v1826, %v1840
          %v1847 = vmul.f32 %v1827, %v1840
          %v1848 = vmul.f32 %v1828, %v1840
          %v1849 = vmul.f32 %v1829, %v1840
          %v1850 = vmul.f32 %v1830, %v1840
          %v1851 = vmul.f32 %v1831, %v1840
          %v1852 = vmul.f32 %v1832, %v1840
          %v1853 = vmul.f32 %v1833, %v1840
          %v1854 = vmul.f32 %v1834, %v1840
          %v1855 = vmul.f32 %v1835, %v1840
          %v1856 = vmul.f32 %v1836, %v1840
          %v1857 = vadd.f32 %v1805, %v1841
          %v1858 = vadd.f32 %v1806, %v1842
          %v1859 = vadd.f32 %v1807, %v1843
          %v1860 = vadd.f32 %v1808, %v1844
          %v1861 = vadd.f32 %v1809, %v1845
          %v1862 = vadd.f32 %v1810, %v1846
          %v1863 = vadd.f32 %v1811, %v1847
          %v1864 = vadd.f32 %v1812, %v1848
          %v1865 = vadd.f32 %v1813, %v1849
          %v1866 = vadd.f32 %v1814, %v1850
          %v1867 = vadd.f32 %v1815, %v1851
          %v1868 = vadd.f32 %v1816, %v1852
          %v1869 = vadd.f32 %v1817, %v1853
          %v1870 = vadd.f32 %v1818, %v1854
          %v1871 = vadd.f32 %v1819, %v1855
          %v1872 = vadd.f32 %v1820, %v1856
          %v1873 = vld [vmem:[%s1560 + $0xb] sm:$0xff]
          %v1874 = vld [vmem:[%s1560 + $0x13] sm:$0xff]
          %v1875 = vld [vmem:[%s1560 + $0x2b] sm:$0xff]
          %v1876 = vld [vmem:[%s1560 + $0x33] sm:$0xff]
          %v1877 = vld [vmem:[%s1560 + $0x4b] sm:$0xff]
          %v1878 = vld [vmem:[%s1560 + $0x53] sm:$0xff]
          %v1879 = vld [vmem:[%s1560 + $0x6b] sm:$0xff]
          %v1880 = vld [vmem:[%s1560 + $0x73] sm:$0xff]
          %v1881 = vld [vmem:[%s1560 + $0x8b] sm:$0xff]
          %v1882 = vld [vmem:[%s1560 + $0x93] sm:$0xff]
          %v1883 = vld [vmem:[%s1560 + $0xab] sm:$0xff]
          %v1884 = vld [vmem:[%s1560 + $0xb3] sm:$0xff]
          %v1885 = vld [vmem:[%s1560 + $0xcb] sm:$0xff]
          %v1886 = vld [vmem:[%s1560 + $0xd3] sm:$0xff]
          %v1887 = vld [vmem:[%s1560 + $0xeb] sm:$0xff]
          %v1888 = vld [vmem:[%s1560 + $0xf3] sm:$0xff]
          %v1889 = vlaneseq
          %v1890 = vshrl.u32 %v1889, 7
          %v1891 = vsub.s32 3, %v1890
          %v1892 = vrot.slane %v461, %v1891
          %v1893 = vmul.f32 %v1873, %v1892
          %v1894 = vmul.f32 %v1874, %v1892
          %v1895 = vmul.f32 %v1875, %v1892
          %v1896 = vmul.f32 %v1876, %v1892
          %v1897 = vmul.f32 %v1877, %v1892
          %v1898 = vmul.f32 %v1878, %v1892
          %v1899 = vmul.f32 %v1879, %v1892
          %v1900 = vmul.f32 %v1880, %v1892
          %v1901 = vmul.f32 %v1881, %v1892
          %v1902 = vmul.f32 %v1882, %v1892
          %v1903 = vmul.f32 %v1883, %v1892
          %v1904 = vmul.f32 %v1884, %v1892
          %v1905 = vmul.f32 %v1885, %v1892
          %v1906 = vmul.f32 %v1886, %v1892
          %v1907 = vmul.f32 %v1887, %v1892
          %v1908 = vmul.f32 %v1888, %v1892
          %v1909 = vadd.f32 %v1857, %v1893
          %v1910 = vadd.f32 %v1858, %v1894
          %v1911 = vadd.f32 %v1859, %v1895
          %v1912 = vadd.f32 %v1860, %v1896
          %v1913 = vadd.f32 %v1861, %v1897
          %v1914 = vadd.f32 %v1862, %v1898
          %v1915 = vadd.f32 %v1863, %v1899
          %v1916 = vadd.f32 %v1864, %v1900
          %v1917 = vadd.f32 %v1865, %v1901
          %v1918 = vadd.f32 %v1866, %v1902
          %v1919 = vadd.f32 %v1867, %v1903
          %v1920 = vadd.f32 %v1868, %v1904
          %v1921 = vadd.f32 %v1869, %v1905
          %v1922 = vadd.f32 %v1870, %v1906
          %v1923 = vadd.f32 %v1871, %v1907
          %v1924 = vadd.f32 %v1872, %v1908
          %s1925 = sadd.s32 %s473, 4
          %s1926 = smul.u32 %s1925, 32
          %s1927 = scalar_lea.vmem [#allocation2], %s1926
          %v1928 = vld [vmem:[%s1927 + $0x5] sm:$0xff]
          %v1929 = vld [vmem:[%s1927 + $0xd] sm:$0xff]
          %v1930 = vld [vmem:[%s1927 + $0x25] sm:$0xff]
          %v1931 = vld [vmem:[%s1927 + $0x2d] sm:$0xff]
          %v1932 = vld [vmem:[%s1927 + $0x45] sm:$0xff]
          %v1933 = vld [vmem:[%s1927 + $0x4d] sm:$0xff]
          %v1934 = vld [vmem:[%s1927 + $0x65] sm:$0xff]
          %v1935 = vld [vmem:[%s1927 + $0x6d] sm:$0xff]
          %v1936 = vld [vmem:[%s1927 + $0x85] sm:$0xff]
          %v1937 = vld [vmem:[%s1927 + $0x8d] sm:$0xff]
          %v1938 = vld [vmem:[%s1927 + $0xa5] sm:$0xff]
          %v1939 = vld [vmem:[%s1927 + $0xad] sm:$0xff]
          %v1940 = vld [vmem:[%s1927 + $0xc5] sm:$0xff]
          %v1941 = vld [vmem:[%s1927 + $0xcd] sm:$0xff]
          %v1942 = vld [vmem:[%s1927 + $0xe5] sm:$0xff]
          %v1943 = vld [vmem:[%s1927 + $0xed] sm:$0xff]
          %v1944 = vlaneseq
          %v1945 = vshrl.u32 %v1944, 7
          %v1946 = vsub.s32 4, %v1945
          %v1947 = vrot.slane %v461, %v1946
          %v1948 = vmul.f32 %v1928, %v1947
          %v1949 = vmul.f32 %v1929, %v1947
          %v1950 = vmul.f32 %v1930, %v1947
          %v1951 = vmul.f32 %v1931, %v1947
          %v1952 = vmul.f32 %v1932, %v1947
          %v1953 = vmul.f32 %v1933, %v1947
          %v1954 = vmul.f32 %v1934, %v1947
          %v1955 = vmul.f32 %v1935, %v1947
          %v1956 = vmul.f32 %v1936, %v1947
          %v1957 = vmul.f32 %v1937, %v1947
          %v1958 = vmul.f32 %v1938, %v1947
          %v1959 = vmul.f32 %v1939, %v1947
          %v1960 = vmul.f32 %v1940, %v1947
          %v1961 = vmul.f32 %v1941, %v1947
          %v1962 = vmul.f32 %v1942, %v1947
          %v1963 = vmul.f32 %v1943, %v1947
          %v1964 = vadd.f32 %v1909, %v1948
          %v1965 = vadd.f32 %v1910, %v1949
          %v1966 = vadd.f32 %v1911, %v1950
          %v1967 = vadd.f32 %v1912, %v1951
          %v1968 = vadd.f32 %v1913, %v1952
          %v1969 = vadd.f32 %v1914, %v1953
          %v1970 = vadd.f32 %v1915, %v1954
          %v1971 = vadd.f32 %v1916, %v1955
          %v1972 = vadd.f32 %v1917, %v1956
          %v1973 = vadd.f32 %v1918, %v1957
          %v1974 = vadd.f32 %v1919, %v1958
          %v1975 = vadd.f32 %v1920, %v1959
          %v1976 = vadd.f32 %v1921, %v1960
          %v1977 = vadd.f32 %v1922, %v1961
          %v1978 = vadd.f32 %v1923, %v1962
          %v1979 = vadd.f32 %v1924, %v1963
          %v1980 = vld [vmem:[%s1927 + $0x6] sm:$0xff]
          %v1981 = vld [vmem:[%s1927 + $0xe] sm:$0xff]
          %v1982 = vld [vmem:[%s1927 + $0x26] sm:$0xff]
          %v1983 = vld [vmem:[%s1927 + $0x2e] sm:$0xff]
          %v1984 = vld [vmem:[%s1927 + $0x46] sm:$0xff]
          %v1985 = vld [vmem:[%s1927 + $0x4e] sm:$0xff]
          %v1986 = vld [vmem:[%s1927 + $0x66] sm:$0xff]
          %v1987 = vld [vmem:[%s1927 + $0x6e] sm:$0xff]
          %v1988 = vld [vmem:[%s1927 + $0x86] sm:$0xff]
          %v1989 = vld [vmem:[%s1927 + $0x8e] sm:$0xff]
          %v1990 = vld [vmem:[%s1927 + $0xa6] sm:$0xff]
          %v1991 = vld [vmem:[%s1927 + $0xae] sm:$0xff]
          %v1992 = vld [vmem:[%s1927 + $0xc6] sm:$0xff]
          %v1993 = vld [vmem:[%s1927 + $0xce] sm:$0xff]
          %v1994 = vld [vmem:[%s1927 + $0xe6] sm:$0xff]
          %v1995 = vld [vmem:[%s1927 + $0xee] sm:$0xff]
          %v1996 = vlaneseq
          %v1997 = vshrl.u32 %v1996, 7
          %v1998 = vsub.s32 5, %v1997
          %v1999 = vrot.slane %v461, %v1998
          %v2000 = vmul.f32 %v1980, %v1999
          %v2001 = vmul.f32 %v1981, %v1999
          %v2002 = vmul.f32 %v1982, %v1999
          %v2003 = vmul.f32 %v1983, %v1999
          %v2004 = vmul.f32 %v1984, %v1999
          %v2005 = vmul.f32 %v1985, %v1999
          %v2006 = vmul.f32 %v1986, %v1999
          %v2007 = vmul.f32 %v1987, %v1999
          %v2008 = vmul.f32 %v1988, %v1999
          %v2009 = vmul.f32 %v1989, %v1999
          %v2010 = vmul.f32 %v1990, %v1999
          %v2011 = vmul.f32 %v1991, %v1999
          %v2012 = vmul.f32 %v1992, %v1999
          %v2013 = vmul.f32 %v1993, %v1999
          %v2014 = vmul.f32 %v1994, %v1999
          %v2015 = vmul.f32 %v1995, %v1999
          %v2016 = vadd.f32 %v1964, %v2000
          %v2017 = vadd.f32 %v1965, %v2001
          %v2018 = vadd.f32 %v1966, %v2002
          %v2019 = vadd.f32 %v1967, %v2003
          %v2020 = vadd.f32 %v1968, %v2004
          %v2021 = vadd.f32 %v1969, %v2005
          %v2022 = vadd.f32 %v1970, %v2006
          %v2023 = vadd.f32 %v1971, %v2007
          %v2024 = vadd.f32 %v1972, %v2008
          %v2025 = vadd.f32 %v1973, %v2009
          %v2026 = vadd.f32 %v1974, %v2010
          %v2027 = vadd.f32 %v1975, %v2011
          %v2028 = vadd.f32 %v1976, %v2012
          %v2029 = vadd.f32 %v1977, %v2013
          %v2030 = vadd.f32 %v1978, %v2014
          %v2031 = vadd.f32 %v1979, %v2015
          %v2032 = vld [vmem:[%s1927 + $0x7] sm:$0xff]
          %v2033 = vld [vmem:[%s1927 + $0xf] sm:$0xff]
          %v2034 = vld [vmem:[%s1927 + $0x27] sm:$0xff]
          %v2035 = vld [vmem:[%s1927 + $0x2f] sm:$0xff]
          %v2036 = vld [vmem:[%s1927 + $0x47] sm:$0xff]
          %v2037 = vld [vmem:[%s1927 + $0x4f] sm:$0xff]
          %v2038 = vld [vmem:[%s1927 + $0x67] sm:$0xff]
          %v2039 = vld [vmem:[%s1927 + $0x6f] sm:$0xff]
          %v2040 = vld [vmem:[%s1927 + $0x87] sm:$0xff]
          %v2041 = vld [vmem:[%s1927 + $0x8f] sm:$0xff]
          %v2042 = vld [vmem:[%s1927 + $0xa7] sm:$0xff]
          %v2043 = vld [vmem:[%s1927 + $0xaf] sm:$0xff]
          %v2044 = vld [vmem:[%s1927 + $0xc7] sm:$0xff]
          %v2045 = vld [vmem:[%s1927 + $0xcf] sm:$0xff]
          %v2046 = vld [vmem:[%s1927 + $0xe7] sm:$0xff]
          %v2047 = vld [vmem:[%s1927 + $0xef] sm:$0xff]
          %v2048 = vlaneseq
          %v2049 = vshrl.u32 %v2048, 7
          %v2050 = vsub.s32 6, %v2049
          %v2051 = vrot.slane %v461, %v2050
          %v2052 = vmul.f32 %v2032, %v2051
          %v2053 = vmul.f32 %v2033, %v2051
          %v2054 = vmul.f32 %v2034, %v2051
          %v2055 = vmul.f32 %v2035, %v2051
          %v2056 = vmul.f32 %v2036, %v2051
          %v2057 = vmul.f32 %v2037, %v2051
          %v2058 = vmul.f32 %v2038, %v2051
          %v2059 = vmul.f32 %v2039, %v2051
          %v2060 = vmul.f32 %v2040, %v2051
          %v2061 = vmul.f32 %v2041, %v2051
          %v2062 = vmul.f32 %v2042, %v2051
          %v2063 = vmul.f32 %v2043, %v2051
          %v2064 = vmul.f32 %v2044, %v2051
          %v2065 = vmul.f32 %v2045, %v2051
          %v2066 = vmul.f32 %v2046, %v2051
          %v2067 = vmul.f32 %v2047, %v2051
          %v2068 = vadd.f32 %v2016, %v2052
          %v2069 = vadd.f32 %v2017, %v2053
          %v2070 = vadd.f32 %v2018, %v2054
          %v2071 = vadd.f32 %v2019, %v2055
          %v2072 = vadd.f32 %v2020, %v2056
          %v2073 = vadd.f32 %v2021, %v2057
          %v2074 = vadd.f32 %v2022, %v2058
          %v2075 = vadd.f32 %v2023, %v2059
          %v2076 = vadd.f32 %v2024, %v2060
          %v2077 = vadd.f32 %v2025, %v2061
          %v2078 = vadd.f32 %v2026, %v2062
          %v2079 = vadd.f32 %v2027, %v2063
          %v2080 = vadd.f32 %v2028, %v2064
          %v2081 = vadd.f32 %v2029, %v2065
          %v2082 = vadd.f32 %v2030, %v2066
          %v2083 = vadd.f32 %v2031, %v2067
          %v2084 = vld [vmem:[%s1927 + $0x8] sm:$0xff]
          %v2085 = vld [vmem:[%s1927 + $0x10] sm:$0xff]
          %v2086 = vld [vmem:[%s1927 + $0x28] sm:$0xff]
          %v2087 = vld [vmem:[%s1927 + $0x30] sm:$0xff]
          %v2088 = vld [vmem:[%s1927 + $0x48] sm:$0xff]
          %v2089 = vld [vmem:[%s1927 + $0x50] sm:$0xff]
          %v2090 = vld [vmem:[%s1927 + $0x68] sm:$0xff]
          %v2091 = vld [vmem:[%s1927 + $0x70] sm:$0xff]
          %v2092 = vld [vmem:[%s1927 + $0x88] sm:$0xff]
          %v2093 = vld [vmem:[%s1927 + $0x90] sm:$0xff]
          %v2094 = vld [vmem:[%s1927 + $0xa8] sm:$0xff]
          %v2095 = vld [vmem:[%s1927 + $0xb0] sm:$0xff]
          %v2096 = vld [vmem:[%s1927 + $0xc8] sm:$0xff]
          %v2097 = vld [vmem:[%s1927 + $0xd0] sm:$0xff]
          %v2098 = vld [vmem:[%s1927 + $0xe8] sm:$0xff]
          %v2099 = vld [vmem:[%s1927 + $0xf0] sm:$0xff]
          %v2100 = vlaneseq
          %v2101 = vshrl.u32 %v2100, 7
          %v2102 = vsub.s32 7, %v2101
          %v2103 = vrot.slane %v461, %v2102
          %v2104 = vmul.f32 %v2084, %v2103
          %v2105 = vmul.f32 %v2085, %v2103
          %v2106 = vmul.f32 %v2086, %v2103
          %v2107 = vmul.f32 %v2087, %v2103
          %v2108 = vmul.f32 %v2088, %v2103
          %v2109 = vmul.f32 %v2089, %v2103
          %v2110 = vmul.f32 %v2090, %v2103
          %v2111 = vmul.f32 %v2091, %v2103
          %v2112 = vmul.f32 %v2092, %v2103
          %v2113 = vmul.f32 %v2093, %v2103
          %v2114 = vmul.f32 %v2094, %v2103
          %v2115 = vmul.f32 %v2095, %v2103
          %v2116 = vmul.f32 %v2096, %v2103
          %v2117 = vmul.f32 %v2097, %v2103
          %v2118 = vmul.f32 %v2098, %v2103
          %v2119 = vmul.f32 %v2099, %v2103
          %v2120 = vadd.f32 %v2068, %v2104
          %v2121 = vadd.f32 %v2069, %v2105
          %v2122 = vadd.f32 %v2070, %v2106
          %v2123 = vadd.f32 %v2071, %v2107
          %v2124 = vadd.f32 %v2072, %v2108
          %v2125 = vadd.f32 %v2073, %v2109
          %v2126 = vadd.f32 %v2074, %v2110
          %v2127 = vadd.f32 %v2075, %v2111
          %v2128 = vadd.f32 %v2076, %v2112
          %v2129 = vadd.f32 %v2077, %v2113
          %v2130 = vadd.f32 %v2078, %v2114
          %v2131 = vadd.f32 %v2079, %v2115
          %v2132 = vadd.f32 %v2080, %v2116
          %v2133 = vadd.f32 %v2081, %v2117
          %v2134 = vadd.f32 %v2082, %v2118
          %v2135 = vadd.f32 %v2083, %v2119
          %v2136 = vld [vmem:[%s1927 + $0x9] sm:$0xff]
          %v2137 = vld [vmem:[%s1927 + $0x11] sm:$0xff]
          %v2138 = vld [vmem:[%s1927 + $0x29] sm:$0xff]
          %v2139 = vld [vmem:[%s1927 + $0x31] sm:$0xff]
          %v2140 = vld [vmem:[%s1927 + $0x49] sm:$0xff]
          %v2141 = vld [vmem:[%s1927 + $0x51] sm:$0xff]
          %v2142 = vld [vmem:[%s1927 + $0x69] sm:$0xff]
          %v2143 = vld [vmem:[%s1927 + $0x71] sm:$0xff]
          %v2144 = vld [vmem:[%s1927 + $0x89] sm:$0xff]
          %v2145 = vld [vmem:[%s1927 + $0x91] sm:$0xff]
          %v2146 = vld [vmem:[%s1927 + $0xa9] sm:$0xff]
          %v2147 = vld [vmem:[%s1927 + $0xb1] sm:$0xff]
          %v2148 = vld [vmem:[%s1927 + $0xc9] sm:$0xff]
          %v2149 = vld [vmem:[%s1927 + $0xd1] sm:$0xff]
          %v2150 = vld [vmem:[%s1927 + $0xe9] sm:$0xff]
          %v2151 = vld [vmem:[%s1927 + $0xf1] sm:$0xff]
          %v2152 = vlaneseq
          %v2153 = vshrl.u32 %v2152, 7
          %v2154 = vsub.s32 0, %v2153
          %v2155 = vrot.slane %v462, %v2154
          %v2156 = vmul.f32 %v2136, %v2155
          %v2157 = vmul.f32 %v2137, %v2155
          %v2158 = vmul.f32 %v2138, %v2155
          %v2159 = vmul.f32 %v2139, %v2155
          %v2160 = vmul.f32 %v2140, %v2155
          %v2161 = vmul.f32 %v2141, %v2155
          %v2162 = vmul.f32 %v2142, %v2155
          %v2163 = vmul.f32 %v2143, %v2155
          %v2164 = vmul.f32 %v2144, %v2155
          %v2165 = vmul.f32 %v2145, %v2155
          %v2166 = vmul.f32 %v2146, %v2155
          %v2167 = vmul.f32 %v2147, %v2155
          %v2168 = vmul.f32 %v2148, %v2155
          %v2169 = vmul.f32 %v2149, %v2155
          %v2170 = vmul.f32 %v2150, %v2155
          %v2171 = vmul.f32 %v2151, %v2155
          %v2172 = vadd.f32 %v2120, %v2156
          %v2173 = vadd.f32 %v2121, %v2157
          %v2174 = vadd.f32 %v2122, %v2158
          %v2175 = vadd.f32 %v2123, %v2159
          %v2176 = vadd.f32 %v2124, %v2160
          %v2177 = vadd.f32 %v2125, %v2161
          %v2178 = vadd.f32 %v2126, %v2162
          %v2179 = vadd.f32 %v2127, %v2163
          %v2180 = vadd.f32 %v2128, %v2164
          %v2181 = vadd.f32 %v2129, %v2165
          %v2182 = vadd.f32 %v2130, %v2166
          %v2183 = vadd.f32 %v2131, %v2167
          %v2184 = vadd.f32 %v2132, %v2168
          %v2185 = vadd.f32 %v2133, %v2169
          %v2186 = vadd.f32 %v2134, %v2170
          %v2187 = vadd.f32 %v2135, %v2171
          %v2188 = vld [vmem:[%s1927 + $0xa] sm:$0xff]
          %v2189 = vld [vmem:[%s1927 + $0x12] sm:$0xff]
          %v2190 = vld [vmem:[%s1927 + $0x2a] sm:$0xff]
          %v2191 = vld [vmem:[%s1927 + $0x32] sm:$0xff]
          %v2192 = vld [vmem:[%s1927 + $0x4a] sm:$0xff]
          %v2193 = vld [vmem:[%s1927 + $0x52] sm:$0xff]
          %v2194 = vld [vmem:[%s1927 + $0x6a] sm:$0xff]
          %v2195 = vld [vmem:[%s1927 + $0x72] sm:$0xff]
          %v2196 = vld [vmem:[%s1927 + $0x8a] sm:$0xff]
          %v2197 = vld [vmem:[%s1927 + $0x92] sm:$0xff]
          %v2198 = vld [vmem:[%s1927 + $0xaa] sm:$0xff]
          %v2199 = vld [vmem:[%s1927 + $0xb2] sm:$0xff]
          %v2200 = vld [vmem:[%s1927 + $0xca] sm:$0xff]
          %v2201 = vld [vmem:[%s1927 + $0xd2] sm:$0xff]
          %v2202 = vld [vmem:[%s1927 + $0xea] sm:$0xff]
          %v2203 = vld [vmem:[%s1927 + $0xf2] sm:$0xff]
          %v2204 = vlaneseq
          %v2205 = vshrl.u32 %v2204, 7
          %v2206 = vsub.s32 1, %v2205
          %v2207 = vrot.slane %v462, %v2206
          %v2208 = vmul.f32 %v2188, %v2207
          %v2209 = vmul.f32 %v2189, %v2207
          %v2210 = vmul.f32 %v2190, %v2207
          %v2211 = vmul.f32 %v2191, %v2207
          %v2212 = vmul.f32 %v2192, %v2207
          %v2213 = vmul.f32 %v2193, %v2207
          %v2214 = vmul.f32 %v2194, %v2207
          %v2215 = vmul.f32 %v2195, %v2207
          %v2216 = vmul.f32 %v2196, %v2207
          %v2217 = vmul.f32 %v2197, %v2207
          %v2218 = vmul.f32 %v2198, %v2207
          %v2219 = vmul.f32 %v2199, %v2207
          %v2220 = vmul.f32 %v2200, %v2207
          %v2221 = vmul.f32 %v2201, %v2207
          %v2222 = vmul.f32 %v2202, %v2207
          %v2223 = vmul.f32 %v2203, %v2207
          %v2224 = vadd.f32 %v2172, %v2208
          %v2225 = vadd.f32 %v2173, %v2209
          %v2226 = vadd.f32 %v2174, %v2210
          %v2227 = vadd.f32 %v2175, %v2211
          %v2228 = vadd.f32 %v2176, %v2212
          %v2229 = vadd.f32 %v2177, %v2213
          %v2230 = vadd.f32 %v2178, %v2214
          %v2231 = vadd.f32 %v2179, %v2215
          %v2232 = vadd.f32 %v2180, %v2216
          %v2233 = vadd.f32 %v2181, %v2217
          %v2234 = vadd.f32 %v2182, %v2218
          %v2235 = vadd.f32 %v2183, %v2219
          %v2236 = vadd.f32 %v2184, %v2220
          %v2237 = vadd.f32 %v2185, %v2221
          %v2238 = vadd.f32 %v2186, %v2222
          %v2239 = vadd.f32 %v2187, %v2223
          %v2240 = vld [vmem:[%s1927 + $0xb] sm:$0xff]
          %v2241 = vld [vmem:[%s1927 + $0x13] sm:$0xff]
          %v2242 = vld [vmem:[%s1927 + $0x2b] sm:$0xff]
          %v2243 = vld [vmem:[%s1927 + $0x33] sm:$0xff]
          %v2244 = vld [vmem:[%s1927 + $0x4b] sm:$0xff]
          %v2245 = vld [vmem:[%s1927 + $0x53] sm:$0xff]
          %v2246 = vld [vmem:[%s1927 + $0x6b] sm:$0xff]
          %v2247 = vld [vmem:[%s1927 + $0x73] sm:$0xff]
          %v2248 = vld [vmem:[%s1927 + $0x8b] sm:$0xff]
          %v2249 = vld [vmem:[%s1927 + $0x93] sm:$0xff]
          %v2250 = vld [vmem:[%s1927 + $0xab] sm:$0xff]
          %v2251 = vld [vmem:[%s1927 + $0xb3] sm:$0xff]
          %v2252 = vld [vmem:[%s1927 + $0xcb] sm:$0xff]
          %v2253 = vld [vmem:[%s1927 + $0xd3] sm:$0xff]
          %v2254 = vld [vmem:[%s1927 + $0xeb] sm:$0xff]
          %v2255 = vld [vmem:[%s1927 + $0xf3] sm:$0xff]
          %v2256 = vlaneseq
          %v2257 = vshrl.u32 %v2256, 7
          %v2258 = vsub.s32 2, %v2257
          %v2259 = vrot.slane %v462, %v2258
          %v2260 = vmul.f32 %v2240, %v2259
          %v2261 = vmul.f32 %v2241, %v2259
          %v2262 = vmul.f32 %v2242, %v2259
          %v2263 = vmul.f32 %v2243, %v2259
          %v2264 = vmul.f32 %v2244, %v2259
          %v2265 = vmul.f32 %v2245, %v2259
          %v2266 = vmul.f32 %v2246, %v2259
          %v2267 = vmul.f32 %v2247, %v2259
          %v2268 = vmul.f32 %v2248, %v2259
          %v2269 = vmul.f32 %v2249, %v2259
          %v2270 = vmul.f32 %v2250, %v2259
          %v2271 = vmul.f32 %v2251, %v2259
          %v2272 = vmul.f32 %v2252, %v2259
          %v2273 = vmul.f32 %v2253, %v2259
          %v2274 = vmul.f32 %v2254, %v2259
          %v2275 = vmul.f32 %v2255, %v2259
          %v2276 = vadd.f32 %v2224, %v2260
          %v2277 = vadd.f32 %v2225, %v2261
          %v2278 = vadd.f32 %v2226, %v2262
          %v2279 = vadd.f32 %v2227, %v2263
          %v2280 = vadd.f32 %v2228, %v2264
          %v2281 = vadd.f32 %v2229, %v2265
          %v2282 = vadd.f32 %v2230, %v2266
          %v2283 = vadd.f32 %v2231, %v2267
          %v2284 = vadd.f32 %v2232, %v2268
          %v2285 = vadd.f32 %v2233, %v2269
          %v2286 = vadd.f32 %v2234, %v2270
          %v2287 = vadd.f32 %v2235, %v2271
          %v2288 = vadd.f32 %v2236, %v2272
          %v2289 = vadd.f32 %v2237, %v2273
          %v2290 = vadd.f32 %v2238, %v2274
          %v2291 = vadd.f32 %v2239, %v2275
          %s2292 = sadd.s32 %s473, 5
          %s2293 = smul.u32 %s2292, 32
          %s2294 = scalar_lea.vmem [#allocation2], %s2293
          %v2295 = vld [vmem:[%s2294 + $0x5] sm:$0xff]
          %v2296 = vld [vmem:[%s2294 + $0xd] sm:$0xff]
          %v2297 = vld [vmem:[%s2294 + $0x25] sm:$0xff]
          %v2298 = vld [vmem:[%s2294 + $0x2d] sm:$0xff]
          %v2299 = vld [vmem:[%s2294 + $0x45] sm:$0xff]
          %v2300 = vld [vmem:[%s2294 + $0x4d] sm:$0xff]
          %v2301 = vld [vmem:[%s2294 + $0x65] sm:$0xff]
          %v2302 = vld [vmem:[%s2294 + $0x6d] sm:$0xff]
          %v2303 = vld [vmem:[%s2294 + $0x85] sm:$0xff]
          %v2304 = vld [vmem:[%s2294 + $0x8d] sm:$0xff]
          %v2305 = vld [vmem:[%s2294 + $0xa5] sm:$0xff]
          %v2306 = vld [vmem:[%s2294 + $0xad] sm:$0xff]
          %v2307 = vld [vmem:[%s2294 + $0xc5] sm:$0xff]
          %v2308 = vld [vmem:[%s2294 + $0xcd] sm:$0xff]
          %v2309 = vld [vmem:[%s2294 + $0xe5] sm:$0xff]
          %v2310 = vld [vmem:[%s2294 + $0xed] sm:$0xff]
          %v2311 = vlaneseq
          %v2312 = vshrl.u32 %v2311, 7
          %v2313 = vsub.s32 3, %v2312
          %v2314 = vrot.slane %v462, %v2313
          %v2315 = vmul.f32 %v2295, %v2314
          %v2316 = vmul.f32 %v2296, %v2314
          %v2317 = vmul.f32 %v2297, %v2314
          %v2318 = vmul.f32 %v2298, %v2314
          %v2319 = vmul.f32 %v2299, %v2314
          %v2320 = vmul.f32 %v2300, %v2314
          %v2321 = vmul.f32 %v2301, %v2314
          %v2322 = vmul.f32 %v2302, %v2314
          %v2323 = vmul.f32 %v2303, %v2314
          %v2324 = vmul.f32 %v2304, %v2314
          %v2325 = vmul.f32 %v2305, %v2314
          %v2326 = vmul.f32 %v2306, %v2314
          %v2327 = vmul.f32 %v2307, %v2314
          %v2328 = vmul.f32 %v2308, %v2314
          %v2329 = vmul.f32 %v2309, %v2314
          %v2330 = vmul.f32 %v2310, %v2314
          %v2331 = vadd.f32 %v2276, %v2315
          %v2332 = vadd.f32 %v2277, %v2316
          %v2333 = vadd.f32 %v2278, %v2317
          %v2334 = vadd.f32 %v2279, %v2318
          %v2335 = vadd.f32 %v2280, %v2319
          %v2336 = vadd.f32 %v2281, %v2320
          %v2337 = vadd.f32 %v2282, %v2321
          %v2338 = vadd.f32 %v2283, %v2322
          %v2339 = vadd.f32 %v2284, %v2323
          %v2340 = vadd.f32 %v2285, %v2324
          %v2341 = vadd.f32 %v2286, %v2325
          %v2342 = vadd.f32 %v2287, %v2326
          %v2343 = vadd.f32 %v2288, %v2327
          %v2344 = vadd.f32 %v2289, %v2328
          %v2345 = vadd.f32 %v2290, %v2329
          %v2346 = vadd.f32 %v2291, %v2330
          %v2347 = vld [vmem:[%s2294 + $0x6] sm:$0xff]
          %v2348 = vld [vmem:[%s2294 + $0xe] sm:$0xff]
          %v2349 = vld [vmem:[%s2294 + $0x26] sm:$0xff]
          %v2350 = vld [vmem:[%s2294 + $0x2e] sm:$0xff]
          %v2351 = vld [vmem:[%s2294 + $0x46] sm:$0xff]
          %v2352 = vld [vmem:[%s2294 + $0x4e] sm:$0xff]
          %v2353 = vld [vmem:[%s2294 + $0x66] sm:$0xff]
          %v2354 = vld [vmem:[%s2294 + $0x6e] sm:$0xff]
          %v2355 = vld [vmem:[%s2294 + $0x86] sm:$0xff]
          %v2356 = vld [vmem:[%s2294 + $0x8e] sm:$0xff]
          %v2357 = vld [vmem:[%s2294 + $0xa6] sm:$0xff]
          %v2358 = vld [vmem:[%s2294 + $0xae] sm:$0xff]
          %v2359 = vld [vmem:[%s2294 + $0xc6] sm:$0xff]
          %v2360 = vld [vmem:[%s2294 + $0xce] sm:$0xff]
          %v2361 = vld [vmem:[%s2294 + $0xe6] sm:$0xff]
          %v2362 = vld [vmem:[%s2294 + $0xee] sm:$0xff]
          %v2363 = vlaneseq
          %v2364 = vshrl.u32 %v2363, 7
          %v2365 = vsub.s32 4, %v2364
          %v2366 = vrot.slane %v462, %v2365
          %v2367 = vmul.f32 %v2347, %v2366
          %v2368 = vmul.f32 %v2348, %v2366
          %v2369 = vmul.f32 %v2349, %v2366
          %v2370 = vmul.f32 %v2350, %v2366
          %v2371 = vmul.f32 %v2351, %v2366
          %v2372 = vmul.f32 %v2352, %v2366
          %v2373 = vmul.f32 %v2353, %v2366
          %v2374 = vmul.f32 %v2354, %v2366
          %v2375 = vmul.f32 %v2355, %v2366
          %v2376 = vmul.f32 %v2356, %v2366
          %v2377 = vmul.f32 %v2357, %v2366
          %v2378 = vmul.f32 %v2358, %v2366
          %v2379 = vmul.f32 %v2359, %v2366
          %v2380 = vmul.f32 %v2360, %v2366
          %v2381 = vmul.f32 %v2361, %v2366
          %v2382 = vmul.f32 %v2362, %v2366
          %v2383 = vadd.f32 %v2331, %v2367
          %v2384 = vadd.f32 %v2332, %v2368
          %v2385 = vadd.f32 %v2333, %v2369
          %v2386 = vadd.f32 %v2334, %v2370
          %v2387 = vadd.f32 %v2335, %v2371
          %v2388 = vadd.f32 %v2336, %v2372
          %v2389 = vadd.f32 %v2337, %v2373
          %v2390 = vadd.f32 %v2338, %v2374
          %v2391 = vadd.f32 %v2339, %v2375
          %v2392 = vadd.f32 %v2340, %v2376
          %v2393 = vadd.f32 %v2341, %v2377
          %v2394 = vadd.f32 %v2342, %v2378
          %v2395 = vadd.f32 %v2343, %v2379
          %v2396 = vadd.f32 %v2344, %v2380
          %v2397 = vadd.f32 %v2345, %v2381
          %v2398 = vadd.f32 %v2346, %v2382
          %v2399 = vld [vmem:[%s2294 + $0x7] sm:$0xff]
          %v2400 = vld [vmem:[%s2294 + $0xf] sm:$0xff]
          %v2401 = vld [vmem:[%s2294 + $0x27] sm:$0xff]
          %v2402 = vld [vmem:[%s2294 + $0x2f] sm:$0xff]
          %v2403 = vld [vmem:[%s2294 + $0x47] sm:$0xff]
          %v2404 = vld [vmem:[%s2294 + $0x4f] sm:$0xff]
          %v2405 = vld [vmem:[%s2294 + $0x67] sm:$0xff]
          %v2406 = vld [vmem:[%s2294 + $0x6f] sm:$0xff]
          %v2407 = vld [vmem:[%s2294 + $0x87] sm:$0xff]
          %v2408 = vld [vmem:[%s2294 + $0x8f] sm:$0xff]
          %v2409 = vld [vmem:[%s2294 + $0xa7] sm:$0xff]
          %v2410 = vld [vmem:[%s2294 + $0xaf] sm:$0xff]
          %v2411 = vld [vmem:[%s2294 + $0xc7] sm:$0xff]
          %v2412 = vld [vmem:[%s2294 + $0xcf] sm:$0xff]
          %v2413 = vld [vmem:[%s2294 + $0xe7] sm:$0xff]
          %v2414 = vld [vmem:[%s2294 + $0xef] sm:$0xff]
          %v2415 = vlaneseq
          %v2416 = vshrl.u32 %v2415, 7
          %v2417 = vsub.s32 5, %v2416
          %v2418 = vrot.slane %v462, %v2417
          %v2419 = vmul.f32 %v2399, %v2418
          %v2420 = vmul.f32 %v2400, %v2418
          %v2421 = vmul.f32 %v2401, %v2418
          %v2422 = vmul.f32 %v2402, %v2418
          %v2423 = vmul.f32 %v2403, %v2418
          %v2424 = vmul.f32 %v2404, %v2418
          %v2425 = vmul.f32 %v2405, %v2418
          %v2426 = vmul.f32 %v2406, %v2418
          %v2427 = vmul.f32 %v2407, %v2418
          %v2428 = vmul.f32 %v2408, %v2418
          %v2429 = vmul.f32 %v2409, %v2418
          %v2430 = vmul.f32 %v2410, %v2418
          %v2431 = vmul.f32 %v2411, %v2418
          %v2432 = vmul.f32 %v2412, %v2418
          %v2433 = vmul.f32 %v2413, %v2418
          %v2434 = vmul.f32 %v2414, %v2418
          %v2435 = vadd.f32 %v2383, %v2419
          %v2436 = vadd.f32 %v2384, %v2420
          %v2437 = vadd.f32 %v2385, %v2421
          %v2438 = vadd.f32 %v2386, %v2422
          %v2439 = vadd.f32 %v2387, %v2423
          %v2440 = vadd.f32 %v2388, %v2424
          %v2441 = vadd.f32 %v2389, %v2425
          %v2442 = vadd.f32 %v2390, %v2426
          %v2443 = vadd.f32 %v2391, %v2427
          %v2444 = vadd.f32 %v2392, %v2428
          %v2445 = vadd.f32 %v2393, %v2429
          %v2446 = vadd.f32 %v2394, %v2430
          %v2447 = vadd.f32 %v2395, %v2431
          %v2448 = vadd.f32 %v2396, %v2432
          %v2449 = vadd.f32 %v2397, %v2433
          %v2450 = vadd.f32 %v2398, %v2434
          %v2451 = vld [vmem:[%s2294 + $0x8] sm:$0xff]
          %v2452 = vld [vmem:[%s2294 + $0x10] sm:$0xff]
          %v2453 = vld [vmem:[%s2294 + $0x28] sm:$0xff]
          %v2454 = vld [vmem:[%s2294 + $0x30] sm:$0xff]
          %v2455 = vld [vmem:[%s2294 + $0x48] sm:$0xff]
          %v2456 = vld [vmem:[%s2294 + $0x50] sm:$0xff]
          %v2457 = vld [vmem:[%s2294 + $0x68] sm:$0xff]
          %v2458 = vld [vmem:[%s2294 + $0x70] sm:$0xff]
          %v2459 = vld [vmem:[%s2294 + $0x88] sm:$0xff]
          %v2460 = vld [vmem:[%s2294 + $0x90] sm:$0xff]
          %v2461 = vld [vmem:[%s2294 + $0xa8] sm:$0xff]
          %v2462 = vld [vmem:[%s2294 + $0xb0] sm:$0xff]
          %v2463 = vld [vmem:[%s2294 + $0xc8] sm:$0xff]
          %v2464 = vld [vmem:[%s2294 + $0xd0] sm:$0xff]
          %v2465 = vld [vmem:[%s2294 + $0xe8] sm:$0xff]
          %v2466 = vld [vmem:[%s2294 + $0xf0] sm:$0xff]
          %v2467 = vlaneseq
          %v2468 = vshrl.u32 %v2467, 7
          %v2469 = vsub.s32 6, %v2468
          %v2470 = vrot.slane %v462, %v2469
          %v2471 = vmul.f32 %v2451, %v2470
          %v2472 = vmul.f32 %v2452, %v2470
          %v2473 = vmul.f32 %v2453, %v2470
          %v2474 = vmul.f32 %v2454, %v2470
          %v2475 = vmul.f32 %v2455, %v2470
          %v2476 = vmul.f32 %v2456, %v2470
          %v2477 = vmul.f32 %v2457, %v2470
          %v2478 = vmul.f32 %v2458, %v2470
          %v2479 = vmul.f32 %v2459, %v2470
          %v2480 = vmul.f32 %v2460, %v2470
          %v2481 = vmul.f32 %v2461, %v2470
          %v2482 = vmul.f32 %v2462, %v2470
          %v2483 = vmul.f32 %v2463, %v2470
          %v2484 = vmul.f32 %v2464, %v2470
          %v2485 = vmul.f32 %v2465, %v2470
          %v2486 = vmul.f32 %v2466, %v2470
          %v2487 = vadd.f32 %v2435, %v2471
          %v2488 = vadd.f32 %v2436, %v2472
          %v2489 = vadd.f32 %v2437, %v2473
          %v2490 = vadd.f32 %v2438, %v2474
          %v2491 = vadd.f32 %v2439, %v2475
          %v2492 = vadd.f32 %v2440, %v2476
          %v2493 = vadd.f32 %v2441, %v2477
          %v2494 = vadd.f32 %v2442, %v2478
          %v2495 = vadd.f32 %v2443, %v2479
          %v2496 = vadd.f32 %v2444, %v2480
          %v2497 = vadd.f32 %v2445, %v2481
          %v2498 = vadd.f32 %v2446, %v2482
          %v2499 = vadd.f32 %v2447, %v2483
          %v2500 = vadd.f32 %v2448, %v2484
          %v2501 = vadd.f32 %v2449, %v2485
          %v2502 = vadd.f32 %v2450, %v2486
          %v2503 = vld [vmem:[%s2294 + $0x9] sm:$0xff]
          %v2504 = vld [vmem:[%s2294 + $0x11] sm:$0xff]
          %v2505 = vld [vmem:[%s2294 + $0x29] sm:$0xff]
          %v2506 = vld [vmem:[%s2294 + $0x31] sm:$0xff]
          %v2507 = vld [vmem:[%s2294 + $0x49] sm:$0xff]
          %v2508 = vld [vmem:[%s2294 + $0x51] sm:$0xff]
          %v2509 = vld [vmem:[%s2294 + $0x69] sm:$0xff]
          %v2510 = vld [vmem:[%s2294 + $0x71] sm:$0xff]
          %v2511 = vld [vmem:[%s2294 + $0x89] sm:$0xff]
          %v2512 = vld [vmem:[%s2294 + $0x91] sm:$0xff]
          %v2513 = vld [vmem:[%s2294 + $0xa9] sm:$0xff]
          %v2514 = vld [vmem:[%s2294 + $0xb1] sm:$0xff]
          %v2515 = vld [vmem:[%s2294 + $0xc9] sm:$0xff]
          %v2516 = vld [vmem:[%s2294 + $0xd1] sm:$0xff]
          %v2517 = vld [vmem:[%s2294 + $0xe9] sm:$0xff]
          %v2518 = vld [vmem:[%s2294 + $0xf1] sm:$0xff]
          %v2519 = vlaneseq
          %v2520 = vshrl.u32 %v2519, 7
          %v2521 = vsub.s32 7, %v2520
          %v2522 = vrot.slane %v462, %v2521
          %v2523 = vmul.f32 %v2503, %v2522
          %v2524 = vmul.f32 %v2504, %v2522
          %v2525 = vmul.f32 %v2505, %v2522
          %v2526 = vmul.f32 %v2506, %v2522
          %v2527 = vmul.f32 %v2507, %v2522
          %v2528 = vmul.f32 %v2508, %v2522
          %v2529 = vmul.f32 %v2509, %v2522
          %v2530 = vmul.f32 %v2510, %v2522
          %v2531 = vmul.f32 %v2511, %v2522
          %v2532 = vmul.f32 %v2512, %v2522
          %v2533 = vmul.f32 %v2513, %v2522
          %v2534 = vmul.f32 %v2514, %v2522
          %v2535 = vmul.f32 %v2515, %v2522
          %v2536 = vmul.f32 %v2516, %v2522
          %v2537 = vmul.f32 %v2517, %v2522
          %v2538 = vmul.f32 %v2518, %v2522
          %v2539 = vadd.f32 %v2487, %v2523
          %v2540 = vadd.f32 %v2488, %v2524
          %v2541 = vadd.f32 %v2489, %v2525
          %v2542 = vadd.f32 %v2490, %v2526
          %v2543 = vadd.f32 %v2491, %v2527
          %v2544 = vadd.f32 %v2492, %v2528
          %v2545 = vadd.f32 %v2493, %v2529
          %v2546 = vadd.f32 %v2494, %v2530
          %v2547 = vadd.f32 %v2495, %v2531
          %v2548 = vadd.f32 %v2496, %v2532
          %v2549 = vadd.f32 %v2497, %v2533
          %v2550 = vadd.f32 %v2498, %v2534
          %v2551 = vadd.f32 %v2499, %v2535
          %v2552 = vadd.f32 %v2500, %v2536
          %v2553 = vadd.f32 %v2501, %v2537
          %v2554 = vadd.f32 %v2502, %v2538
          %v2555 = vld [vmem:[%s2294 + $0xa] sm:$0xff]
          %v2556 = vld [vmem:[%s2294 + $0x12] sm:$0xff]
          %v2557 = vld [vmem:[%s2294 + $0x2a] sm:$0xff]
          %v2558 = vld [vmem:[%s2294 + $0x32] sm:$0xff]
          %v2559 = vld [vmem:[%s2294 + $0x4a] sm:$0xff]
          %v2560 = vld [vmem:[%s2294 + $0x52] sm:$0xff]
          %v2561 = vld [vmem:[%s2294 + $0x6a] sm:$0xff]
          %v2562 = vld [vmem:[%s2294 + $0x72] sm:$0xff]
          %v2563 = vld [vmem:[%s2294 + $0x8a] sm:$0xff]
          %v2564 = vld [vmem:[%s2294 + $0x92] sm:$0xff]
          %v2565 = vld [vmem:[%s2294 + $0xaa] sm:$0xff]
          %v2566 = vld [vmem:[%s2294 + $0xb2] sm:$0xff]
          %v2567 = vld [vmem:[%s2294 + $0xca] sm:$0xff]
          %v2568 = vld [vmem:[%s2294 + $0xd2] sm:$0xff]
          %v2569 = vld [vmem:[%s2294 + $0xea] sm:$0xff]
          %v2570 = vld [vmem:[%s2294 + $0xf2] sm:$0xff]
          %v2571 = vlaneseq
          %v2572 = vshrl.u32 %v2571, 7
          %v2573 = vsub.s32 0, %v2572
          %v2574 = vrot.slane %v463, %v2573
          %v2575 = vmul.f32 %v2555, %v2574
          %v2576 = vmul.f32 %v2556, %v2574
          %v2577 = vmul.f32 %v2557, %v2574
          %v2578 = vmul.f32 %v2558, %v2574
          %v2579 = vmul.f32 %v2559, %v2574
          %v2580 = vmul.f32 %v2560, %v2574
          %v2581 = vmul.f32 %v2561, %v2574
          %v2582 = vmul.f32 %v2562, %v2574
          %v2583 = vmul.f32 %v2563, %v2574
          %v2584 = vmul.f32 %v2564, %v2574
          %v2585 = vmul.f32 %v2565, %v2574
          %v2586 = vmul.f32 %v2566, %v2574
          %v2587 = vmul.f32 %v2567, %v2574
          %v2588 = vmul.f32 %v2568, %v2574
          %v2589 = vmul.f32 %v2569, %v2574
          %v2590 = vmul.f32 %v2570, %v2574
          %v2591 = vadd.f32 %v2539, %v2575
          %v2592 = vadd.f32 %v2540, %v2576
          %v2593 = vadd.f32 %v2541, %v2577
          %v2594 = vadd.f32 %v2542, %v2578
          %v2595 = vadd.f32 %v2543, %v2579
          %v2596 = vadd.f32 %v2544, %v2580
          %v2597 = vadd.f32 %v2545, %v2581
          %v2598 = vadd.f32 %v2546, %v2582
          %v2599 = vadd.f32 %v2547, %v2583
          %v2600 = vadd.f32 %v2548, %v2584
          %v2601 = vadd.f32 %v2549, %v2585
          %v2602 = vadd.f32 %v2550, %v2586
          %v2603 = vadd.f32 %v2551, %v2587
          %v2604 = vadd.f32 %v2552, %v2588
          %v2605 = vadd.f32 %v2553, %v2589
          %v2606 = vadd.f32 %v2554, %v2590
          %v2607 = vld [vmem:[%s2294 + $0xb] sm:$0xff]
          %v2608 = vld [vmem:[%s2294 + $0x13] sm:$0xff]
          %v2609 = vld [vmem:[%s2294 + $0x2b] sm:$0xff]
          %v2610 = vld [vmem:[%s2294 + $0x33] sm:$0xff]
          %v2611 = vld [vmem:[%s2294 + $0x4b] sm:$0xff]
          %v2612 = vld [vmem:[%s2294 + $0x53] sm:$0xff]
          %v2613 = vld [vmem:[%s2294 + $0x6b] sm:$0xff]
          %v2614 = vld [vmem:[%s2294 + $0x73] sm:$0xff]
          %v2615 = vld [vmem:[%s2294 + $0x8b] sm:$0xff]
          %v2616 = vld [vmem:[%s2294 + $0x93] sm:$0xff]
          %v2617 = vld [vmem:[%s2294 + $0xab] sm:$0xff]
          %v2618 = vld [vmem:[%s2294 + $0xb3] sm:$0xff]
          %v2619 = vld [vmem:[%s2294 + $0xcb] sm:$0xff]
          %v2620 = vld [vmem:[%s2294 + $0xd3] sm:$0xff]
          %v2621 = vld [vmem:[%s2294 + $0xeb] sm:$0xff]
          %v2622 = vld [vmem:[%s2294 + $0xf3] sm:$0xff]
          %v2623 = vlaneseq
          %v2624 = vshrl.u32 %v2623, 7
          %v2625 = vsub.s32 1, %v2624
          %v2626 = vrot.slane %v463, %v2625
          %v2627 = vmul.f32 %v2607, %v2626
          %v2628 = vmul.f32 %v2608, %v2626
          %v2629 = vmul.f32 %v2609, %v2626
          %v2630 = vmul.f32 %v2610, %v2626
          %v2631 = vmul.f32 %v2611, %v2626
          %v2632 = vmul.f32 %v2612, %v2626
          %v2633 = vmul.f32 %v2613, %v2626
          %v2634 = vmul.f32 %v2614, %v2626
          %v2635 = vmul.f32 %v2615, %v2626
          %v2636 = vmul.f32 %v2616, %v2626
          %v2637 = vmul.f32 %v2617, %v2626
          %v2638 = vmul.f32 %v2618, %v2626
          %v2639 = vmul.f32 %v2619, %v2626
          %v2640 = vmul.f32 %v2620, %v2626
          %v2641 = vmul.f32 %v2621, %v2626
          %v2642 = vmul.f32 %v2622, %v2626
          %v2643 = vadd.f32 %v2591, %v2627
          %v2644 = vadd.f32 %v2592, %v2628
          %v2645 = vadd.f32 %v2593, %v2629
          %v2646 = vadd.f32 %v2594, %v2630
          %v2647 = vadd.f32 %v2595, %v2631
          %v2648 = vadd.f32 %v2596, %v2632
          %v2649 = vadd.f32 %v2597, %v2633
          %v2650 = vadd.f32 %v2598, %v2634
          %v2651 = vadd.f32 %v2599, %v2635
          %v2652 = vadd.f32 %v2600, %v2636
          %v2653 = vadd.f32 %v2601, %v2637
          %v2654 = vadd.f32 %v2602, %v2638
          %v2655 = vadd.f32 %v2603, %v2639
          %v2656 = vadd.f32 %v2604, %v2640
          %v2657 = vadd.f32 %v2605, %v2641
          %v2658 = vadd.f32 %v2606, %v2642
          %s2659 = sadd.s32 %s473, 6
          %s2660 = smul.u32 %s2659, 32
          %s2661 = scalar_lea.vmem [#allocation2], %s2660
          %v2662 = vld [vmem:[%s2661 + $0x5] sm:$0xff]
          %v2663 = vld [vmem:[%s2661 + $0xd] sm:$0xff]
          %v2664 = vld [vmem:[%s2661 + $0x25] sm:$0xff]
          %v2665 = vld [vmem:[%s2661 + $0x2d] sm:$0xff]
          %v2666 = vld [vmem:[%s2661 + $0x45] sm:$0xff]
          %v2667 = vld [vmem:[%s2661 + $0x4d] sm:$0xff]
          %v2668 = vld [vmem:[%s2661 + $0x65] sm:$0xff]
          %v2669 = vld [vmem:[%s2661 + $0x6d] sm:$0xff]
          %v2670 = vld [vmem:[%s2661 + $0x85] sm:$0xff]
          %v2671 = vld [vmem:[%s2661 + $0x8d] sm:$0xff]
          %v2672 = vld [vmem:[%s2661 + $0xa5] sm:$0xff]
          %v2673 = vld [vmem:[%s2661 + $0xad] sm:$0xff]
          %v2674 = vld [vmem:[%s2661 + $0xc5] sm:$0xff]
          %v2675 = vld [vmem:[%s2661 + $0xcd] sm:$0xff]
          %v2676 = vld [vmem:[%s2661 + $0xe5] sm:$0xff]
          %v2677 = vld [vmem:[%s2661 + $0xed] sm:$0xff]
          %v2678 = vlaneseq
          %v2679 = vshrl.u32 %v2678, 7
          %v2680 = vsub.s32 2, %v2679
          %v2681 = vrot.slane %v463, %v2680
          %v2682 = vmul.f32 %v2662, %v2681
          %v2683 = vmul.f32 %v2663, %v2681
          %v2684 = vmul.f32 %v2664, %v2681
          %v2685 = vmul.f32 %v2665, %v2681
          %v2686 = vmul.f32 %v2666, %v2681
          %v2687 = vmul.f32 %v2667, %v2681
          %v2688 = vmul.f32 %v2668, %v2681
          %v2689 = vmul.f32 %v2669, %v2681
          %v2690 = vmul.f32 %v2670, %v2681
          %v2691 = vmul.f32 %v2671, %v2681
          %v2692 = vmul.f32 %v2672, %v2681
          %v2693 = vmul.f32 %v2673, %v2681
          %v2694 = vmul.f32 %v2674, %v2681
          %v2695 = vmul.f32 %v2675, %v2681
          %v2696 = vmul.f32 %v2676, %v2681
          %v2697 = vmul.f32 %v2677, %v2681
          %v2698 = vadd.f32 %v2643, %v2682
          %v2699 = vadd.f32 %v2644, %v2683
          %v2700 = vadd.f32 %v2645, %v2684
          %v2701 = vadd.f32 %v2646, %v2685
          %v2702 = vadd.f32 %v2647, %v2686
          %v2703 = vadd.f32 %v2648, %v2687
          %v2704 = vadd.f32 %v2649, %v2688
          %v2705 = vadd.f32 %v2650, %v2689
          %v2706 = vadd.f32 %v2651, %v2690
          %v2707 = vadd.f32 %v2652, %v2691
          %v2708 = vadd.f32 %v2653, %v2692
          %v2709 = vadd.f32 %v2654, %v2693
          %v2710 = vadd.f32 %v2655, %v2694
          %v2711 = vadd.f32 %v2656, %v2695
          %v2712 = vadd.f32 %v2657, %v2696
          %v2713 = vadd.f32 %v2658, %v2697
          %v2714 = vld [vmem:[%s2661 + $0x6] sm:$0xff]
          %v2715 = vld [vmem:[%s2661 + $0xe] sm:$0xff]
          %v2716 = vld [vmem:[%s2661 + $0x26] sm:$0xff]
          %v2717 = vld [vmem:[%s2661 + $0x2e] sm:$0xff]
          %v2718 = vld [vmem:[%s2661 + $0x46] sm:$0xff]
          %v2719 = vld [vmem:[%s2661 + $0x4e] sm:$0xff]
          %v2720 = vld [vmem:[%s2661 + $0x66] sm:$0xff]
          %v2721 = vld [vmem:[%s2661 + $0x6e] sm:$0xff]
          %v2722 = vld [vmem:[%s2661 + $0x86] sm:$0xff]
          %v2723 = vld [vmem:[%s2661 + $0x8e] sm:$0xff]
          %v2724 = vld [vmem:[%s2661 + $0xa6] sm:$0xff]
          %v2725 = vld [vmem:[%s2661 + $0xae] sm:$0xff]
          %v2726 = vld [vmem:[%s2661 + $0xc6] sm:$0xff]
          %v2727 = vld [vmem:[%s2661 + $0xce] sm:$0xff]
          %v2728 = vld [vmem:[%s2661 + $0xe6] sm:$0xff]
          %v2729 = vld [vmem:[%s2661 + $0xee] sm:$0xff]
          %v2730 = vlaneseq
          %v2731 = vshrl.u32 %v2730, 7
          %v2732 = vsub.s32 3, %v2731
          %v2733 = vrot.slane %v463, %v2732
          %v2734 = vmul.f32 %v2714, %v2733
          %v2735 = vmul.f32 %v2715, %v2733
          %v2736 = vmul.f32 %v2716, %v2733
          %v2737 = vmul.f32 %v2717, %v2733
          %v2738 = vmul.f32 %v2718, %v2733
          %v2739 = vmul.f32 %v2719, %v2733
          %v2740 = vmul.f32 %v2720, %v2733
          %v2741 = vmul.f32 %v2721, %v2733
          %v2742 = vmul.f32 %v2722, %v2733
          %v2743 = vmul.f32 %v2723, %v2733
          %v2744 = vmul.f32 %v2724, %v2733
          %v2745 = vmul.f32 %v2725, %v2733
          %v2746 = vmul.f32 %v2726, %v2733
          %v2747 = vmul.f32 %v2727, %v2733
          %v2748 = vmul.f32 %v2728, %v2733
          %v2749 = vmul.f32 %v2729, %v2733
          %v2750 = vadd.f32 %v2698, %v2734
          %v2751 = vadd.f32 %v2699, %v2735
          %v2752 = vadd.f32 %v2700, %v2736
          %v2753 = vadd.f32 %v2701, %v2737
          %v2754 = vadd.f32 %v2702, %v2738
          %v2755 = vadd.f32 %v2703, %v2739
          %v2756 = vadd.f32 %v2704, %v2740
          %v2757 = vadd.f32 %v2705, %v2741
          %v2758 = vadd.f32 %v2706, %v2742
          %v2759 = vadd.f32 %v2707, %v2743
          %v2760 = vadd.f32 %v2708, %v2744
          %v2761 = vadd.f32 %v2709, %v2745
          %v2762 = vadd.f32 %v2710, %v2746
          %v2763 = vadd.f32 %v2711, %v2747
          %v2764 = vadd.f32 %v2712, %v2748
          %v2765 = vadd.f32 %v2713, %v2749
          %v2766 = vld [vmem:[%s2661 + $0x7] sm:$0xff]
          %v2767 = vld [vmem:[%s2661 + $0xf] sm:$0xff]
          %v2768 = vld [vmem:[%s2661 + $0x27] sm:$0xff]
          %v2769 = vld [vmem:[%s2661 + $0x2f] sm:$0xff]
          %v2770 = vld [vmem:[%s2661 + $0x47] sm:$0xff]
          %v2771 = vld [vmem:[%s2661 + $0x4f] sm:$0xff]
          %v2772 = vld [vmem:[%s2661 + $0x67] sm:$0xff]
          %v2773 = vld [vmem:[%s2661 + $0x6f] sm:$0xff]
          %v2774 = vld [vmem:[%s2661 + $0x87] sm:$0xff]
          %v2775 = vld [vmem:[%s2661 + $0x8f] sm:$0xff]
          %v2776 = vld [vmem:[%s2661 + $0xa7] sm:$0xff]
          %v2777 = vld [vmem:[%s2661 + $0xaf] sm:$0xff]
          %v2778 = vld [vmem:[%s2661 + $0xc7] sm:$0xff]
          %v2779 = vld [vmem:[%s2661 + $0xcf] sm:$0xff]
          %v2780 = vld [vmem:[%s2661 + $0xe7] sm:$0xff]
          %v2781 = vld [vmem:[%s2661 + $0xef] sm:$0xff]
          %v2782 = vlaneseq
          %v2783 = vshrl.u32 %v2782, 7
          %v2784 = vsub.s32 4, %v2783
          %v2785 = vrot.slane %v463, %v2784
          %v2786 = vmul.f32 %v2766, %v2785
          %v2787 = vmul.f32 %v2767, %v2785
          %v2788 = vmul.f32 %v2768, %v2785
          %v2789 = vmul.f32 %v2769, %v2785
          %v2790 = vmul.f32 %v2770, %v2785
          %v2791 = vmul.f32 %v2771, %v2785
          %v2792 = vmul.f32 %v2772, %v2785
          %v2793 = vmul.f32 %v2773, %v2785
          %v2794 = vmul.f32 %v2774, %v2785
          %v2795 = vmul.f32 %v2775, %v2785
          %v2796 = vmul.f32 %v2776, %v2785
          %v2797 = vmul.f32 %v2777, %v2785
          %v2798 = vmul.f32 %v2778, %v2785
          %v2799 = vmul.f32 %v2779, %v2785
          %v2800 = vmul.f32 %v2780, %v2785
          %v2801 = vmul.f32 %v2781, %v2785
          %v2802 = vadd.f32 %v2750, %v2786
          %v2803 = vadd.f32 %v2751, %v2787
          %v2804 = vadd.f32 %v2752, %v2788
          %v2805 = vadd.f32 %v2753, %v2789
          %v2806 = vadd.f32 %v2754, %v2790
          %v2807 = vadd.f32 %v2755, %v2791
          %v2808 = vadd.f32 %v2756, %v2792
          %v2809 = vadd.f32 %v2757, %v2793
          %v2810 = vadd.f32 %v2758, %v2794
          %v2811 = vadd.f32 %v2759, %v2795
          %v2812 = vadd.f32 %v2760, %v2796
          %v2813 = vadd.f32 %v2761, %v2797
          %v2814 = vadd.f32 %v2762, %v2798
          %v2815 = vadd.f32 %v2763, %v2799
          %v2816 = vadd.f32 %v2764, %v2800
          %v2817 = vadd.f32 %v2765, %v2801
          %v2818 = vld [vmem:[%s2661 + $0x8] sm:$0xff]
          %v2819 = vld [vmem:[%s2661 + $0x10] sm:$0xff]
          %v2820 = vld [vmem:[%s2661 + $0x28] sm:$0xff]
          %v2821 = vld [vmem:[%s2661 + $0x30] sm:$0xff]
          %v2822 = vld [vmem:[%s2661 + $0x48] sm:$0xff]
          %v2823 = vld [vmem:[%s2661 + $0x50] sm:$0xff]
          %v2824 = vld [vmem:[%s2661 + $0x68] sm:$0xff]
          %v2825 = vld [vmem:[%s2661 + $0x70] sm:$0xff]
          %v2826 = vld [vmem:[%s2661 + $0x88] sm:$0xff]
          %v2827 = vld [vmem:[%s2661 + $0x90] sm:$0xff]
          %v2828 = vld [vmem:[%s2661 + $0xa8] sm:$0xff]
          %v2829 = vld [vmem:[%s2661 + $0xb0] sm:$0xff]
          %v2830 = vld [vmem:[%s2661 + $0xc8] sm:$0xff]
          %v2831 = vld [vmem:[%s2661 + $0xd0] sm:$0xff]
          %v2832 = vld [vmem:[%s2661 + $0xe8] sm:$0xff]
          %v2833 = vld [vmem:[%s2661 + $0xf0] sm:$0xff]
          %v2834 = vlaneseq
          %v2835 = vshrl.u32 %v2834, 7
          %v2836 = vsub.s32 5, %v2835
          %v2837 = vrot.slane %v463, %v2836
          %v2838 = vmul.f32 %v2818, %v2837
          %v2839 = vmul.f32 %v2819, %v2837
          %v2840 = vmul.f32 %v2820, %v2837
          %v2841 = vmul.f32 %v2821, %v2837
          %v2842 = vmul.f32 %v2822, %v2837
          %v2843 = vmul.f32 %v2823, %v2837
          %v2844 = vmul.f32 %v2824, %v2837
          %v2845 = vmul.f32 %v2825, %v2837
          %v2846 = vmul.f32 %v2826, %v2837
          %v2847 = vmul.f32 %v2827, %v2837
          %v2848 = vmul.f32 %v2828, %v2837
          %v2849 = vmul.f32 %v2829, %v2837
          %v2850 = vmul.f32 %v2830, %v2837
          %v2851 = vmul.f32 %v2831, %v2837
          %v2852 = vmul.f32 %v2832, %v2837
          %v2853 = vmul.f32 %v2833, %v2837
          %v2854 = vadd.f32 %v2802, %v2838
          %v2855 = vadd.f32 %v2803, %v2839
          %v2856 = vadd.f32 %v2804, %v2840
          %v2857 = vadd.f32 %v2805, %v2841
          %v2858 = vadd.f32 %v2806, %v2842
          %v2859 = vadd.f32 %v2807, %v2843
          %v2860 = vadd.f32 %v2808, %v2844
          %v2861 = vadd.f32 %v2809, %v2845
          %v2862 = vadd.f32 %v2810, %v2846
          %v2863 = vadd.f32 %v2811, %v2847
          %v2864 = vadd.f32 %v2812, %v2848
          %v2865 = vadd.f32 %v2813, %v2849
          %v2866 = vadd.f32 %v2814, %v2850
          %v2867 = vadd.f32 %v2815, %v2851
          %v2868 = vadd.f32 %v2816, %v2852
          %v2869 = vadd.f32 %v2817, %v2853
          %v2870 = vld [vmem:[%s2661 + $0x9] sm:$0xff]
          %v2871 = vld [vmem:[%s2661 + $0x11] sm:$0xff]
          %v2872 = vld [vmem:[%s2661 + $0x29] sm:$0xff]
          %v2873 = vld [vmem:[%s2661 + $0x31] sm:$0xff]
          %v2874 = vld [vmem:[%s2661 + $0x49] sm:$0xff]
          %v2875 = vld [vmem:[%s2661 + $0x51] sm:$0xff]
          %v2876 = vld [vmem:[%s2661 + $0x69] sm:$0xff]
          %v2877 = vld [vmem:[%s2661 + $0x71] sm:$0xff]
          %v2878 = vld [vmem:[%s2661 + $0x89] sm:$0xff]
          %v2879 = vld [vmem:[%s2661 + $0x91] sm:$0xff]
          %v2880 = vld [vmem:[%s2661 + $0xa9] sm:$0xff]
          %v2881 = vld [vmem:[%s2661 + $0xb1] sm:$0xff]
          %v2882 = vld [vmem:[%s2661 + $0xc9] sm:$0xff]
          %v2883 = vld [vmem:[%s2661 + $0xd1] sm:$0xff]
          %v2884 = vld [vmem:[%s2661 + $0xe9] sm:$0xff]
          %v2885 = vld [vmem:[%s2661 + $0xf1] sm:$0xff]
          %v2886 = vlaneseq
          %v2887 = vshrl.u32 %v2886, 7
          %v2888 = vsub.s32 6, %v2887
          %v2889 = vrot.slane %v463, %v2888
          %v2890 = vmul.f32 %v2870, %v2889
          %v2891 = vmul.f32 %v2871, %v2889
          %v2892 = vmul.f32 %v2872, %v2889
          %v2893 = vmul.f32 %v2873, %v2889
          %v2894 = vmul.f32 %v2874, %v2889
          %v2895 = vmul.f32 %v2875, %v2889
          %v2896 = vmul.f32 %v2876, %v2889
          %v2897 = vmul.f32 %v2877, %v2889
          %v2898 = vmul.f32 %v2878, %v2889
          %v2899 = vmul.f32 %v2879, %v2889
          %v2900 = vmul.f32 %v2880, %v2889
          %v2901 = vmul.f32 %v2881, %v2889
          %v2902 = vmul.f32 %v2882, %v2889
          %v2903 = vmul.f32 %v2883, %v2889
          %v2904 = vmul.f32 %v2884, %v2889
          %v2905 = vmul.f32 %v2885, %v2889
          %v2906 = vadd.f32 %v2854, %v2890
          %v2907 = vadd.f32 %v2855, %v2891
          %v2908 = vadd.f32 %v2856, %v2892
          %v2909 = vadd.f32 %v2857, %v2893
          %v2910 = vadd.f32 %v2858, %v2894
          %v2911 = vadd.f32 %v2859, %v2895
          %v2912 = vadd.f32 %v2860, %v2896
          %v2913 = vadd.f32 %v2861, %v2897
          %v2914 = vadd.f32 %v2862, %v2898
          %v2915 = vadd.f32 %v2863, %v2899
          %v2916 = vadd.f32 %v2864, %v2900
          %v2917 = vadd.f32 %v2865, %v2901
          %v2918 = vadd.f32 %v2866, %v2902
          %v2919 = vadd.f32 %v2867, %v2903
          %v2920 = vadd.f32 %v2868, %v2904
          %v2921 = vadd.f32 %v2869, %v2905
          %v2922 = vld [vmem:[%s2661 + $0xa] sm:$0xff]
          %v2923 = vld [vmem:[%s2661 + $0x12] sm:$0xff]
          %v2924 = vld [vmem:[%s2661 + $0x2a] sm:$0xff]
          %v2925 = vld [vmem:[%s2661 + $0x32] sm:$0xff]
          %v2926 = vld [vmem:[%s2661 + $0x4a] sm:$0xff]
          %v2927 = vld [vmem:[%s2661 + $0x52] sm:$0xff]
          %v2928 = vld [vmem:[%s2661 + $0x6a] sm:$0xff]
          %v2929 = vld [vmem:[%s2661 + $0x72] sm:$0xff]
          %v2930 = vld [vmem:[%s2661 + $0x8a] sm:$0xff]
          %v2931 = vld [vmem:[%s2661 + $0x92] sm:$0xff]
          %v2932 = vld [vmem:[%s2661 + $0xaa] sm:$0xff]
          %v2933 = vld [vmem:[%s2661 + $0xb2] sm:$0xff]
          %v2934 = vld [vmem:[%s2661 + $0xca] sm:$0xff]
          %v2935 = vld [vmem:[%s2661 + $0xd2] sm:$0xff]
          %v2936 = vld [vmem:[%s2661 + $0xea] sm:$0xff]
          %v2937 = vld [vmem:[%s2661 + $0xf2] sm:$0xff]
          %v2938 = vlaneseq
          %v2939 = vshrl.u32 %v2938, 7
          %v2940 = vsub.s32 7, %v2939
          %v2941 = vrot.slane %v463, %v2940
          %v2942 = vmul.f32 %v2922, %v2941
          %v2943 = vmul.f32 %v2923, %v2941
          %v2944 = vmul.f32 %v2924, %v2941
          %v2945 = vmul.f32 %v2925, %v2941
          %v2946 = vmul.f32 %v2926, %v2941
          %v2947 = vmul.f32 %v2927, %v2941
          %v2948 = vmul.f32 %v2928, %v2941
          %v2949 = vmul.f32 %v2929, %v2941
          %v2950 = vmul.f32 %v2930, %v2941
          %v2951 = vmul.f32 %v2931, %v2941
          %v2952 = vmul.f32 %v2932, %v2941
          %v2953 = vmul.f32 %v2933, %v2941
          %v2954 = vmul.f32 %v2934, %v2941
          %v2955 = vmul.f32 %v2935, %v2941
          %v2956 = vmul.f32 %v2936, %v2941
          %v2957 = vmul.f32 %v2937, %v2941
          %v2958 = vadd.f32 %v2906, %v2942
          %v2959 = vadd.f32 %v2907, %v2943
          %v2960 = vadd.f32 %v2908, %v2944
          %v2961 = vadd.f32 %v2909, %v2945
          %v2962 = vadd.f32 %v2910, %v2946
          %v2963 = vadd.f32 %v2911, %v2947
          %v2964 = vadd.f32 %v2912, %v2948
          %v2965 = vadd.f32 %v2913, %v2949
          %v2966 = vadd.f32 %v2914, %v2950
          %v2967 = vadd.f32 %v2915, %v2951
          %v2968 = vadd.f32 %v2916, %v2952
          %v2969 = vadd.f32 %v2917, %v2953
          %v2970 = vadd.f32 %v2918, %v2954
          %v2971 = vadd.f32 %v2919, %v2955
          %v2972 = vadd.f32 %v2920, %v2956
          %v2973 = vadd.f32 %v2921, %v2957
          %v2974 = vld [vmem:[%s2661 + $0xb] sm:$0xff]
          %v2975 = vld [vmem:[%s2661 + $0x13] sm:$0xff]
          %v2976 = vld [vmem:[%s2661 + $0x2b] sm:$0xff]
          %v2977 = vld [vmem:[%s2661 + $0x33] sm:$0xff]
          %v2978 = vld [vmem:[%s2661 + $0x4b] sm:$0xff]
          %v2979 = vld [vmem:[%s2661 + $0x53] sm:$0xff]
          %v2980 = vld [vmem:[%s2661 + $0x6b] sm:$0xff]
          %v2981 = vld [vmem:[%s2661 + $0x73] sm:$0xff]
          %v2982 = vld [vmem:[%s2661 + $0x8b] sm:$0xff]
          %v2983 = vld [vmem:[%s2661 + $0x93] sm:$0xff]
          %v2984 = vld [vmem:[%s2661 + $0xab] sm:$0xff]
          %v2985 = vld [vmem:[%s2661 + $0xb3] sm:$0xff]
          %v2986 = vld [vmem:[%s2661 + $0xcb] sm:$0xff]
          %v2987 = vld [vmem:[%s2661 + $0xd3] sm:$0xff]
          %v2988 = vld [vmem:[%s2661 + $0xeb] sm:$0xff]
          %v2989 = vld [vmem:[%s2661 + $0xf3] sm:$0xff]
          %v2990 = vlaneseq
          %v2991 = vshrl.u32 %v2990, 7
          %v2992 = vsub.s32 0, %v2991
          %v2993 = vrot.slane %v464, %v2992
          %v2994 = vmul.f32 %v2974, %v2993
          %v2995 = vmul.f32 %v2975, %v2993
          %v2996 = vmul.f32 %v2976, %v2993
          %v2997 = vmul.f32 %v2977, %v2993
          %v2998 = vmul.f32 %v2978, %v2993
          %v2999 = vmul.f32 %v2979, %v2993
          %v3000 = vmul.f32 %v2980, %v2993
          %v3001 = vmul.f32 %v2981, %v2993
          %v3002 = vmul.f32 %v2982, %v2993
          %v3003 = vmul.f32 %v2983, %v2993
          %v3004 = vmul.f32 %v2984, %v2993
          %v3005 = vmul.f32 %v2985, %v2993
          %v3006 = vmul.f32 %v2986, %v2993
          %v3007 = vmul.f32 %v2987, %v2993
          %v3008 = vmul.f32 %v2988, %v2993
          %v3009 = vmul.f32 %v2989, %v2993
          %v3010 = vadd.f32 %v2958, %v2994
          %v3011 = vadd.f32 %v2959, %v2995
          %v3012 = vadd.f32 %v2960, %v2996
          %v3013 = vadd.f32 %v2961, %v2997
          %v3014 = vadd.f32 %v2962, %v2998
          %v3015 = vadd.f32 %v2963, %v2999
          %v3016 = vadd.f32 %v2964, %v3000
          %v3017 = vadd.f32 %v2965, %v3001
          %v3018 = vadd.f32 %v2966, %v3002
          %v3019 = vadd.f32 %v2967, %v3003
          %v3020 = vadd.f32 %v2968, %v3004
          %v3021 = vadd.f32 %v2969, %v3005
          %v3022 = vadd.f32 %v2970, %v3006
          %v3023 = vadd.f32 %v2971, %v3007
          %v3024 = vadd.f32 %v2972, %v3008
          %v3025 = vadd.f32 %v2973, %v3009
          %v3026 = vsel %vm236, %v3010, 0.0
          %3027 = vadd.xlane.f32.xlu0 %v3026
          %v3028 = vpop.xlane.xlu0 %3027
          %v3029 = vsel %vm236, %v3011, 0.0
          %3030 = vadd.xlane.f32.xlu0 %v3029
          %v3031 = vpop.xlane.xlu0 %3030
          %v3032 = vsel %vm236, %v3012, 0.0
          %3033 = vadd.xlane.f32.xlu0 %v3032
          %v3034 = vpop.xlane.xlu0 %3033
          %v3035 = vsel %vm236, %v3013, 0.0
          %3036 = vadd.xlane.f32.xlu0 %v3035
          %v3037 = vpop.xlane.xlu0 %3036
          %v3038 = vsel %vm236, %v3014, 0.0
          %3039 = vadd.xlane.f32.xlu0 %v3038
          %v3040 = vpop.xlane.xlu0 %3039
          %v3041 = vsel %vm236, %v3015, 0.0
          %3042 = vadd.xlane.f32.xlu0 %v3041
          %v3043 = vpop.xlane.xlu0 %3042
          %v3044 = vsel %vm236, %v3016, 0.0
          %3045 = vadd.xlane.f32.xlu0 %v3044
          %v3046 = vpop.xlane.xlu0 %3045
          %v3047 = vsel %vm236, %v3017, 0.0
          %3048 = vadd.xlane.f32.xlu0 %v3047
          %v3049 = vpop.xlane.xlu0 %3048
          %v3050 = vsel %vm236, %v3018, 0.0
          %3051 = vadd.xlane.f32.xlu0 %v3050
          %v3052 = vpop.xlane.xlu0 %3051
          %v3053 = vsel %vm236, %v3019, 0.0
          %3054 = vadd.xlane.f32.xlu0 %v3053
          %v3055 = vpop.xlane.xlu0 %3054
          %v3056 = vsel %vm236, %v3020, 0.0
          %3057 = vadd.xlane.f32.xlu0 %v3056
          %v3058 = vpop.xlane.xlu0 %3057
          %v3059 = vsel %vm236, %v3021, 0.0
          %3060 = vadd.xlane.f32.xlu0 %v3059
          %v3061 = vpop.xlane.xlu0 %3060
          %v3062 = vsel %vm236, %v3022, 0.0
          %3063 = vadd.xlane.f32.xlu0 %v3062
          %v3064 = vpop.xlane.xlu0 %3063
          %v3065 = vsel %vm236, %v3023, 0.0
          %3066 = vadd.xlane.f32.xlu0 %v3065
          %v3067 = vpop.xlane.xlu0 %3066
          %v3068 = vsel %vm236, %v3024, 0.0
          %3069 = vadd.xlane.f32.xlu0 %v3068
          %v3070 = vpop.xlane.xlu0 %3069
          %v3071 = vsel %vm236, %v3025, 0.0
          %3072 = vadd.xlane.f32.xlu0 %v3071
          %v3073 = vpop.xlane.xlu0 %3072
          %v3074 = vrcp.pop 32.0
          %v3075 = vmul.f32 %v3028, %v3074
          %v3076 = vmul.f32 %v3031, %v3074
          %v3077 = vmul.f32 %v3034, %v3074
          %v3078 = vmul.f32 %v3037, %v3074
          %v3079 = vmul.f32 %v3040, %v3074
          %v3080 = vmul.f32 %v3043, %v3074
          %v3081 = vmul.f32 %v3046, %v3074
          %v3082 = vmul.f32 %v3049, %v3074
          %v3083 = vmul.f32 %v3052, %v3074
          %v3084 = vmul.f32 %v3055, %v3074
          %v3085 = vmul.f32 %v3058, %v3074
          %v3086 = vmul.f32 %v3061, %v3074
          %v3087 = vmul.f32 %v3064, %v3074
          %v3088 = vmul.f32 %v3067, %v3074
          %v3089 = vmul.f32 %v3070, %v3074
          %v3090 = vmul.f32 %v3073, %v3074
          %v3091 = vsub.f32 %v3010, %v3075
          %v3092 = vsub.f32 %v3011, %v3076
          %v3093 = vsub.f32 %v3012, %v3077
          %v3094 = vsub.f32 %v3013, %v3078
          %v3095 = vsub.f32 %v3014, %v3079
          %v3096 = vsub.f32 %v3015, %v3080
          %v3097 = vsub.f32 %v3016, %v3081
          %v3098 = vsub.f32 %v3017, %v3082
          %v3099 = vsub.f32 %v3018, %v3083
          %v3100 = vsub.f32 %v3019, %v3084
          %v3101 = vsub.f32 %v3020, %v3085
          %v3102 = vsub.f32 %v3021, %v3086
          %v3103 = vsub.f32 %v3022, %v3087
          %v3104 = vsub.f32 %v3023, %v3088
          %v3105 = vsub.f32 %v3024, %v3089
          %v3106 = vsub.f32 %v3025, %v3090
          %v3107 = vmul.f32 %v3091, %v3091
          %v3108 = vmul.f32 %v3092, %v3092
          %v3109 = vmul.f32 %v3093, %v3093
          %v3110 = vmul.f32 %v3094, %v3094
          %v3111 = vmul.f32 %v3095, %v3095
          %v3112 = vmul.f32 %v3096, %v3096
          %v3113 = vmul.f32 %v3097, %v3097
          %v3114 = vmul.f32 %v3098, %v3098
          %v3115 = vmul.f32 %v3099, %v3099
          %v3116 = vmul.f32 %v3100, %v3100
          %v3117 = vmul.f32 %v3101, %v3101
          %v3118 = vmul.f32 %v3102, %v3102
          %v3119 = vmul.f32 %v3103, %v3103
          %v3120 = vmul.f32 %v3104, %v3104
          %v3121 = vmul.f32 %v3105, %v3105
          %v3122 = vmul.f32 %v3106, %v3106
          %v3123 = vsel %vm236, %v3107, 0.0
          %3124 = vadd.xlane.f32.xlu0 %v3123
          %v3125 = vpop.xlane.xlu0 %3124
          %v3126 = vsel %vm236, %v3108, 0.0
          %3127 = vadd.xlane.f32.xlu0 %v3126
          %v3128 = vpop.xlane.xlu0 %3127
          %v3129 = vsel %vm236, %v3109, 0.0
          %3130 = vadd.xlane.f32.xlu0 %v3129
          %v3131 = vpop.xlane.xlu0 %3130
          %v3132 = vsel %vm236, %v3110, 0.0
          %3133 = vadd.xlane.f32.xlu0 %v3132
          %v3134 = vpop.xlane.xlu0 %3133
          %v3135 = vsel %vm236, %v3111, 0.0
          %3136 = vadd.xlane.f32.xlu0 %v3135
          %v3137 = vpop.xlane.xlu0 %3136
          %v3138 = vsel %vm236, %v3112, 0.0
          %3139 = vadd.xlane.f32.xlu0 %v3138
          %v3140 = vpop.xlane.xlu0 %3139
          %v3141 = vsel %vm236, %v3113, 0.0
          %3142 = vadd.xlane.f32.xlu0 %v3141
          %v3143 = vpop.xlane.xlu0 %3142
          %v3144 = vsel %vm236, %v3114, 0.0
          %3145 = vadd.xlane.f32.xlu0 %v3144
          %v3146 = vpop.xlane.xlu0 %3145
          %v3147 = vsel %vm236, %v3115, 0.0
          %3148 = vadd.xlane.f32.xlu0 %v3147
          %v3149 = vpop.xlane.xlu0 %3148
          %v3150 = vsel %vm236, %v3116, 0.0
          %3151 = vadd.xlane.f32.xlu0 %v3150
          %v3152 = vpop.xlane.xlu0 %3151
          %v3153 = vsel %vm236, %v3117, 0.0
          %3154 = vadd.xlane.f32.xlu0 %v3153
          %v3155 = vpop.xlane.xlu0 %3154
          %v3156 = vsel %vm236, %v3118, 0.0
          %3157 = vadd.xlane.f32.xlu0 %v3156
          %v3158 = vpop.xlane.xlu0 %3157
          %v3159 = vsel %vm236, %v3119, 0.0
          %3160 = vadd.xlane.f32.xlu0 %v3159
          %v3161 = vpop.xlane.xlu0 %3160
          %v3162 = vsel %vm236, %v3120, 0.0
          %3163 = vadd.xlane.f32.xlu0 %v3162
          %v3164 = vpop.xlane.xlu0 %3163
          %v3165 = vsel %vm236, %v3121, 0.0
          %3166 = vadd.xlane.f32.xlu0 %v3165
          %v3167 = vpop.xlane.xlu0 %3166
          %v3168 = vsel %vm236, %v3122, 0.0
          %3169 = vadd.xlane.f32.xlu0 %v3168
          %v3170 = vpop.xlane.xlu0 %3169
          %v3171 = vmul.f32 %v3125, %v3074
          %v3172 = vmul.f32 %v3128, %v3074
          %v3173 = vmul.f32 %v3131, %v3074
          %v3174 = vmul.f32 %v3134, %v3074
          %v3175 = vmul.f32 %v3137, %v3074
          %v3176 = vmul.f32 %v3140, %v3074
          %v3177 = vmul.f32 %v3143, %v3074
          %v3178 = vmul.f32 %v3146, %v3074
          %v3179 = vmul.f32 %v3149, %v3074
          %v3180 = vmul.f32 %v3152, %v3074
          %v3181 = vmul.f32 %v3155, %v3074
          %v3182 = vmul.f32 %v3158, %v3074
          %v3183 = vmul.f32 %v3161, %v3074
          %v3184 = vmul.f32 %v3164, %v3074
          %v3185 = vmul.f32 %v3167, %v3074
          %v3186 = vmul.f32 %v3170, %v3074
          %v3187 = vadd.f32 %v3171, 1e-05
          %v3188 = vadd.f32 %v3172, 1e-05
          %v3189 = vadd.f32 %v3173, 1e-05
          %v3190 = vadd.f32 %v3174, 1e-05
          %v3191 = vadd.f32 %v3175, 1e-05
          %v3192 = vadd.f32 %v3176, 1e-05
          %v3193 = vadd.f32 %v3177, 1e-05
          %v3194 = vadd.f32 %v3178, 1e-05
          %v3195 = vadd.f32 %v3179, 1e-05
          %v3196 = vadd.f32 %v3180, 1e-05
          %v3197 = vadd.f32 %v3181, 1e-05
          %v3198 = vadd.f32 %v3182, 1e-05
          %v3199 = vadd.f32 %v3183, 1e-05
          %v3200 = vadd.f32 %v3184, 1e-05
          %v3201 = vadd.f32 %v3185, 1e-05
          %v3202 = vadd.f32 %v3186, 1e-05
          %v3203 = vrsqrt.pop %v3187
          %v3204 = vrsqrt.pop %v3188
          %v3205 = vrsqrt.pop %v3189
          %v3206 = vrsqrt.pop %v3190
          %v3207 = vrsqrt.pop %v3191
          %v3208 = vrsqrt.pop %v3192
          %v3209 = vrsqrt.pop %v3193
          %v3210 = vrsqrt.pop %v3194
          %v3211 = vrsqrt.pop %v3195
          %v3212 = vrsqrt.pop %v3196
          %v3213 = vrsqrt.pop %v3197
          %v3214 = vrsqrt.pop %v3198
          %v3215 = vrsqrt.pop %v3199
          %v3216 = vrsqrt.pop %v3200
          %v3217 = vrsqrt.pop %v3201
          %v3218 = vrsqrt.pop %v3202
          %v3219 = vmul.f32 %v3091, %v3203
          %v3220 = vmul.f32 %v3092, %v3204
          %v3221 = vmul.f32 %v3093, %v3205
          %v3222 = vmul.f32 %v3094, %v3206
          %v3223 = vmul.f32 %v3095, %v3207
          %v3224 = vmul.f32 %v3096, %v3208
          %v3225 = vmul.f32 %v3097, %v3209
          %v3226 = vmul.f32 %v3098, %v3210
          %v3227 = vmul.f32 %v3099, %v3211
          %v3228 = vmul.f32 %v3100, %v3212
          %v3229 = vmul.f32 %v3101, %v3213
          %v3230 = vmul.f32 %v3102, %v3214
          %v3231 = vmul.f32 %v3103, %v3215
          %v3232 = vmul.f32 %v3104, %v3216
          %v3233 = vmul.f32 %v3105, %v3217
          %v3234 = vmul.f32 %v3106, %v3218
          %v3236 = vlaneseq
          %v3237 = vshrl.u32 %v3236, 7
          %v3238 = vsub.s32 0, %v3237
          %v3239 = vrot.slane %v465, %v3238
          %v3241 = vmul.f32 %v3219, %v3239
          %v3242 = vmul.f32 %v3220, %v3239
          %v3243 = vmul.f32 %v3221, %v3239
          %v3244 = vmul.f32 %v3222, %v3239
          %v3245 = vmul.f32 %v3223, %v3239
          %v3246 = vmul.f32 %v3224, %v3239
          %v3247 = vmul.f32 %v3225, %v3239
          %v3248 = vmul.f32 %v3226, %v3239
          %v3249 = vmul.f32 %v3227, %v3239
          %v3250 = vmul.f32 %v3228, %v3239
          %v3251 = vmul.f32 %v3229, %v3239
          %v3252 = vmul.f32 %v3230, %v3239
          %v3253 = vmul.f32 %v3231, %v3239
          %v3254 = vmul.f32 %v3232, %v3239
          %v3255 = vmul.f32 %v3233, %v3239
          %v3256 = vmul.f32 %v3234, %v3239
          %v3258 = vlaneseq
          %v3259 = vshrl.u32 %v3258, 7
          %v3260 = vsub.s32 0, %v3259
          %v3261 = vrot.slane %v466, %v3260
          %v3263 = vadd.f32 %v3241, %v3261
          %v3264 = vadd.f32 %v3242, %v3261
          %v3265 = vadd.f32 %v3243, %v3261
          %v3266 = vadd.f32 %v3244, %v3261
          %v3267 = vadd.f32 %v3245, %v3261
          %v3268 = vadd.f32 %v3246, %v3261
          %v3269 = vadd.f32 %v3247, %v3261
          %v3270 = vadd.f32 %v3248, %v3261
          %v3271 = vadd.f32 %v3249, %v3261
          %v3272 = vadd.f32 %v3250, %v3261
          %v3273 = vadd.f32 %v3251, %v3261
          %v3274 = vadd.f32 %v3252, %v3261
          %v3275 = vadd.f32 %v3253, %v3261
          %v3276 = vadd.f32 %v3254, %v3261
          %v3277 = vadd.f32 %v3255, %v3261
          %v3278 = vadd.f32 %v3256, %v3261
          %v3279 = vmax.f32 %v3263, 0.0
          %v3280 = vmax.f32 %v3264, 0.0
          %v3281 = vmax.f32 %v3265, 0.0
          %v3282 = vmax.f32 %v3266, 0.0
          %v3283 = vmax.f32 %v3267, 0.0
          %v3284 = vmax.f32 %v3268, 0.0
          %v3285 = vmax.f32 %v3269, 0.0
          %v3286 = vmax.f32 %v3270, 0.0
          %v3287 = vmax.f32 %v3271, 0.0
          %v3288 = vmax.f32 %v3272, 0.0
          %v3289 = vmax.f32 %v3273, 0.0
          %v3290 = vmax.f32 %v3274, 0.0
          %v3291 = vmax.f32 %v3275, 0.0
          %v3292 = vmax.f32 %v3276, 0.0
          %v3293 = vmax.f32 %v3277, 0.0
          %v3294 = vmax.f32 %v3278, 0.0
          %v3295 = vadd.f32 %v3279, %v1717
          %v3296 = vadd.f32 %v3280, %v1718
          %v3297 = vadd.f32 %v3281, %v1719
          %v3298 = vadd.f32 %v3282, %v1720
          %v3299 = vadd.f32 %v3283, %v1721
          %v3300 = vadd.f32 %v3284, %v1722
          %v3301 = vadd.f32 %v3285, %v1723
          %v3302 = vadd.f32 %v3286, %v1724
          %v3303 = vadd.f32 %v3287, %v1725
          %v3304 = vadd.f32 %v3288, %v1726
          %v3305 = vadd.f32 %v3289, %v1727
          %v3306 = vadd.f32 %v3290, %v1728
          %v3307 = vadd.f32 %v3291, %v1729
          %v3308 = vadd.f32 %v3292, %v1730
          %v3309 = vadd.f32 %v3293, %v1731
          %v3310 = vadd.f32 %v3294, %v1732
          %s3311 = smul.u32 %s473, 16
          %s3312 = scalar_lea.vmem %s230, %s3311 [#allocation6]
          %3313 = vst.msk [vmem:[%s3312] sm:$0xff] %vm236, %v3295
          %3314 = vst.msk [vmem:[%s3312 + $0x8] sm:$0xff] %vm236, %v3296
          %3315 = vst.msk [vmem:[%s3312 + $0x10] sm:$0xff] %vm236, %v3297
          %3316 = vst.msk [vmem:[%s3312 + $0x18] sm:$0xff] %vm236, %v3298
          %3317 = vst.msk [vmem:[%s3312 + $0x20] sm:$0xff] %vm236, %v3299
          %3318 = vst.msk [vmem:[%s3312 + $0x28] sm:$0xff] %vm236, %v3300
          %3319 = vst.msk [vmem:[%s3312 + $0x30] sm:$0xff] %vm236, %v3301
          %3320 = vst.msk [vmem:[%s3312 + $0x38] sm:$0xff] %vm236, %v3302
          %3321 = vst.msk [vmem:[%s3312 + $0x40] sm:$0xff] %vm236, %v3303
          %3322 = vst.msk [vmem:[%s3312 + $0x48] sm:$0xff] %vm236, %v3304
          %3323 = vst.msk [vmem:[%s3312 + $0x50] sm:$0xff] %vm236, %v3305
          %3324 = vst.msk [vmem:[%s3312 + $0x58] sm:$0xff] %vm236, %v3306
          %3325 = vst.msk [vmem:[%s3312 + $0x60] sm:$0xff] %vm236, %v3307
          %3326 = vst.msk [vmem:[%s3312 + $0x68] sm:$0xff] %vm236, %v3308
          %3327 = vst.msk [vmem:[%s3312 + $0x70] sm:$0xff] %vm236, %v3309
          %3328 = vst.msk [vmem:[%s3312 + $0x78] sm:$0xff] %vm236, %v3310
        $region45: #{tpu_custom_call.1} parent=35 // loop_footer
          %s472 = sadd.s32 1, %s468
        $region46: #{tpu_custom_call.1} parent=35 // loop_footer_branch
          %467 = sbr.rel target = $region42
        $region47: #{tpu_custom_call.1} parent=35 // loop_exit
          _
        %s3329 = sand.u32 %s123, 1
        %s3330 = scalar_lea.sflag [#allocation5], %s3329
        %s3331 = sand.u32 %s123, 1
        %s3332 = smul.addr %s3331, 256
        %s3333 = scalar_lea.vmem [#allocation6], %s3332
        // Predicated region
        $region48: #{tpu_custom_call.1} parent=35 // pred_check
          %p3334 = pneg %p133
        $region49: #{tpu_custom_call.1} parent=35 // pred_check_branch
          %3336 = sbr.rel (%p3334) target = $region51
        $region50: #{tpu_custom_call.1} parent=35 // pred_region
          %s3338 = ssub.s32 4096, 4096
          %3339 = vsyncadd %s3330, %s3338
          %s3340 = smul.addr %s21, 32
          %s3341 = smul.addr %s3340, 128
          %s3342 = scalar_lea.hbm %s4, %s3341
          %s3343 = sshll.u32 %s3333, 4
          %s3344 = int_to_ptr.vmem [resolvable:$true] %s3343
          %3349 = dma.vmem_to_hbm [thread:$0]  %s3344, 4096, %s3342, %s3330, 128, 128, 8
        $region51: #{tpu_custom_call.1} parent=35 // pred_fallthru
          _
      $region36: #{tpu_custom_call.1} parent=5 // pred_fallthru
        _
      %p3350 = scmp.le.s32.totalorder 2, %s16
      // Predicated region
      $region52: #{tpu_custom_call.1} parent=5 // pred_check
        %p3351 = pneg %p3350
      $region53: #{tpu_custom_call.1} parent=5 // pred_check_branch
        %3353 = sbr.rel (%p3351) target = $region55
      $region54: #{tpu_custom_call.1} parent=5 // pred_region
        %s3354 = ssub.s32 %s16, 2
        // Predicated region
        $region56: #{tpu_custom_call.1} parent=54 // pred_check
          %p3355 = pneg %p139
        $region57: #{tpu_custom_call.1} parent=54 // pred_check_branch
          %3357 = sbr.rel (%p3355) target = $region59
        $region58: #{tpu_custom_call.1} parent=54 // pred_region
          %s3358 = sand.u32 %s124, 1
          %s3359 = scalar_lea.sflag [#allocation5], %s3358
          %s3360 = sand.u32 %s124, 1
          %s3361 = smul.addr %s3360, 256
          %s3362 = scalar_lea.vmem [#allocation6], %s3361
          %3363 = dma.done %s3359, 4096
        $region59: #{tpu_custom_call.1} parent=54 // pred_fallthru
          _
      $region55: #{tpu_custom_call.1} parent=5 // pred_fallthru
        _
    $region6: #{tpu_custom_call.1} parent=1 // loop_footer
      %s20 = sadd.s32 1, %s16
    $region7: #{tpu_custom_call.1} parent=1 // loop_footer_branch
      %15 = sbr.rel target = $region3
    $region8: #{tpu_custom_call.1} parent=1 // loop_exit
      _
    %3364 = vsyncpa [#allocation4], 1
    %s3365 = scalar_lea.sflag [#allocation4], 1
    %3366 = vsyncpa %s3365, 1
    %3367 = vsyncpa [#allocation5], 1
    %s3368 = scalar_lea.sflag [#allocation5], 1
    %3369 = vsyncpa %s3368, 1

</llo_original>
